<compile_context>
chip_gen: v7x
topology: tpu7x:2x2x1
jax: 0.10.0
libtpu: 0.0.40
codegen_flags: <defaults>
</compile_context>

<pallas_src>
import functools

import jax
import jax.numpy as jnp
from jax.experimental import pallas as pl
from jax.experimental.pallas import tpu as pltpu

PART = 7
EPS = 1e-6


def _layer_norm(z, w, b):
    mu = jnp.mean(z, axis=-1, keepdims=True)
    var = jnp.mean(jnp.square(z - mu), axis=-1, keepdims=True)
    return (z - mu) * jax.lax.rsqrt(var + EPS) * w + b


def _silutopsis_kernel(x_ref, wq_ref, bq_ref, wk_ref, bk_ref, wv_ref, bv_ref,
                       wlin_ref, wln_ref, bln_ref, o_ref, *, g, d, c, tt, scl):
    x = x_ref[...]                                    # (bt, N, TT*C) lane-dense
    bt = x.shape[0]

    # AvgPool2d(kernel=T, stride=T): pixel p of a cell lives on lanes
    # [p*C, (p+1)*C) of the packed layout, so the pool is a sum of lane slices.
    box = x[:, :, 0:c]
    for px in range(1, tt):
        box = box + x[:, :, px * c:(px + 1) * c]
    box = box * (1.0 / tt)                            # (bt, N, C)

    # q / k / v LayerNorms share mean / variance / rsqrt of `box`; only the
    # affine (weight, bias) pairs differ -> compute the stats once.
    mu = jnp.mean(box, axis=-1, keepdims=True)
    var = jnp.mean(jnp.square(box - mu), axis=-1, keepdims=True)
    norm = (box - mu) * jax.lax.rsqrt(var + EPS)
    q = norm * wq_ref[...] + bq_ref[...]
    k = norm * wk_ref[...] + bk_ref[...]
    v = norm * wv_ref[...] + bv_ref[...]

    # Grouped self-attention over the N = 49 pooled tokens, batched over the
    # bt images of this grid step.  The small loop over g = C/32 groups is kept
    # (lane slices + concat are the Mosaic-safe way to express the grouping and
    # attention FLOPs are negligible vs the per-pixel gate).
    outs = []
    for gi in range(g):
        qg = q[:, :, gi * d:(gi + 1) * d]             # (bt, N, d)
        kg = k[:, :, gi * d:(gi + 1) * d]
        vg = v[:, :, gi * d:(gi + 1) * d]
        sim = scl * jnp.einsum('bnd,bmd->bnm', qg, kg,
                               preferred_element_type=jnp.float32)
        sim = sim - jnp.max(sim, axis=-1, keepdims=True)
        p = jnp.exp(sim)
        p = p * pl.reciprocal(jnp.sum(p, axis=-1, keepdims=True), approx=True)
        outs.append(jnp.einsum('bnm,bmd->bnd', p, vg,
                               preferred_element_type=jnp.float32))
    shift = jnp.concatenate(outs, axis=-1)            # (bt, N, C)

    # rect: Linear(C, C, bias=False) with the pre-transposed (C_in, C_out)
    # weight as ONE batched MXU matmul over the whole block, then LayerNorm.
    wlin_b = jnp.broadcast_to(wlin_ref[...][None, :, :], (bt, c, c))
    shift = jnp.einsum('bnc,bcd->bnd', shift, wlin_b,
                       preferred_element_type=jnp.float32)
    shift = _layer_norm(shift, wln_ref[...], bln_ref[...])

    # Gate: x * sigmoid(shift + x).  Replicate shift along the lane axis so
    # the whole expression (and the store) stays lane-dense.
    shift_t = jnp.concatenate([shift] * tt, axis=-1)  # (bt, N, TT*C)
    o_ref[...] = x * jax.nn.sigmoid(shift_t + x)


def _pick_batch_tile(b, per_image_bytes, target_bytes, *, min_grid=2,
                     max_tile=32):
    """Largest divisor of b such that the block is ~target_bytes AND there are
    at least `min_grid` grid steps (megacore sharding / pipeline overlap)."""
    cap = min(b, max_tile, max(target_bytes // max(per_image_bytes, 1), 1))
    if b >= min_grid:
        cap = min(cap, b // min_grid)
    bt = max(1, cap)
    while b % bt:
        bt -= 1
    return bt


def silutopsis_forward(x_nchw, params, *, block_target_bytes=2 << 20):
    # NOTE: on v5e/v6e (128 MiB VMEM) block_target_bytes can be raised to
    # 4-8 MiB for large batches; keep it <= ~4 MiB on v7x (64 MiB VMEM).
    b, c, h, w = x_nchw.shape
    part = PART
    T = h // part
    assert h == part * T and w == part * T, "h, w must be multiples of 7"
    N = part * part
    TT = T * T
    g = max(c // 32, 1)
    assert c % g == 0, "channels must be divisible by the group count"
    d = c // g
    scl = float(d) ** -0.5

    # NCHW -> (B, N, TT*C): token index = p1*part + p2, lanes = (pixel, chan).
    # TODO(synk): in a full model this packed layout should persist between
    # ops; the two relayouts here are extra HBM round-trips for a mem-bound op.
    xk = (x_nchw.reshape(b, c, part, T, part, T)
                .transpose(0, 2, 4, 3, 5, 1)
                .reshape(b, N, TT * c)).astype(jnp.float32)

    wq, bq, wk, bk, wv, bv, wlin, wln, bln = params
    row = lambda p: p.reshape(1, -1).astype(jnp.float32)
    wlin_t = wlin.T.astype(jnp.float32)               # (C_in, C_out)

    per_image_bytes = N * TT * c * 4
    bt = _pick_batch_tile(b, per_image_bytes, block_target_bytes)
    block_bytes = bt * per_image_bytes

    # VMEM budget: double-buffered in/out blocks + intermediates + weights,
    # with headroom; never request all of v7x's 64 MiB physical VMEM.
    vmem_limit = int(min(48 << 20, max(32 << 20, 8 * block_bytes + (4 << 20))))

    kernel = functools.partial(_silutopsis_kernel, g=g, d=d, c=c, tt=TT,
                               scl=scl)
    vec_spec = pl.BlockSpec((1, c), lambda i: (0, 0))
    x_spec = pl.BlockSpec((bt, N, TT * c), lambda i: (i, 0, 0))

    out = pl.pallas_call(
        kernel,
        out_shape=jax.ShapeDtypeStruct((b, N, TT * c), jnp.float32),
        grid=(b // bt,),
        in_specs=[
            x_spec,
            vec_spec, vec_spec,            # q LayerNorm weight / bias
            vec_spec, vec_spec,            # k LayerNorm weight / bias
            vec_spec, vec_spec,            # v LayerNorm weight / bias
            pl.BlockSpec((c, c), lambda i: (0, 0)),   # rect Linear weight^T
            vec_spec, vec_spec,            # rect LayerNorm weight / bias
        ],
        out_specs=x_spec,
        compiler_params=pltpu.CompilerParams(
            dimension_semantics=("parallel",),        # batch blocks independent
            vmem_limit_bytes=vmem_limit),
    )(xk, row(wq), row(bq), row(wk), row(bk), row(wv), row(bv),
      wlin_t, row(wln), row(bln))

    # (B, N, TT*C) -> NCHW
    return (out.reshape(b, part, part, T, T, c)
               .transpose(0, 5, 1, 3, 2, 4)
               .reshape(b, c, h, w))


def silutopsis_reference(x, params):
    """Pure-JAX mirror of the PyTorch forward, for correctness checking."""
    b, c, h, w = x.shape
    part = PART
    T = h // part
    N = part * part
    g = max(c // 32, 1)
    d = c // g
    scl = float(d) ** -0.5
    wq, bq, wk, bk, wv, bv, wlin, wln, bln = params

    def ln(z, wgt, bias):
        mu = z.mean(-1, keepdims=True)
        var = ((z - mu) ** 2).mean(-1, keepdims=True)
        return (z - mu) / jnp.sqrt(var + EPS) * wgt + bias

    box = x.reshape(b, c, part, T, part, T).mean(axis=(3, 5))   # AvgPool2d(T)
    box = box.reshape(b, c, N).transpose(0, 2, 1)               # (b, N, c)
    q = ln(box, wq, bq).reshape(b, N, g, d).transpose(0, 2, 1, 3)
    k = ln(box, wk, bk).reshape(b, N, g, d).transpose(0, 2, 1, 3)
    v = ln(box, wv, bv).reshape(b, N, g, d).transpose(0, 2, 1, 3)
    sim = scl * jnp.einsum('bgnd,bgmd->bgnm', q, k)
    sim = jax.nn.softmax(sim, axis=-1)
    shift = jnp.einsum('bgnm,bgmd->bgnd', sim, v)
    shift = shift.transpose(0, 2, 1, 3).reshape(b, N, c)
    shift = ln(shift @ wlin.T, wln, bln)
    shift = shift.transpose(0, 2, 1).reshape(b, c, part, 1, part, 1)
    xv = x.reshape(b, c, part, T, part, T)
    return (xv * jax.nn.sigmoid(shift + xv)).reshape(b, c, h, w)


if __name__ == "__main__":
    # Small shapes consistent with the module: part = 7, T = 2 -> h = w = 14.
    b, dim, spatial = 8, 64, 14
    key = jax.random.PRNGKey(0)
    kx, k1, k2, k3, k4, k5, k6, k7 = jax.random.split(key, 8)

    x = jax.random.normal(kx, (b, dim, spatial, spatial), dtype=jnp.float32)

    # Deterministic synthetic parameters (shapes from silutopsis.__init__).
    wq = 1.0 + 0.1 * jax.random.normal(k1, (dim,), jnp.float32)
    bq = 0.05 * jax.random.normal(k2, (dim,), jnp.float32)
    wk = 1.0 + 0.1 * jax.random.normal(k3, (dim,), jnp.float32)
    bk = 0.05 * jax.random.normal(k4, (dim,), jnp.float32)
    wv = 1.0 + 0.1 * jax.random.normal(k5, (dim,), jnp.float32)
    bv = 0.05 * jax.random.normal(k6, (dim,), jnp.float32)
    wlin = 0.02 * jax.random.normal(k7, (dim, dim), jnp.float32)
    wln = jnp.ones((dim,), jnp.float32)
    bln = jnp.zeros((dim,), jnp.float32)
    params = (wq, bq, wk, bk, wv, bv, wlin, wln, bln)

    ref = silutopsis_reference(x, params)

    ok = True
    # Exercise two tilings: bt = 4 (grid = 2, megacore-shardable) and
    # bt = 2 (grid = 4, deeper pipeline).
    for tgt in (2 << 20, 128 * 1024):
        out = jax.block_until_ready(
            silutopsis_forward(x, params, block_target_bytes=tgt))
        good = out.shape == ref.shape and bool(
            jnp.allclose(out, ref, rtol=5e-3, atol=5e-3))
        if not good:
            err = float(jnp.max(jnp.abs(out - ref)))
            print(f"MISMATCH (block_target_bytes={tgt}) max_abs_err={err}")
            ok = False

    if ok:
        print("KERNEL_OK")
</pallas_src>

<mosaic_0001>
module attributes {stable_mosaic.version = 11 : i64} {
  func.func @_silutopsis_kernel(%arg0: i32, %arg1: memref<4x49x256xf32, #tpu.memory_space<vmem>>, %arg2: memref<1x64xf32, #tpu.memory_space<vmem>>, %arg3: memref<1x64xf32, #tpu.memory_space<vmem>>, %arg4: memref<1x64xf32, #tpu.memory_space<vmem>>, %arg5: memref<1x64xf32, #tpu.memory_space<vmem>>, %arg6: memref<1x64xf32, #tpu.memory_space<vmem>>, %arg7: memref<1x64xf32, #tpu.memory_space<vmem>>, %arg8: memref<64x64xf32, #tpu.memory_space<vmem>>, %arg9: memref<1x64xf32, #tpu.memory_space<vmem>>, %arg10: memref<1x64xf32, #tpu.memory_space<vmem>>, %arg11: memref<4x49x256xf32, #tpu.memory_space<vmem>>) attributes {dimension_semantics = [#tpu.dimension_semantics<parallel>], iteration_bounds = array<i64: 2>, scalar_prefetch = 0 : i64, scratch_operands = 0 : i64, tpu.core_type = #tpu.core_type<tc>, window_params = [{transform_indices = @transform_0, window_bounds = array<i64: 4, 49, 256>}, {pipeline_mode = #tpu.pipeline_mode<synchronous>, transform_indices = @transform_1, window_bounds = array<i64: 1, 64>}, {pipeline_mode = #tpu.pipeline_mode<synchronous>, transform_indices = @transform_2, window_bounds = array<i64: 1, 64>}, {pipeline_mode = #tpu.pipeline_mode<synchronous>, transform_indices = @transform_3, window_bounds = array<i64: 1, 64>}, {pipeline_mode = #tpu.pipeline_mode<synchronous>, transform_indices = @transform_4, window_bounds = array<i64: 1, 64>}, {pipeline_mode = #tpu.pipeline_mode<synchronous>, transform_indices = @transform_5, window_bounds = array<i64: 1, 64>}, {pipeline_mode = #tpu.pipeline_mode<synchronous>, transform_indices = @transform_6, window_bounds = array<i64: 1, 64>}, {pipeline_mode = #tpu.pipeline_mode<synchronous>, transform_indices = @transform_7, window_bounds = array<i64: 64, 64>}, {pipeline_mode = #tpu.pipeline_mode<synchronous>, transform_indices = @transform_8, window_bounds = array<i64: 1, 64>}, {pipeline_mode = #tpu.pipeline_mode<synchronous>, transform_indices = @transform_9, window_bounds = array<i64: 1, 64>}, {transform_indices = @transform_10, window_bounds = array<i64: 4, 49, 256>}]} {
    %c0 = arith.constant 0 : index
    %c0_0 = arith.constant 0 : index
    %c0_1 = arith.constant 0 : index
    %0 = vector.load %arg1[%c0, %c0_0, %c0_1] : memref<4x49x256xf32, #tpu.memory_space<vmem>>, vector<4x49x256xf32>
    %1 = vector.extract_strided_slice %0 {offsets = [0, 0, 0], sizes = [4, 49, 64], strides = [1, 1, 1]} : vector<4x49x256xf32> to vector<4x49x64xf32>
    %2 = vector.extract_strided_slice %0 {offsets = [0, 0, 64], sizes = [4, 49, 64], strides = [1, 1, 1]} : vector<4x49x256xf32> to vector<4x49x64xf32>
    %3 = arith.addf %1, %2 : vector<4x49x64xf32>
    %4 = vector.extract_strided_slice %0 {offsets = [0, 0, 128], sizes = [4, 49, 64], strides = [1, 1, 1]} : vector<4x49x256xf32> to vector<4x49x64xf32>
    %5 = arith.addf %3, %4 : vector<4x49x64xf32>
    %6 = vector.extract_strided_slice %0 {offsets = [0, 0, 192], sizes = [4, 49, 64], strides = [1, 1, 1]} : vector<4x49x256xf32> to vector<4x49x64xf32>
    %7 = arith.addf %5, %6 : vector<4x49x64xf32>
    %cst = arith.constant 2.500000e-01 : f32
    %8 = vector.broadcast %cst : f32 to vector<4x49x64xf32>
    %9 = arith.mulf %7, %8 : vector<4x49x64xf32>
    %cst_2 = arith.constant dense<0.000000e+00> : vector<4x49xf32>
    %10 = vector.multi_reduction <add>, %9, %cst_2 [2] : vector<4x49x64xf32> to vector<4x49xf32>
    %11 = vector.shape_cast %10 : vector<4x49xf32> to vector<4x49x1xf32>
    %cst_3 = arith.constant 6.400000e+01 : f32
    %12 = vector.broadcast %cst_3 : f32 to vector<4x49x1xf32>
    %13 = arith.divf %11, %12 : vector<4x49x1xf32>
    %14 = vector.broadcast %13 : vector<4x49x1xf32> to vector<4x49x64xf32>
    %15 = arith.subf %9, %14 : vector<4x49x64xf32>
    %16 = arith.mulf %15, %15 : vector<4x49x64xf32>
    %cst_4 = arith.constant dense<0.000000e+00> : vector<4x49xf32>
    %17 = vector.multi_reduction <add>, %16, %cst_4 [2] : vector<4x49x64xf32> to vector<4x49xf32>
    %18 = vector.shape_cast %17 : vector<4x49xf32> to vector<4x49x1xf32>
    %cst_5 = arith.constant 6.400000e+01 : f32
    %19 = vector.broadcast %cst_5 : f32 to vector<4x49x1xf32>
    %20 = arith.divf %18, %19 : vector<4x49x1xf32>
    %21 = vector.broadcast %13 : vector<4x49x1xf32> to vector<4x49x64xf32>
    %22 = arith.subf %9, %21 : vector<4x49x64xf32>
    %cst_6 = arith.constant 9.99999997E-7 : f32
    %23 = vector.broadcast %cst_6 : f32 to vector<4x49x1xf32>
    %24 = arith.addf %20, %23 : vector<4x49x1xf32>
    %25 = math.rsqrt %24 : vector<4x49x1xf32>
    %26 = vector.broadcast %25 : vector<4x49x1xf32> to vector<4x49x64xf32>
    %27 = arith.mulf %22, %26 : vector<4x49x64xf32>
    %c0_7 = arith.constant 0 : index
    %c0_8 = arith.constant 0 : index
    %28 = vector.load %arg2[%c0_7, %c0_8] : memref<1x64xf32, #tpu.memory_space<vmem>>, vector<1x64xf32>
    %29 = vector.shape_cast %28 : vector<1x64xf32> to vector<1x1x64xf32>
    %30 = vector.broadcast %29 : vector<1x1x64xf32> to vector<4x49x64xf32>
    %31 = arith.mulf %27, %30 : vector<4x49x64xf32>
    %c0_9 = arith.constant 0 : index
    %c0_10 = arith.constant 0 : index
    %32 = vector.load %arg3[%c0_9, %c0_10] : memref<1x64xf32, #tpu.memory_space<vmem>>, vector<1x64xf32>
    %33 = vector.shape_cast %32 : vector<1x64xf32> to vector<1x1x64xf32>
    %34 = vector.broadcast %33 : vector<1x1x64xf32> to vector<4x49x64xf32>
    %35 = arith.addf %31, %34 : vector<4x49x64xf32>
    %c0_11 = arith.constant 0 : index
    %c0_12 = arith.constant 0 : index
    %36 = vector.load %arg4[%c0_11, %c0_12] : memref<1x64xf32, #tpu.memory_space<vmem>>, vector<1x64xf32>
    %37 = vector.shape_cast %36 : vector<1x64xf32> to vector<1x1x64xf32>
    %38 = vector.broadcast %37 : vector<1x1x64xf32> to vector<4x49x64xf32>
    %39 = arith.mulf %27, %38 : vector<4x49x64xf32>
    %c0_13 = arith.constant 0 : index
    %c0_14 = arith.constant 0 : index
    %40 = vector.load %arg5[%c0_13, %c0_14] : memref<1x64xf32, #tpu.memory_space<vmem>>, vector<1x64xf32>
    %41 = vector.shape_cast %40 : vector<1x64xf32> to vector<1x1x64xf32>
    %42 = vector.broadcast %41 : vector<1x1x64xf32> to vector<4x49x64xf32>
    %43 = arith.addf %39, %42 : vector<4x49x64xf32>
    %c0_15 = arith.constant 0 : index
    %c0_16 = arith.constant 0 : index
    %44 = vector.load %arg6[%c0_15, %c0_16] : memref<1x64xf32, #tpu.memory_space<vmem>>, vector<1x64xf32>
    %45 = vector.shape_cast %44 : vector<1x64xf32> to vector<1x1x64xf32>
    %46 = vector.broadcast %45 : vector<1x1x64xf32> to vector<4x49x64xf32>
    %47 = arith.mulf %27, %46 : vector<4x49x64xf32>
    %c0_17 = arith.constant 0 : index
    %c0_18 = arith.constant 0 : index
    %48 = vector.load %arg7[%c0_17, %c0_18] : memref<1x64xf32, #tpu.memory_space<vmem>>, vector<1x64xf32>
    %49 = vector.shape_cast %48 : vector<1x64xf32> to vector<1x1x64xf32>
    %50 = vector.broadcast %49 : vector<1x1x64xf32> to vector<4x49x64xf32>
    %51 = arith.addf %47, %50 : vector<4x49x64xf32>
    %52 = vector.extract_strided_slice %35 {offsets = [0, 0, 0], sizes = [4, 49, 32], strides = [1, 1, 1]} : vector<4x49x64xf32> to vector<4x49x32xf32>
    %53 = vector.extract_strided_slice %43 {offsets = [0, 0, 0], sizes = [4, 49, 32], strides = [1, 1, 1]} : vector<4x49x64xf32> to vector<4x49x32xf32>
    %54 = vector.extract_strided_slice %51 {offsets = [0, 0, 0], sizes = [4, 49, 32], strides = [1, 1, 1]} : vector<4x49x64xf32> to vector<4x49x32xf32>
    "tpu.trace_start"() <{level = 10 : i32, message = "bnd,bmd->bnm"}> : () -> ()
    %cst_19 = arith.constant dense<0.000000e+00> : vector<4x49x49xf32>
    %55 = tpu.matmul %52, %53, %cst_19 {dimension_numbers = #tpu.dot_dimension_numbers<[2], [2], [1], [1], [0, 0, 0, 1, 1, 1], [0], [0]>} : vector<4x49x32xf32>, vector<4x49x32xf32>, vector<4x49x49xf32> -> vector<4x49x49xf32>
    "tpu.trace_stop"() : () -> ()
    %cst_20 = arith.constant 0.176776692 : f32
    %56 = vector.broadcast %cst_20 : f32 to vector<4x49x49xf32>
    %57 = arith.mulf %56, %55 : vector<4x49x49xf32>
    %cst_21 = arith.constant dense<0xFF800000> : vector<4x49xf32>
    %58 = vector.multi_reduction <maximumf>, %57, %cst_21 [2] : vector<4x49x49xf32> to vector<4x49xf32>
    %59 = vector.shape_cast %58 : vector<4x49xf32> to vector<4x49x1xf32>
    %60 = vector.broadcast %59 : vector<4x49x1xf32> to vector<4x49x49xf32>
    %61 = arith.subf %57, %60 : vector<4x49x49xf32>
    %62 = math.exp %61 : vector<4x49x49xf32>
    %cst_22 = arith.constant dense<0.000000e+00> : vector<4x49xf32>
    %63 = vector.multi_reduction <add>, %62, %cst_22 [2] : vector<4x49x49xf32> to vector<4x49xf32>
    %64 = vector.shape_cast %63 : vector<4x49xf32> to vector<4x49x1xf32>
    %65 = tpu.reciprocal %64 {approx = true} : vector<4x49x1xf32> -> vector<4x49x1xf32>
    %66 = vector.broadcast %65 : vector<4x49x1xf32> to vector<4x49x49xf32>
    %67 = arith.mulf %62, %66 : vector<4x49x49xf32>
    "tpu.trace_start"() <{level = 10 : i32, message = "bnm,bmd->bnd"}> : () -> ()
    %cst_23 = arith.constant dense<0.000000e+00> : vector<4x49x32xf32>
    %68 = tpu.matmul %67, %54, %cst_23 {dimension_numbers = #tpu.dot_dimension_numbers<[2], [1], [1], [2], [0, 0, 0, 1, 1, 2], [0], [0]>} : vector<4x49x49xf32>, vector<4x49x32xf32>, vector<4x49x32xf32> -> vector<4x49x32xf32>
    "tpu.trace_stop"() : () -> ()
    %69 = vector.extract_strided_slice %35 {offsets = [0, 0, 32], sizes = [4, 49, 32], strides = [1, 1, 1]} : vector<4x49x64xf32> to vector<4x49x32xf32>
    %70 = vector.extract_strided_slice %43 {offsets = [0, 0, 32], sizes = [4, 49, 32], strides = [1, 1, 1]} : vector<4x49x64xf32> to vector<4x49x32xf32>
    %71 = vector.extract_strided_slice %51 {offsets = [0, 0, 32], sizes = [4, 49, 32], strides = [1, 1, 1]} : vector<4x49x64xf32> to vector<4x49x32xf32>
    "tpu.trace_start"() <{level = 10 : i32, message = "bnd,bmd->bnm"}> : () -> ()
    %cst_24 = arith.constant dense<0.000000e+00> : vector<4x49x49xf32>
    %72 = tpu.matmul %69, %70, %cst_24 {dimension_numbers = #tpu.dot_dimension_numbers<[2], [2], [1], [1], [0, 0, 0, 1, 1, 1], [0], [0]>} : vector<4x49x32xf32>, vector<4x49x32xf32>, vector<4x49x49xf32> -> vector<4x49x49xf32>
    "tpu.trace_stop"() : () -> ()
    %cst_25 = arith.constant 0.176776692 : f32
    %73 = vector.broadcast %cst_25 : f32 to vector<4x49x49xf32>
    %74 = arith.mulf %73, %72 : vector<4x49x49xf32>
    %cst_26 = arith.constant dense<0xFF800000> : vector<4x49xf32>
    %75 = vector.multi_reduction <maximumf>, %74, %cst_26 [2] : vector<4x49x49xf32> to vector<4x49xf32>
    %76 = vector.shape_cast %75 : vector<4x49xf32> to vector<4x49x1xf32>
    %77 = vector.broadcast %76 : vector<4x49x1xf32> to vector<4x49x49xf32>
    %78 = arith.subf %74, %77 : vector<4x49x49xf32>
    %79 = math.exp %78 : vector<4x49x49xf32>
    %cst_27 = arith.constant dense<0.000000e+00> : vector<4x49xf32>
    %80 = vector.multi_reduction <add>, %79, %cst_27 [2] : vector<4x49x49xf32> to vector<4x49xf32>
    %81 = vector.shape_cast %80 : vector<4x49xf32> to vector<4x49x1xf32>
    %82 = tpu.reciprocal %81 {approx = true} : vector<4x49x1xf32> -> vector<4x49x1xf32>
    %83 = vector.broadcast %82 : vector<4x49x1xf32> to vector<4x49x49xf32>
    %84 = arith.mulf %79, %83 : vector<4x49x49xf32>
    "tpu.trace_start"() <{level = 10 : i32, message = "bnm,bmd->bnd"}> : () -> ()
    %cst_28 = arith.constant dense<0.000000e+00> : vector<4x49x32xf32>
    %85 = tpu.matmul %84, %71, %cst_28 {dimension_numbers = #tpu.dot_dimension_numbers<[2], [1], [1], [2], [0, 0, 0, 1, 1, 2], [0], [0]>} : vector<4x49x49xf32>, vector<4x49x32xf32>, vector<4x49x32xf32> -> vector<4x49x32xf32>
    "tpu.trace_stop"() : () -> ()
    %86 = tpu.concatenate %68, %85 in 2 : vector<4x49x32xf32>, vector<4x49x32xf32> -> vector<4x49x64xf32>
    %c0_29 = arith.constant 0 : index
    %c0_30 = arith.constant 0 : index
    %87 = vector.load %arg8[%c0_29, %c0_30] : memref<64x64xf32, #tpu.memory_space<vmem>>, vector<64x64xf32>
    %88 = vector.shape_cast %87 : vector<64x64xf32> to vector<1x64x64xf32>
    %89 = vector.shape_cast %88 : vector<1x64x64xf32> to vector<1x64x64xf32>
    %90 = vector.broadcast %89 : vector<1x64x64xf32> to vector<4x64x64xf32>
    "tpu.trace_start"() <{level = 10 : i32, message = "bnc,bcd->bnd"}> : () -> ()
    %cst_31 = arith.constant dense<0.000000e+00> : vector<4x49x64xf32>
    %91 = tpu.matmul %86, %90, %cst_31 {dimension_numbers = #tpu.dot_dimension_numbers<[2], [1], [1], [2], [0, 0, 0, 1, 1, 2], [0], [0]>} : vector<4x49x64xf32>, vector<4x64x64xf32>, vector<4x49x64xf32> -> vector<4x49x64xf32>
    "tpu.trace_stop"() : () -> ()
    %c0_32 = arith.constant 0 : index
    %c0_33 = arith.constant 0 : index
    %92 = vector.load %arg9[%c0_32, %c0_33] : memref<1x64xf32, #tpu.memory_space<vmem>>, vector<1x64xf32>
    %c0_34 = arith.constant 0 : index
    %c0_35 = arith.constant 0 : index
    %93 = vector.load %arg10[%c0_34, %c0_35] : memref<1x64xf32, #tpu.memory_space<vmem>>, vector<1x64xf32>
    %cst_36 = arith.constant dense<0.000000e+00> : vector<4x49xf32>
    %94 = vector.multi_reduction <add>, %91, %cst_36 [2] : vector<4x49x64xf32> to vector<4x49xf32>
    %95 = vector.shape_cast %94 : vector<4x49xf32> to vector<4x49x1xf32>
    %cst_37 = arith.constant 6.400000e+01 : f32
    %96 = vector.broadcast %cst_37 : f32 to vector<4x49x1xf32>
    %97 = arith.divf %95, %96 : vector<4x49x1xf32>
    %98 = vector.broadcast %97 : vector<4x49x1xf32> to vector<4x49x64xf32>
    %99 = arith.subf %91, %98 : vector<4x49x64xf32>
    %100 = arith.mulf %99, %99 : vector<4x49x64xf32>
    %cst_38 = arith.constant dense<0.000000e+00> : vector<4x49xf32>
    %101 = vector.multi_reduction <add>, %100, %cst_38 [2] : vector<4x49x64xf32> to vector<4x49xf32>
    %102 = vector.shape_cast %101 : vector<4x49xf32> to vector<4x49x1xf32>
    %cst_39 = arith.constant 6.400000e+01 : f32
    %103 = vector.broadcast %cst_39 : f32 to vector<4x49x1xf32>
    %104 = arith.divf %102, %103 : vector<4x49x1xf32>
    %105 = vector.broadcast %97 : vector<4x49x1xf32> to vector<4x49x64xf32>
    %106 = arith.subf %91, %105 : vector<4x49x64xf32>
    %cst_40 = arith.constant 9.99999997E-7 : f32
    %107 = vector.broadcast %cst_40 : f32 to vector<4x49x1xf32>
    %108 = arith.addf %104, %107 : vector<4x49x1xf32>
    %109 = math.rsqrt %108 : vector<4x49x1xf32>
    %110 = vector.broadcast %109 : vector<4x49x1xf32> to vector<4x49x64xf32>
    %111 = arith.mulf %106, %110 : vector<4x49x64xf32>
    %112 = vector.shape_cast %92 : vector<1x64xf32> to vector<1x1x64xf32>
    %113 = vector.broadcast %112 : vector<1x1x64xf32> to vector<4x49x64xf32>
    %114 = arith.mulf %111, %113 : vector<4x49x64xf32>
    %115 = vector.shape_cast %93 : vector<1x64xf32> to vector<1x1x64xf32>
    %116 = vector.broadcast %115 : vector<1x1x64xf32> to vector<4x49x64xf32>
    %117 = arith.addf %114, %116 : vector<4x49x64xf32>
    %118 = tpu.concatenate %117, %117, %117, %117 in 2 : vector<4x49x64xf32>, vector<4x49x64xf32>, vector<4x49x64xf32>, vector<4x49x64xf32> -> vector<4x49x256xf32>
    %119 = arith.addf %118, %0 : vector<4x49x256xf32>
    %120 = arith.negf %119 : vector<4x49x256xf32>
    %121 = math.exp %120 : vector<4x49x256xf32>
    %cst_41 = arith.constant 1.000000e+00 : f32
    %122 = vector.broadcast %cst_41 : f32 to vector<4x49x256xf32>
    %123 = arith.addf %122, %121 : vector<4x49x256xf32>
    %124 = arith.divf %122, %123 : vector<4x49x256xf32>
    %125 = arith.mulf %0, %124 : vector<4x49x256xf32>
    %c0_42 = arith.constant 0 : index
    %c0_43 = arith.constant 0 : index
    %c0_44 = arith.constant 0 : index
    %126 = vector.load %arg11[%c0_42, %c0_43, %c0_44] : memref<4x49x256xf32, #tpu.memory_space<vmem>>, vector<4x49x256xf32>
    tpu.vector_store %arg11[%c0_42, %c0_43, %c0_44], %125 {strides = array<i32>} : memref<4x49x256xf32, #tpu.memory_space<vmem>>, vector<4x49x256xf32>,
    return
  }
  func.func @transform_0(%arg0: i32) -> (i32, i32, i32) {
    %c0_i32 = arith.constant 0 : i32
    %c0_i32_0 = arith.constant 0 : i32
    %c0_i32_1 = arith.constant 0 : i32
    return %arg0, %c0_i32, %c0_i32_0 : i32, i32, i32
  }
  func.func @transform_1(%arg0: i32) -> (i32, i32) {
    %c0_i32 = arith.constant 0 : i32
    %c0_i32_0 = arith.constant 0 : i32
    %c0_i32_1 = arith.constant 0 : i32
    return %c0_i32, %c0_i32_0 : i32, i32
  }
  func.func @transform_2(%arg0: i32) -> (i32, i32) {
    %c0_i32 = arith.constant 0 : i32
    %c0_i32_0 = arith.constant 0 : i32
    %c0_i32_1 = arith.constant 0 : i32
    return %c0_i32, %c0_i32_0 : i32, i32
  }
  func.func @transform_3(%arg0: i32) -> (i32, i32) {
    %c0_i32 = arith.constant 0 : i32
    %c0_i32_0 = arith.constant 0 : i32
    %c0_i32_1 = arith.constant 0 : i32
    return %c0_i32, %c0_i32_0 : i32, i32
  }
  func.func @transform_4(%arg0: i32) -> (i32, i32) {
    %c0_i32 = arith.constant 0 : i32
    %c0_i32_0 = arith.constant 0 : i32
    %c0_i32_1 = arith.constant 0 : i32
    return %c0_i32, %c0_i32_0 : i32, i32
  }
  func.func @transform_5(%arg0: i32) -> (i32, i32) {
    %c0_i32 = arith.constant 0 : i32
    %c0_i32_0 = arith.constant 0 : i32
    %c0_i32_1 = arith.constant 0 : i32
    return %c0_i32, %c0_i32_0 : i32, i32
  }
  func.func @transform_6(%arg0: i32) -> (i32, i32) {
    %c0_i32 = arith.constant 0 : i32
    %c0_i32_0 = arith.constant 0 : i32
    %c0_i32_1 = arith.constant 0 : i32
    return %c0_i32, %c0_i32_0 : i32, i32
  }
  func.func @transform_7(%arg0: i32) -> (i32, i32) {
    %c0_i32 = arith.constant 0 : i32
    %c0_i32_0 = arith.constant 0 : i32
    %c0_i32_1 = arith.constant 0 : i32
    return %c0_i32, %c0_i32_0 : i32, i32
  }
  func.func @transform_8(%arg0: i32) -> (i32, i32) {
    %c0_i32 = arith.constant 0 : i32
    %c0_i32_0 = arith.constant 0 : i32
    %c0_i32_1 = arith.constant 0 : i32
    return %c0_i32, %c0_i32_0 : i32, i32
  }
  func.func @transform_9(%arg0: i32) -> (i32, i32) {
    %c0_i32 = arith.constant 0 : i32
    %c0_i32_0 = arith.constant 0 : i32
    %c0_i32_1 = arith.constant 0 : i32
    return %c0_i32, %c0_i32_0 : i32, i32
  }
  func.func @transform_10(%arg0: i32) -> (i32, i32, i32) {
    %c0_i32 = arith.constant 0 : i32
    %c0_i32_0 = arith.constant 0 : i32
    %c0_i32_1 = arith.constant 0 : i32
    return %arg0, %c0_i32, %c0_i32_0 : i32, i32, i32
  }
}

</mosaic_0001>

<llo_original>
// kernel: tpu_custom_call.1
$region0: #{tpu_custom_call.1}
  #allocation0 [shape = 'u32[]', space=smem, size = 0x4, offset = 0x4, fixed_abs, tag = 'smem constant byte address 0x4 - core index']
  #allocation1 [shape = 'u32[144,128]{1,0:T(1,128)}', space=vmem, size = 0x12000, scoped, tag = 'internal scratch']
  %s0 = inlined_call_operand.vmem [shape: f32[8,49,256], index: 0, kind: input, shape index: {}]
  %s1 = inlined_call_operand.vmem [shape: f32[1,64], index: 1, kind: input, shape index: {}]
  %s2 = inlined_call_operand.vmem [shape: f32[1,64], index: 2, kind: input, shape index: {}]
  %s3 = inlined_call_operand.vmem [shape: f32[1,64], index: 3, kind: input, shape index: {}]
  %s4 = inlined_call_operand.vmem [shape: f32[1,64], index: 4, kind: input, shape index: {}]
  %s5 = inlined_call_operand.vmem [shape: f32[1,64], index: 5, kind: input, shape index: {}]
  %s6 = inlined_call_operand.vmem [shape: f32[1,64], index: 6, kind: input, shape index: {}]
  %s7 = inlined_call_operand.vmem [shape: f32[64,64], index: 7, kind: input, shape index: {}]
  %s8 = inlined_call_operand.vmem [shape: f32[1,64], index: 8, kind: input, shape index: {}]
  %s9 = inlined_call_operand.vmem [shape: f32[1,64], index: 9, kind: input, shape index: {}]
  %s10 = inlined_call_operand.vmem [shape: f32[8,49,256], index: 10, kind: output, shape index: {}]
  %s11 = sld [smem:[#allocation0]]
  $region73: #{tpu_custom_call.1} parent=0
    _
  %s13 = ssub.s32 1, %s11
  %s14 = scalar_select 0, %s13, %s11
  loop: start=0, step=1, limit=4
  $region2: #{tpu_custom_call.1} parent=0 // loop_pre_header
    _
  $region3: #{tpu_custom_call.1} parent=0 // loop_header
    %s16 = sphi 0, %s20
    %p17 = scmp.ge.s32.totalorder %s16, 4
    %s26 = sphi 0, %s28
    %s29 = sphi 0, %s26
    %s30 = sphi 0, %s29
    %s46 = sphi 0, %s30
    %s50 = sphi 0, %s50
    %s52 = sphi 0, %s50
    %s53 = sphi 0, %s52
    %s67 = sphi 0, %s53
    %s71 = sphi 0, %s71
    %s73 = sphi 0, %s71
    %s74 = sphi 0, %s73
    %s88 = sphi 0, %s74
    %s92 = sphi 0, %s92
    %s94 = sphi 0, %s92
    %s95 = sphi 0, %s94
    %s109 = sphi 0, %s95
    %s113 = sphi 0, %s113
    %s115 = sphi 0, %s113
    %s116 = sphi 0, %s115
    %s130 = sphi 0, %s116
    %s134 = sphi 0, %s134
    %s136 = sphi 0, %s134
    %s137 = sphi 0, %s136
    %s151 = sphi 0, %s137
    %s155 = sphi 0, %s155
    %s157 = sphi 0, %s155
    %s158 = sphi 0, %s157
    %s172 = sphi 0, %s158
    %s176 = sphi 0, %s176
    %s178 = sphi 0, %s176
    %s179 = sphi 0, %s178
    %s193 = sphi 0, %s179
    %s197 = sphi 0, %s197
    %s199 = sphi 0, %s197
    %s200 = sphi 0, %s199
    %s214 = sphi 0, %s200
    %s218 = sphi 0, %s218
    %s220 = sphi 0, %s218
    %s221 = sphi 0, %s220
    %s235 = sphi 0, %s221
    %s241 = sphi 0, %s243
    %s244 = sphi 0, %s241
    %s245 = sphi 0, %s244
    %s261 = sphi 0, %s245
  $region4: #{tpu_custom_call.1} parent=0 // loop_header_branch
    %19 = sbr.rel (%p17) target = $region8
  $region5: #{tpu_custom_call.1} parent=0 // loop_body
    %s21 = ssub.s32 %s16, 1
    %s22 = ssub.s32 %s16, 2
    %s23 = sadd.s32 %s16, 1
    %s24 = ssub.s32 %s16, %s23
    %p25 = scmp.eq.s32.totalorder %s24, 0
    %s27 = sadd.s32 %s26, 1
    %s28 = scalar_select %p25, %s26, %s27
    %p31 = pneg %p25
    %p32 = scmp.eq.s32.totalorder %s16, 1
    %p33 = por %p31, %p32
    %p34 = scmp.ne.s32.totalorder %s26, %s29
    %p35 = scmp.eq.s32.totalorder %s16, 0
    %p36 = por %p34, %p35
    %p37 = scmp.ne.s32.totalorder %s26, %s29
    %p38 = scmp.eq.s32.totalorder %s21, 1
    %p39 = por %p37, %p38
    %p40 = scmp.ne.s32.totalorder %s29, %s30
    %p41 = scmp.eq.s32.totalorder %s21, 0
    %p42 = por %p40, %p41
    %p43 = scmp.ne.s32.totalorder %s29, %s30
    %p44 = scmp.eq.s32.totalorder %s22, 1
    %p45 = por %p43, %p44
    %p47 = scmp.ne.s32.totalorder %s30, %s46
    %p48 = scmp.eq.s32.totalorder %s22, 0
    %p49 = por %p47, %p48
    %s51 = sadd.s32 %s50, 1
    %p54 = scmp.eq.s32.totalorder %s16, 1
    %p55 = scmp.ne.s32.totalorder %s50, %s52
    %p56 = scmp.eq.s32.totalorder %s16, 0
    %p57 = por %p55, %p56
    %p58 = scmp.ne.s32.totalorder %s50, %s52
    %p59 = scmp.eq.s32.totalorder %s21, 1
    %p60 = por %p58, %p59
    %p61 = scmp.ne.s32.totalorder %s52, %s53
    %p62 = scmp.eq.s32.totalorder %s21, 0
    %p63 = por %p61, %p62
    %p64 = scmp.ne.s32.totalorder %s52, %s53
    %p65 = scmp.eq.s32.totalorder %s22, 1
    %p66 = por %p64, %p65
    %p68 = scmp.ne.s32.totalorder %s53, %s67
    %p69 = scmp.eq.s32.totalorder %s22, 0
    %p70 = por %p68, %p69
    %s72 = sadd.s32 %s71, 1
    %p75 = scmp.eq.s32.totalorder %s16, 1
    %p76 = scmp.ne.s32.totalorder %s71, %s73
    %p77 = scmp.eq.s32.totalorder %s16, 0
    %p78 = por %p76, %p77
    %p79 = scmp.ne.s32.totalorder %s71, %s73
    %p80 = scmp.eq.s32.totalorder %s21, 1
    %p81 = por %p79, %p80
    %p82 = scmp.ne.s32.totalorder %s73, %s74
    %p83 = scmp.eq.s32.totalorder %s21, 0
    %p84 = por %p82, %p83
    %p85 = scmp.ne.s32.totalorder %s73, %s74
    %p86 = scmp.eq.s32.totalorder %s22, 1
    %p87 = por %p85, %p86
    %p89 = scmp.ne.s32.totalorder %s74, %s88
    %p90 = scmp.eq.s32.totalorder %s22, 0
    %p91 = por %p89, %p90
    %s93 = sadd.s32 %s92, 1
    %p96 = scmp.eq.s32.totalorder %s16, 1
    %p97 = scmp.ne.s32.totalorder %s92, %s94
    %p98 = scmp.eq.s32.totalorder %s16, 0
    %p99 = por %p97, %p98
    %p100 = scmp.ne.s32.totalorder %s92, %s94
    %p101 = scmp.eq.s32.totalorder %s21, 1
    %p102 = por %p100, %p101
    %p103 = scmp.ne.s32.totalorder %s94, %s95
    %p104 = scmp.eq.s32.totalorder %s21, 0
    %p105 = por %p103, %p104
    %p106 = scmp.ne.s32.totalorder %s94, %s95
    %p107 = scmp.eq.s32.totalorder %s22, 1
    %p108 = por %p106, %p107
    %p110 = scmp.ne.s32.totalorder %s95, %s109
    %p111 = scmp.eq.s32.totalorder %s22, 0
    %p112 = por %p110, %p111
    %s114 = sadd.s32 %s113, 1
    %p117 = scmp.eq.s32.totalorder %s16, 1
    %p118 = scmp.ne.s32.totalorder %s113, %s115
    %p119 = scmp.eq.s32.totalorder %s16, 0
    %p120 = por %p118, %p119
    %p121 = scmp.ne.s32.totalorder %s113, %s115
    %p122 = scmp.eq.s32.totalorder %s21, 1
    %p123 = por %p121, %p122
    %p124 = scmp.ne.s32.totalorder %s115, %s116
    %p125 = scmp.eq.s32.totalorder %s21, 0
    %p126 = por %p124, %p125
    %p127 = scmp.ne.s32.totalorder %s115, %s116
    %p128 = scmp.eq.s32.totalorder %s22, 1
    %p129 = por %p127, %p128
    %p131 = scmp.ne.s32.totalorder %s116, %s130
    %p132 = scmp.eq.s32.totalorder %s22, 0
    %p133 = por %p131, %p132
    %s135 = sadd.s32 %s134, 1
    %p138 = scmp.eq.s32.totalorder %s16, 1
    %p139 = scmp.ne.s32.totalorder %s134, %s136
    %p140 = scmp.eq.s32.totalorder %s16, 0
    %p141 = por %p139, %p140
    %p142 = scmp.ne.s32.totalorder %s134, %s136
    %p143 = scmp.eq.s32.totalorder %s21, 1
    %p144 = por %p142, %p143
    %p145 = scmp.ne.s32.totalorder %s136, %s137
    %p146 = scmp.eq.s32.totalorder %s21, 0
    %p147 = por %p145, %p146
    %p148 = scmp.ne.s32.totalorder %s136, %s137
    %p149 = scmp.eq.s32.totalorder %s22, 1
    %p150 = por %p148, %p149
    %p152 = scmp.ne.s32.totalorder %s137, %s151
    %p153 = scmp.eq.s32.totalorder %s22, 0
    %p154 = por %p152, %p153
    %s156 = sadd.s32 %s155, 1
    %p159 = scmp.eq.s32.totalorder %s16, 1
    %p160 = scmp.ne.s32.totalorder %s155, %s157
    %p161 = scmp.eq.s32.totalorder %s16, 0
    %p162 = por %p160, %p161
    %p163 = scmp.ne.s32.totalorder %s155, %s157
    %p164 = scmp.eq.s32.totalorder %s21, 1
    %p165 = por %p163, %p164
    %p166 = scmp.ne.s32.totalorder %s157, %s158
    %p167 = scmp.eq.s32.totalorder %s21, 0
    %p168 = por %p166, %p167
    %p169 = scmp.ne.s32.totalorder %s157, %s158
    %p170 = scmp.eq.s32.totalorder %s22, 1
    %p171 = por %p169, %p170
    %p173 = scmp.ne.s32.totalorder %s158, %s172
    %p174 = scmp.eq.s32.totalorder %s22, 0
    %p175 = por %p173, %p174
    %s177 = sadd.s32 %s176, 1
    %p180 = scmp.eq.s32.totalorder %s16, 1
    %p181 = scmp.ne.s32.totalorder %s176, %s178
    %p182 = scmp.eq.s32.totalorder %s16, 0
    %p183 = por %p181, %p182
    %p184 = scmp.ne.s32.totalorder %s176, %s178
    %p185 = scmp.eq.s32.totalorder %s21, 1
    %p186 = por %p184, %p185
    %p187 = scmp.ne.s32.totalorder %s178, %s179
    %p188 = scmp.eq.s32.totalorder %s21, 0
    %p189 = por %p187, %p188
    %p190 = scmp.ne.s32.totalorder %s178, %s179
    %p191 = scmp.eq.s32.totalorder %s22, 1
    %p192 = por %p190, %p191
    %p194 = scmp.ne.s32.totalorder %s179, %s193
    %p195 = scmp.eq.s32.totalorder %s22, 0
    %p196 = por %p194, %p195
    %s198 = sadd.s32 %s197, 1
    %p201 = scmp.eq.s32.totalorder %s16, 1
    %p202 = scmp.ne.s32.totalorder %s197, %s199
    %p203 = scmp.eq.s32.totalorder %s16, 0
    %p204 = por %p202, %p203
    %p205 = scmp.ne.s32.totalorder %s197, %s199
    %p206 = scmp.eq.s32.totalorder %s21, 1
    %p207 = por %p205, %p206
    %p208 = scmp.ne.s32.totalorder %s199, %s200
    %p209 = scmp.eq.s32.totalorder %s21, 0
    %p210 = por %p208, %p209
    %p211 = scmp.ne.s32.totalorder %s199, %s200
    %p212 = scmp.eq.s32.totalorder %s22, 1
    %p213 = por %p211, %p212
    %p215 = scmp.ne.s32.totalorder %s200, %s214
    %p216 = scmp.eq.s32.totalorder %s22, 0
    %p217 = por %p215, %p216
    %s219 = sadd.s32 %s218, 1
    %p222 = scmp.eq.s32.totalorder %s16, 1
    %p223 = scmp.ne.s32.totalorder %s218, %s220
    %p224 = scmp.eq.s32.totalorder %s16, 0
    %p225 = por %p223, %p224
    %p226 = scmp.ne.s32.totalorder %s218, %s220
    %p227 = scmp.eq.s32.totalorder %s21, 1
    %p228 = por %p226, %p227
    %p229 = scmp.ne.s32.totalorder %s220, %s221
    %p230 = scmp.eq.s32.totalorder %s21, 0
    %p231 = por %p229, %p230
    %p232 = scmp.ne.s32.totalorder %s220, %s221
    %p233 = scmp.eq.s32.totalorder %s22, 1
    %p234 = por %p232, %p233
    %p236 = scmp.ne.s32.totalorder %s221, %s235
    %p237 = scmp.eq.s32.totalorder %s22, 0
    %p238 = por %p236, %p237
    %s239 = ssub.s32 %s16, %s23
    %p240 = scmp.eq.s32.totalorder %s239, 0
    %s242 = sadd.s32 %s241, 1
    %s243 = scalar_select %p240, %s241, %s242
    %p246 = pneg %p240
    %p247 = scmp.eq.s32.totalorder %s16, 1
    %p248 = por %p246, %p247
    %p249 = scmp.ne.s32.totalorder %s241, %s244
    %p250 = scmp.eq.s32.totalorder %s16, 0
    %p251 = por %p249, %p250
    %p252 = scmp.ne.s32.totalorder %s241, %s244
    %p253 = scmp.eq.s32.totalorder %s21, 1
    %p254 = por %p252, %p253
    %p255 = scmp.ne.s32.totalorder %s244, %s245
    %p256 = scmp.eq.s32.totalorder %s21, 0
    %p257 = por %p255, %p256
    %p258 = scmp.ne.s32.totalorder %s244, %s245
    %p259 = scmp.eq.s32.totalorder %s22, 1
    %p260 = por %p258, %p259
    %p262 = scmp.ne.s32.totalorder %s245, %s261
    %p263 = scmp.eq.s32.totalorder %s22, 0
    %p264 = por %p262, %p263
    %p265 = scmp.le.s32.totalorder 1, %s16
    %p266 = scmp.lt.s32.totalorder %s16, 3
    %p267 = pnand %p265, %p266
    %p268 = pneg %p267
    // Predicated region
    $region9: #{tpu_custom_call.1} parent=5 // pred_check
      _
    $region10: #{tpu_custom_call.1} parent=5 // pred_check_branch
      %270 = sbr.rel (%p267) target = $region12
    $region11: #{tpu_custom_call.1} parent=5 // pred_region
      %s271 = ssub.s32 %s16, 1
      // Predicated region
      $region13: #{tpu_custom_call.1} parent=11 // pred_check
        %p272 = pneg %p63
      $region14: #{tpu_custom_call.1} parent=11 // pred_check_branch
        %274 = sbr.rel (%p272) target = $region16
      $region15: #{tpu_custom_call.1} parent=11 // pred_region
        _
      $region16: #{tpu_custom_call.1} parent=11 // pred_fallthru
        _
      // Predicated region
      $region17: #{tpu_custom_call.1} parent=11 // pred_check
        %p275 = pneg %p84
      $region18: #{tpu_custom_call.1} parent=11 // pred_check_branch
        %277 = sbr.rel (%p275) target = $region20
      $region19: #{tpu_custom_call.1} parent=11 // pred_region
        _
      $region20: #{tpu_custom_call.1} parent=11 // pred_fallthru
        _
      // Predicated region
      $region21: #{tpu_custom_call.1} parent=11 // pred_check
        %p278 = pneg %p105
      $region22: #{tpu_custom_call.1} parent=11 // pred_check_branch
        %280 = sbr.rel (%p278) target = $region24
      $region23: #{tpu_custom_call.1} parent=11 // pred_region
        _
      $region24: #{tpu_custom_call.1} parent=11 // pred_fallthru
        _
      // Predicated region
      $region25: #{tpu_custom_call.1} parent=11 // pred_check
        %p281 = pneg %p126
      $region26: #{tpu_custom_call.1} parent=11 // pred_check_branch
        %283 = sbr.rel (%p281) target = $region28
      $region27: #{tpu_custom_call.1} parent=11 // pred_region
        _
      $region28: #{tpu_custom_call.1} parent=11 // pred_fallthru
        _
      // Predicated region
      $region29: #{tpu_custom_call.1} parent=11 // pred_check
        %p284 = pneg %p147
      $region30: #{tpu_custom_call.1} parent=11 // pred_check_branch
        %286 = sbr.rel (%p284) target = $region32
      $region31: #{tpu_custom_call.1} parent=11 // pred_region
        _
      $region32: #{tpu_custom_call.1} parent=11 // pred_fallthru
        _
      // Predicated region
      $region33: #{tpu_custom_call.1} parent=11 // pred_check
        %p287 = pneg %p168
      $region34: #{tpu_custom_call.1} parent=11 // pred_check_branch
        %289 = sbr.rel (%p287) target = $region36
      $region35: #{tpu_custom_call.1} parent=11 // pred_region
        _
      $region36: #{tpu_custom_call.1} parent=11 // pred_fallthru
        _
      // Predicated region
      $region37: #{tpu_custom_call.1} parent=11 // pred_check
        %p290 = pneg %p189
      $region38: #{tpu_custom_call.1} parent=11 // pred_check_branch
        %292 = sbr.rel (%p290) target = $region40
      $region39: #{tpu_custom_call.1} parent=11 // pred_region
        _
      $region40: #{tpu_custom_call.1} parent=11 // pred_fallthru
        _
      // Predicated region
      $region41: #{tpu_custom_call.1} parent=11 // pred_check
        %p293 = pneg %p210
      $region42: #{tpu_custom_call.1} parent=11 // pred_check_branch
        %295 = sbr.rel (%p293) target = $region44
      $region43: #{tpu_custom_call.1} parent=11 // pred_region
        _
      $region44: #{tpu_custom_call.1} parent=11 // pred_fallthru
        _
      // Predicated region
      $region45: #{tpu_custom_call.1} parent=11 // pred_check
        %p296 = pneg %p231
      $region46: #{tpu_custom_call.1} parent=11 // pred_check_branch
        %298 = sbr.rel (%p296) target = $region48
      $region47: #{tpu_custom_call.1} parent=11 // pred_region
        _
      $region48: #{tpu_custom_call.1} parent=11 // pred_fallthru
        _
    $region12: #{tpu_custom_call.1} parent=5 // pred_fallthru
      _
    %p299 = scmp.lt.s32.totalorder %s16, 2
    // Predicated region
    $region49: #{tpu_custom_call.1} parent=5 // pred_check
      %p300 = pneg %p299
    $region50: #{tpu_custom_call.1} parent=5 // pred_check_branch
      %302 = sbr.rel (%p300) target = $region52
    $region51: #{tpu_custom_call.1} parent=5 // pred_region
      // Predicated region
      $region53: #{tpu_custom_call.1} parent=51 // pred_check
        %p303 = pneg %p36
      $region54: #{tpu_custom_call.1} parent=51 // pred_check_branch
        %305 = sbr.rel (%p303) target = $region56
      $region55: #{tpu_custom_call.1} parent=51 // pred_region
        %s306 = smul.u32 4, %s16
        %p307 = scmp.lt.s32.totalorder %s306, 7
        %s308 = scalar_select %p307, %s306, 7
        %s309 = smul.addr %s308, 14
        %s310 = smul.addr %s309, 8
        %s311 = scalar_lea.vmem %s0, %s310
        %s312 = smul.u32 4, %s16
      $region56: #{tpu_custom_call.1} parent=51 // pred_fallthru
        _
    $region52: #{tpu_custom_call.1} parent=5 // pred_fallthru
      _
    %p313 = scmp.le.s32.totalorder 1, %s16
    %p314 = scmp.lt.s32.totalorder %s16, 3
    %p315 = pnand %p313, %p314
    %p316 = pneg %p315
    // Predicated region
    $region57: #{tpu_custom_call.1} parent=5 // pred_check
      _
    $region58: #{tpu_custom_call.1} parent=5 // pred_check_branch
      %318 = sbr.rel (%p315) target = $region60
    $region59: #{tpu_custom_call.1} parent=5 // pred_region
      %s319 = ssub.s32 %s16, 1
      %s320 = smul.u32 4, %s21
      %p321 = scmp.lt.s32.totalorder %s320, 7
      %s322 = scalar_select %p321, %s320, 7
      %s323 = smul.addr %s322, 14
      %s324 = smul.addr %s323, 8
      %s325 = scalar_lea.vmem %s0, %s324
      %p326 = pneg %p42
      %p327 = pneg %p39
      %p328 = pneg %p63
      %p329 = pneg %p60
      %p330 = pneg %p84
      %p331 = pneg %p81
      %p332 = pneg %p105
      %p333 = pneg %p102
      %p334 = pneg %p126
      %p335 = pneg %p123
      %p336 = pneg %p147
      %p337 = pneg %p144
      %p338 = pneg %p168
      %p339 = pneg %p165
      %p340 = pneg %p189
      %p341 = pneg %p186
      %p342 = pneg %p210
      %p343 = pneg %p207
      %p344 = pneg %p231
      %p345 = pneg %p228
      %p346 = pneg %p257
      %p347 = pneg %p254
      %s348 = smul.u32 4, %s21
      %p349 = scmp.lt.s32.totalorder %s348, 7
      %s350 = scalar_select %p349, %s348, 7
      %s351 = smul.addr %s350, 14
      %s352 = smul.addr %s351, 8
      %s353 = scalar_lea.vmem %s10, %s352
      %s354 = smul.u32 4, %s21
      %p355 = scmp.lt.s32.totalorder %s354, 7
      %s356 = scalar_select %p355, %s354, 7
      %s357 = smul.addr %s356, 14
      %s358 = smul.addr %s357, 8
      %s359 = scalar_lea.vmem %s0, %s358
      %s360 = smul.u32 4, %s21
      %s361 = smul.u32 4, %s21
      %p362 = scmp.lt.s32.totalorder %s361, 7
      %s363 = scalar_select %p362, %s361, 7
      %s364 = smul.addr %s363, 14
      %s365 = smul.addr %s364, 8
      %s366 = scalar_lea.vmem %s10, %s365
      %s367 = smul.u32 4, %s21
      %v368 = vld [vmem:[%s359] sm:$0xff]
      %v369 = vld [vmem:[%s359 + $0x8] sm:$0xff]
      %v370 = vld [vmem:[%s359 + $0x10] sm:$0xff]
      %v371 = vld [vmem:[%s359 + $0x18] sm:$0xff]
      %v372 = vld [vmem:[%s359 + $0x20] sm:$0xff]
      %v373 = vld [vmem:[%s359 + $0x28] sm:$0xff]
      %v374 = vld [vmem:[%s359 + $0x30] sm:$0xff]
      %v375 = vld [vmem:[%s359 + $0x38] sm:$0xff]
      %v376 = vld [vmem:[%s359 + $0x40] sm:$0xff]
      %v377 = vld [vmem:[%s359 + $0x48] sm:$0xff]
      %v378 = vld [vmem:[%s359 + $0x50] sm:$0xff]
      %v379 = vld [vmem:[%s359 + $0x58] sm:$0xff]
      %v380 = vld [vmem:[%s359 + $0x60] sm:$0x1]
      %v381 = vld [vmem:[%s359 + $0x68] sm:$0x1]
      %v382 = vld [vmem:[%s359 + $0x70] sm:$0xff]
      %v383 = vld [vmem:[%s359 + $0x78] sm:$0xff]
      %v384 = vld [vmem:[%s359 + $0x80] sm:$0xff]
      %v385 = vld [vmem:[%s359 + $0x88] sm:$0xff]
      %v386 = vld [vmem:[%s359 + $0x90] sm:$0xff]
      %v387 = vld [vmem:[%s359 + $0x98] sm:$0xff]
      %v388 = vld [vmem:[%s359 + $0xa0] sm:$0xff]
      %v389 = vld [vmem:[%s359 + $0xa8] sm:$0xff]
      %v390 = vld [vmem:[%s359 + $0xb0] sm:$0xff]
      %v391 = vld [vmem:[%s359 + $0xb8] sm:$0xff]
      %v392 = vld [vmem:[%s359 + $0xc0] sm:$0xff]
      %v393 = vld [vmem:[%s359 + $0xc8] sm:$0xff]
      %v394 = vld [vmem:[%s359 + $0xd0] sm:$0x1]
      %v395 = vld [vmem:[%s359 + $0xd8] sm:$0x1]
      %v396 = vld [vmem:[%s359 + $0xe0] sm:$0xff]
      %v397 = vld [vmem:[%s359 + $0xe8] sm:$0xff]
      %v398 = vld [vmem:[%s359 + $0xf0] sm:$0xff]
      %v399 = vld [vmem:[%s359 + $0xf8] sm:$0xff]
      %v400 = vld [vmem:[%s359 + $0x100] sm:$0xff]
      %v401 = vld [vmem:[%s359 + $0x108] sm:$0xff]
      %v402 = vld [vmem:[%s359 + $0x110] sm:$0xff]
      %v403 = vld [vmem:[%s359 + $0x118] sm:$0xff]
      %v404 = vld [vmem:[%s359 + $0x120] sm:$0xff]
      %v405 = vld [vmem:[%s359 + $0x128] sm:$0xff]
      %v406 = vld [vmem:[%s359 + $0x130] sm:$0xff]
      %v407 = vld [vmem:[%s359 + $0x138] sm:$0xff]
      %v408 = vld [vmem:[%s359 + $0x140] sm:$0x1]
      %v409 = vld [vmem:[%s359 + $0x148] sm:$0x1]
      %v410 = vld [vmem:[%s359 + $0x150] sm:$0xff]
      %v411 = vld [vmem:[%s359 + $0x158] sm:$0xff]
      %v412 = vld [vmem:[%s359 + $0x160] sm:$0xff]
      %v413 = vld [vmem:[%s359 + $0x168] sm:$0xff]
      %v414 = vld [vmem:[%s359 + $0x170] sm:$0xff]
      %v415 = vld [vmem:[%s359 + $0x178] sm:$0xff]
      %v416 = vld [vmem:[%s359 + $0x180] sm:$0xff]
      %v417 = vld [vmem:[%s359 + $0x188] sm:$0xff]
      %v418 = vld [vmem:[%s359 + $0x190] sm:$0xff]
      %v419 = vld [vmem:[%s359 + $0x198] sm:$0xff]
      %v420 = vld [vmem:[%s359 + $0x1a0] sm:$0xff]
      %v421 = vld [vmem:[%s359 + $0x1a8] sm:$0xff]
      %v422 = vld [vmem:[%s359 + $0x1b0] sm:$0x1]
      %v423 = vld [vmem:[%s359 + $0x1b8] sm:$0x1]
      %452 = vrot.lane.b32.xlu0 %v368, 64
      %v453 = vpop.permute.xlu0 %452
      %454 = vrot.lane.b32.xlu0 %v370, 64
      %v455 = vpop.permute.xlu0 %454
      %456 = vrot.lane.b32.xlu0 %v372, 64
      %v457 = vpop.permute.xlu0 %456
      %458 = vrot.lane.b32.xlu0 %v374, 64
      %v459 = vpop.permute.xlu0 %458
      %460 = vrot.lane.b32.xlu0 %v376, 64
      %v461 = vpop.permute.xlu0 %460
      %462 = vrot.lane.b32.xlu0 %v378, 64
      %v463 = vpop.permute.xlu0 %462
      %464 = vrot.lane.b32.xlu0 %v380, 64
      %v465 = vpop.permute.xlu0 %464
      %466 = vrot.lane.b32.xlu0 %v382, 64
      %v467 = vpop.permute.xlu0 %466
      %468 = vrot.lane.b32.xlu0 %v384, 64
      %v469 = vpop.permute.xlu0 %468
      %470 = vrot.lane.b32.xlu0 %v386, 64
      %v471 = vpop.permute.xlu0 %470
      %472 = vrot.lane.b32.xlu0 %v388, 64
      %v473 = vpop.permute.xlu0 %472
      %474 = vrot.lane.b32.xlu0 %v390, 64
      %v475 = vpop.permute.xlu0 %474
      %476 = vrot.lane.b32.xlu0 %v392, 64
      %v477 = vpop.permute.xlu0 %476
      %478 = vrot.lane.b32.xlu0 %v394, 64
      %v479 = vpop.permute.xlu0 %478
      %480 = vrot.lane.b32.xlu0 %v396, 64
      %v481 = vpop.permute.xlu0 %480
      %482 = vrot.lane.b32.xlu0 %v398, 64
      %v483 = vpop.permute.xlu0 %482
      %484 = vrot.lane.b32.xlu0 %v400, 64
      %v485 = vpop.permute.xlu0 %484
      %486 = vrot.lane.b32.xlu0 %v402, 64
      %v487 = vpop.permute.xlu0 %486
      %488 = vrot.lane.b32.xlu0 %v404, 64
      %v489 = vpop.permute.xlu0 %488
      %490 = vrot.lane.b32.xlu0 %v406, 64
      %v491 = vpop.permute.xlu0 %490
      %492 = vrot.lane.b32.xlu0 %v408, 64
      %v493 = vpop.permute.xlu0 %492
      %494 = vrot.lane.b32.xlu0 %v410, 64
      %v495 = vpop.permute.xlu0 %494
      %496 = vrot.lane.b32.xlu0 %v412, 64
      %v497 = vpop.permute.xlu0 %496
      %498 = vrot.lane.b32.xlu0 %v414, 64
      %v499 = vpop.permute.xlu0 %498
      %500 = vrot.lane.b32.xlu0 %v416, 64
      %v501 = vpop.permute.xlu0 %500
      %502 = vrot.lane.b32.xlu0 %v418, 64
      %v503 = vpop.permute.xlu0 %502
      %504 = vrot.lane.b32.xlu0 %v420, 64
      %v505 = vpop.permute.xlu0 %504
      %506 = vrot.lane.b32.xlu0 %v422, 64
      %v507 = vpop.permute.xlu0 %506
      %v536 = vadd.f32 %v368, %v453
      %v537 = vadd.f32 %v370, %v455
      %v538 = vadd.f32 %v372, %v457
      %v539 = vadd.f32 %v374, %v459
      %v540 = vadd.f32 %v376, %v461
      %v541 = vadd.f32 %v378, %v463
      %v542 = vadd.f32 %v380, %v465
      %v543 = vadd.f32 %v382, %v467
      %v544 = vadd.f32 %v384, %v469
      %v545 = vadd.f32 %v386, %v471
      %v546 = vadd.f32 %v388, %v473
      %v547 = vadd.f32 %v390, %v475
      %v548 = vadd.f32 %v392, %v477
      %v549 = vadd.f32 %v394, %v479
      %v550 = vadd.f32 %v396, %v481
      %v551 = vadd.f32 %v398, %v483
      %v552 = vadd.f32 %v400, %v485
      %v553 = vadd.f32 %v402, %v487
      %v554 = vadd.f32 %v404, %v489
      %v555 = vadd.f32 %v406, %v491
      %v556 = vadd.f32 %v408, %v493
      %v557 = vadd.f32 %v410, %v495
      %v558 = vadd.f32 %v412, %v497
      %v559 = vadd.f32 %v414, %v499
      %v560 = vadd.f32 %v416, %v501
      %v561 = vadd.f32 %v418, %v503
      %v562 = vadd.f32 %v420, %v505
      %v563 = vadd.f32 %v422, %v507
      %v564 = vadd.f32 %v536, %v369
      %v565 = vadd.f32 %v537, %v371
      %v566 = vadd.f32 %v538, %v373
      %v567 = vadd.f32 %v539, %v375
      %v568 = vadd.f32 %v540, %v377
      %v569 = vadd.f32 %v541, %v379
      %v570 = vadd.f32 %v542, %v381
      %v571 = vadd.f32 %v543, %v383
      %v572 = vadd.f32 %v544, %v385
      %v573 = vadd.f32 %v545, %v387
      %v574 = vadd.f32 %v546, %v389
      %v575 = vadd.f32 %v547, %v391
      %v576 = vadd.f32 %v548, %v393
      %v577 = vadd.f32 %v549, %v395
      %v578 = vadd.f32 %v550, %v397
      %v579 = vadd.f32 %v551, %v399
      %v580 = vadd.f32 %v552, %v401
      %v581 = vadd.f32 %v553, %v403
      %v582 = vadd.f32 %v554, %v405
      %v583 = vadd.f32 %v555, %v407
      %v584 = vadd.f32 %v556, %v409
      %v585 = vadd.f32 %v557, %v411
      %v586 = vadd.f32 %v558, %v413
      %v587 = vadd.f32 %v559, %v415
      %v588 = vadd.f32 %v560, %v417
      %v589 = vadd.f32 %v561, %v419
      %v590 = vadd.f32 %v562, %v421
      %v591 = vadd.f32 %v563, %v423
      %620 = vrot.lane.b32.xlu0 %v369, 64
      %v621 = vpop.permute.xlu0 %620
      %622 = vrot.lane.b32.xlu0 %v371, 64
      %v623 = vpop.permute.xlu0 %622
      %624 = vrot.lane.b32.xlu0 %v373, 64
      %v625 = vpop.permute.xlu0 %624
      %626 = vrot.lane.b32.xlu0 %v375, 64
      %v627 = vpop.permute.xlu0 %626
      %628 = vrot.lane.b32.xlu0 %v377, 64
      %v629 = vpop.permute.xlu0 %628
      %630 = vrot.lane.b32.xlu0 %v379, 64
      %v631 = vpop.permute.xlu0 %630
      %632 = vrot.lane.b32.xlu0 %v381, 64
      %v633 = vpop.permute.xlu0 %632
      %634 = vrot.lane.b32.xlu0 %v383, 64
      %v635 = vpop.permute.xlu0 %634
      %636 = vrot.lane.b32.xlu0 %v385, 64
      %v637 = vpop.permute.xlu0 %636
      %638 = vrot.lane.b32.xlu0 %v387, 64
      %v639 = vpop.permute.xlu0 %638
      %640 = vrot.lane.b32.xlu0 %v389, 64
      %v641 = vpop.permute.xlu0 %640
      %642 = vrot.lane.b32.xlu0 %v391, 64
      %v643 = vpop.permute.xlu0 %642
      %644 = vrot.lane.b32.xlu0 %v393, 64
      %v645 = vpop.permute.xlu0 %644
      %646 = vrot.lane.b32.xlu0 %v395, 64
      %v647 = vpop.permute.xlu0 %646
      %648 = vrot.lane.b32.xlu0 %v397, 64
      %v649 = vpop.permute.xlu0 %648
      %650 = vrot.lane.b32.xlu0 %v399, 64
      %v651 = vpop.permute.xlu0 %650
      %652 = vrot.lane.b32.xlu0 %v401, 64
      %v653 = vpop.permute.xlu0 %652
      %654 = vrot.lane.b32.xlu0 %v403, 64
      %v655 = vpop.permute.xlu0 %654
      %656 = vrot.lane.b32.xlu0 %v405, 64
      %v657 = vpop.permute.xlu0 %656
      %658 = vrot.lane.b32.xlu0 %v407, 64
      %v659 = vpop.permute.xlu0 %658
      %660 = vrot.lane.b32.xlu0 %v409, 64
      %v661 = vpop.permute.xlu0 %660
      %662 = vrot.lane.b32.xlu0 %v411, 64
      %v663 = vpop.permute.xlu0 %662
      %664 = vrot.lane.b32.xlu0 %v413, 64
      %v665 = vpop.permute.xlu0 %664
      %666 = vrot.lane.b32.xlu0 %v415, 64
      %v667 = vpop.permute.xlu0 %666
      %668 = vrot.lane.b32.xlu0 %v417, 64
      %v669 = vpop.permute.xlu0 %668
      %670 = vrot.lane.b32.xlu0 %v419, 64
      %v671 = vpop.permute.xlu0 %670
      %672 = vrot.lane.b32.xlu0 %v421, 64
      %v673 = vpop.permute.xlu0 %672
      %674 = vrot.lane.b32.xlu0 %v423, 64
      %v675 = vpop.permute.xlu0 %674
      %v704 = vadd.f32 %v564, %v621
      %v705 = vadd.f32 %v565, %v623
      %v706 = vadd.f32 %v566, %v625
      %v707 = vadd.f32 %v567, %v627
      %v708 = vadd.f32 %v568, %v629
      %v709 = vadd.f32 %v569, %v631
      %v710 = vadd.f32 %v570, %v633
      %v711 = vadd.f32 %v571, %v635
      %v712 = vadd.f32 %v572, %v637
      %v713 = vadd.f32 %v573, %v639
      %v714 = vadd.f32 %v574, %v641
      %v715 = vadd.f32 %v575, %v643
      %v716 = vadd.f32 %v576, %v645
      %v717 = vadd.f32 %v577, %v647
      %v718 = vadd.f32 %v578, %v649
      %v719 = vadd.f32 %v579, %v651
      %v720 = vadd.f32 %v580, %v653
      %v721 = vadd.f32 %v581, %v655
      %v722 = vadd.f32 %v582, %v657
      %v723 = vadd.f32 %v583, %v659
      %v724 = vadd.f32 %v584, %v661
      %v725 = vadd.f32 %v585, %v663
      %v726 = vadd.f32 %v586, %v665
      %v727 = vadd.f32 %v587, %v667
      %v728 = vadd.f32 %v588, %v669
      %v729 = vadd.f32 %v589, %v671
      %v730 = vadd.f32 %v590, %v673
      %v731 = vadd.f32 %v591, %v675
      %v732 = vmul.f32 %v704, 0.25
      %v733 = vmul.f32 %v705, 0.25
      %v734 = vmul.f32 %v706, 0.25
      %v735 = vmul.f32 %v707, 0.25
      %v736 = vmul.f32 %v708, 0.25
      %v737 = vmul.f32 %v709, 0.25
      %v738 = vmul.f32 %v710, 0.25
      %v739 = vmul.f32 %v711, 0.25
      %v740 = vmul.f32 %v712, 0.25
      %v741 = vmul.f32 %v713, 0.25
      %v742 = vmul.f32 %v714, 0.25
      %v743 = vmul.f32 %v715, 0.25
      %v744 = vmul.f32 %v716, 0.25
      %v745 = vmul.f32 %v717, 0.25
      %v746 = vmul.f32 %v718, 0.25
      %v747 = vmul.f32 %v719, 0.25
      %v748 = vmul.f32 %v720, 0.25
      %v749 = vmul.f32 %v721, 0.25
      %v750 = vmul.f32 %v722, 0.25
      %v751 = vmul.f32 %v723, 0.25
      %v752 = vmul.f32 %v724, 0.25
      %v753 = vmul.f32 %v725, 0.25
      %v754 = vmul.f32 %v726, 0.25
      %v755 = vmul.f32 %v727, 0.25
      %v756 = vmul.f32 %v728, 0.25
      %v757 = vmul.f32 %v729, 0.25
      %v758 = vmul.f32 %v730, 0.25
      %v759 = vmul.f32 %v731, 0.25
      %vm760 = vcmask 523264
      %v761 = vsel %vm760, %v732, 0.0
      %762 = vadd.xlane.f32.xlu0 %v761
      %v763 = vpop.xlane.xlu0 %762
      %v764 = vsel %vm760, %v733, 0.0
      %765 = vadd.xlane.f32.xlu0 %v764
      %v766 = vpop.xlane.xlu0 %765
      %v767 = vsel %vm760, %v734, 0.0
      %768 = vadd.xlane.f32.xlu0 %v767
      %v769 = vpop.xlane.xlu0 %768
      %v770 = vsel %vm760, %v735, 0.0
      %771 = vadd.xlane.f32.xlu0 %v770
      %v772 = vpop.xlane.xlu0 %771
      %v773 = vsel %vm760, %v736, 0.0
      %774 = vadd.xlane.f32.xlu0 %v773
      %v775 = vpop.xlane.xlu0 %774
      %v776 = vsel %vm760, %v737, 0.0
      %777 = vadd.xlane.f32.xlu0 %v776
      %v778 = vpop.xlane.xlu0 %777
      %vm779 = vcmask 516096
      %v780 = vsel %vm779, %v738, 0.0
      %781 = vadd.xlane.f32.xlu0 %v780
      %v782 = vpop.xlane.xlu0 %781
      %v783 = vsel %vm760, %v739, 0.0
      %784 = vadd.xlane.f32.xlu0 %v783
      %v785 = vpop.xlane.xlu0 %784
      %v786 = vsel %vm760, %v740, 0.0
      %787 = vadd.xlane.f32.xlu0 %v786
      %v788 = vpop.xlane.xlu0 %787
      %v789 = vsel %vm760, %v741, 0.0
      %790 = vadd.xlane.f32.xlu0 %v789
      %v791 = vpop.xlane.xlu0 %790
      %v792 = vsel %vm760, %v742, 0.0
      %793 = vadd.xlane.f32.xlu0 %v792
      %v794 = vpop.xlane.xlu0 %793
      %v795 = vsel %vm760, %v743, 0.0
      %796 = vadd.xlane.f32.xlu0 %v795
      %v797 = vpop.xlane.xlu0 %796
      %v798 = vsel %vm760, %v744, 0.0
      %799 = vadd.xlane.f32.xlu0 %v798
      %v800 = vpop.xlane.xlu0 %799
      %v801 = vsel %vm779, %v745, 0.0
      %802 = vadd.xlane.f32.xlu0 %v801
      %v803 = vpop.xlane.xlu0 %802
      %v804 = vsel %vm760, %v746, 0.0
      %805 = vadd.xlane.f32.xlu0 %v804
      %v806 = vpop.xlane.xlu0 %805
      %v807 = vsel %vm760, %v747, 0.0
      %808 = vadd.xlane.f32.xlu0 %v807
      %v809 = vpop.xlane.xlu0 %808
      %v810 = vsel %vm760, %v748, 0.0
      %811 = vadd.xlane.f32.xlu0 %v810
      %v812 = vpop.xlane.xlu0 %811
      %v813 = vsel %vm760, %v749, 0.0
      %814 = vadd.xlane.f32.xlu0 %v813
      %v815 = vpop.xlane.xlu0 %814
      %v816 = vsel %vm760, %v750, 0.0
      %817 = vadd.xlane.f32.xlu0 %v816
      %v818 = vpop.xlane.xlu0 %817
      %v819 = vsel %vm760, %v751, 0.0
      %820 = vadd.xlane.f32.xlu0 %v819
      %v821 = vpop.xlane.xlu0 %820
      %v822 = vsel %vm779, %v752, 0.0
      %823 = vadd.xlane.f32.xlu0 %v822
      %v824 = vpop.xlane.xlu0 %823
      %v825 = vsel %vm760, %v753, 0.0
      %826 = vadd.xlane.f32.xlu0 %v825
      %v827 = vpop.xlane.xlu0 %826
      %v828 = vsel %vm760, %v754, 0.0
      %829 = vadd.xlane.f32.xlu0 %v828
      %v830 = vpop.xlane.xlu0 %829
      %v831 = vsel %vm760, %v755, 0.0
      %832 = vadd.xlane.f32.xlu0 %v831
      %v833 = vpop.xlane.xlu0 %832
      %v834 = vsel %vm760, %v756, 0.0
      %835 = vadd.xlane.f32.xlu0 %v834
      %v836 = vpop.xlane.xlu0 %835
      %v837 = vsel %vm760, %v757, 0.0
      %838 = vadd.xlane.f32.xlu0 %v837
      %v839 = vpop.xlane.xlu0 %838
      %v840 = vsel %vm760, %v758, 0.0
      %841 = vadd.xlane.f32.xlu0 %v840
      %v842 = vpop.xlane.xlu0 %841
      %v843 = vsel %vm779, %v759, 0.0
      %844 = vadd.xlane.f32.xlu0 %v843
      %v845 = vpop.xlane.xlu0 %844
      %v846 = vrcp.pop 64.0
      %v847 = vmul.f32 %v763, %v846
      %v848 = vmul.f32 %v766, %v846
      %v849 = vmul.f32 %v769, %v846
      %v850 = vmul.f32 %v772, %v846
      %v851 = vmul.f32 %v775, %v846
      %v852 = vmul.f32 %v778, %v846
      %v853 = vmul.f32 %v782, %v846
      %v854 = vmul.f32 %v785, %v846
      %v855 = vmul.f32 %v788, %v846
      %v856 = vmul.f32 %v791, %v846
      %v857 = vmul.f32 %v794, %v846
      %v858 = vmul.f32 %v797, %v846
      %v859 = vmul.f32 %v800, %v846
      %v860 = vmul.f32 %v803, %v846
      %v861 = vmul.f32 %v806, %v846
      %v862 = vmul.f32 %v809, %v846
      %v863 = vmul.f32 %v812, %v846
      %v864 = vmul.f32 %v815, %v846
      %v865 = vmul.f32 %v818, %v846
      %v866 = vmul.f32 %v821, %v846
      %v867 = vmul.f32 %v824, %v846
      %v868 = vmul.f32 %v827, %v846
      %v869 = vmul.f32 %v830, %v846
      %v870 = vmul.f32 %v833, %v846
      %v871 = vmul.f32 %v836, %v846
      %v872 = vmul.f32 %v839, %v846
      %v873 = vmul.f32 %v842, %v846
      %v874 = vmul.f32 %v845, %v846
      %v875 = vsub.f32 %v732, %v847
      %v876 = vsub.f32 %v733, %v848
      %v877 = vsub.f32 %v734, %v849
      %v878 = vsub.f32 %v735, %v850
      %v879 = vsub.f32 %v736, %v851
      %v880 = vsub.f32 %v737, %v852
      %v881 = vsub.f32 %v738, %v853
      %v882 = vsub.f32 %v739, %v854
      %v883 = vsub.f32 %v740, %v855
      %v884 = vsub.f32 %v741, %v856
      %v885 = vsub.f32 %v742, %v857
      %v886 = vsub.f32 %v743, %v858
      %v887 = vsub.f32 %v744, %v859
      %v888 = vsub.f32 %v745, %v860
      %v889 = vsub.f32 %v746, %v861
      %v890 = vsub.f32 %v747, %v862
      %v891 = vsub.f32 %v748, %v863
      %v892 = vsub.f32 %v749, %v864
      %v893 = vsub.f32 %v750, %v865
      %v894 = vsub.f32 %v751, %v866
      %v895 = vsub.f32 %v752, %v867
      %v896 = vsub.f32 %v753, %v868
      %v897 = vsub.f32 %v754, %v869
      %v898 = vsub.f32 %v755, %v870
      %v899 = vsub.f32 %v756, %v871
      %v900 = vsub.f32 %v757, %v872
      %v901 = vsub.f32 %v758, %v873
      %v902 = vsub.f32 %v759, %v874
      %v903 = vmul.f32 %v875, %v875
      %v904 = vmul.f32 %v876, %v876
      %v905 = vmul.f32 %v877, %v877
      %v906 = vmul.f32 %v878, %v878
      %v907 = vmul.f32 %v879, %v879
      %v908 = vmul.f32 %v880, %v880
      %v909 = vmul.f32 %v881, %v881
      %v910 = vmul.f32 %v882, %v882
      %v911 = vmul.f32 %v883, %v883
      %v912 = vmul.f32 %v884, %v884
      %v913 = vmul.f32 %v885, %v885
      %v914 = vmul.f32 %v886, %v886
      %v915 = vmul.f32 %v887, %v887
      %v916 = vmul.f32 %v888, %v888
      %v917 = vmul.f32 %v889, %v889
      %v918 = vmul.f32 %v890, %v890
      %v919 = vmul.f32 %v891, %v891
      %v920 = vmul.f32 %v892, %v892
      %v921 = vmul.f32 %v893, %v893
      %v922 = vmul.f32 %v894, %v894
      %v923 = vmul.f32 %v895, %v895
      %v924 = vmul.f32 %v896, %v896
      %v925 = vmul.f32 %v897, %v897
      %v926 = vmul.f32 %v898, %v898
      %v927 = vmul.f32 %v899, %v899
      %v928 = vmul.f32 %v900, %v900
      %v929 = vmul.f32 %v901, %v901
      %v930 = vmul.f32 %v902, %v902
      %v931 = vsel %vm760, %v903, 0.0
      %932 = vadd.xlane.f32.xlu0 %v931
      %v933 = vpop.xlane.xlu0 %932
      %v934 = vsel %vm760, %v904, 0.0
      %935 = vadd.xlane.f32.xlu0 %v934
      %v936 = vpop.xlane.xlu0 %935
      %v937 = vsel %vm760, %v905, 0.0
      %938 = vadd.xlane.f32.xlu0 %v937
      %v939 = vpop.xlane.xlu0 %938
      %v940 = vsel %vm760, %v906, 0.0
      %941 = vadd.xlane.f32.xlu0 %v940
      %v942 = vpop.xlane.xlu0 %941
      %v943 = vsel %vm760, %v907, 0.0
      %944 = vadd.xlane.f32.xlu0 %v943
      %v945 = vpop.xlane.xlu0 %944
      %v946 = vsel %vm760, %v908, 0.0
      %947 = vadd.xlane.f32.xlu0 %v946
      %v948 = vpop.xlane.xlu0 %947
      %v949 = vsel %vm779, %v909, 0.0
      %950 = vadd.xlane.f32.xlu0 %v949
      %v951 = vpop.xlane.xlu0 %950
      %v952 = vsel %vm760, %v910, 0.0
      %953 = vadd.xlane.f32.xlu0 %v952
      %v954 = vpop.xlane.xlu0 %953
      %v955 = vsel %vm760, %v911, 0.0
      %956 = vadd.xlane.f32.xlu0 %v955
      %v957 = vpop.xlane.xlu0 %956
      %v958 = vsel %vm760, %v912, 0.0
      %959 = vadd.xlane.f32.xlu0 %v958
      %v960 = vpop.xlane.xlu0 %959
      %v961 = vsel %vm760, %v913, 0.0
      %962 = vadd.xlane.f32.xlu0 %v961
      %v963 = vpop.xlane.xlu0 %962
      %v964 = vsel %vm760, %v914, 0.0
      %965 = vadd.xlane.f32.xlu0 %v964
      %v966 = vpop.xlane.xlu0 %965
      %v967 = vsel %vm760, %v915, 0.0
      %968 = vadd.xlane.f32.xlu0 %v967
      %v969 = vpop.xlane.xlu0 %968
      %v970 = vsel %vm779, %v916, 0.0
      %971 = vadd.xlane.f32.xlu0 %v970
      %v972 = vpop.xlane.xlu0 %971
      %v973 = vsel %vm760, %v917, 0.0
      %974 = vadd.xlane.f32.xlu0 %v973
      %v975 = vpop.xlane.xlu0 %974
      %v976 = vsel %vm760, %v918, 0.0
      %977 = vadd.xlane.f32.xlu0 %v976
      %v978 = vpop.xlane.xlu0 %977
      %v979 = vsel %vm760, %v919, 0.0
      %980 = vadd.xlane.f32.xlu0 %v979
      %v981 = vpop.xlane.xlu0 %980
      %v982 = vsel %vm760, %v920, 0.0
      %983 = vadd.xlane.f32.xlu0 %v982
      %v984 = vpop.xlane.xlu0 %983
      %v985 = vsel %vm760, %v921, 0.0
      %986 = vadd.xlane.f32.xlu0 %v985
      %v987 = vpop.xlane.xlu0 %986
      %v988 = vsel %vm760, %v922, 0.0
      %989 = vadd.xlane.f32.xlu0 %v988
      %v990 = vpop.xlane.xlu0 %989
      %v991 = vsel %vm779, %v923, 0.0
      %992 = vadd.xlane.f32.xlu0 %v991
      %v993 = vpop.xlane.xlu0 %992
      %v994 = vsel %vm760, %v924, 0.0
      %995 = vadd.xlane.f32.xlu0 %v994
      %v996 = vpop.xlane.xlu0 %995
      %v997 = vsel %vm760, %v925, 0.0
      %998 = vadd.xlane.f32.xlu0 %v997
      %v999 = vpop.xlane.xlu0 %998
      %v1000 = vsel %vm760, %v926, 0.0
      %1001 = vadd.xlane.f32.xlu0 %v1000
      %v1002 = vpop.xlane.xlu0 %1001
      %v1003 = vsel %vm760, %v927, 0.0
      %1004 = vadd.xlane.f32.xlu0 %v1003
      %v1005 = vpop.xlane.xlu0 %1004
      %v1006 = vsel %vm760, %v928, 0.0
      %1007 = vadd.xlane.f32.xlu0 %v1006
      %v1008 = vpop.xlane.xlu0 %1007
      %v1009 = vsel %vm760, %v929, 0.0
      %1010 = vadd.xlane.f32.xlu0 %v1009
      %v1011 = vpop.xlane.xlu0 %1010
      %v1012 = vsel %vm779, %v930, 0.0
      %1013 = vadd.xlane.f32.xlu0 %v1012
      %v1014 = vpop.xlane.xlu0 %1013
      %v1015 = vmul.f32 %v933, %v846
      %v1016 = vmul.f32 %v936, %v846
      %v1017 = vmul.f32 %v939, %v846
      %v1018 = vmul.f32 %v942, %v846
      %v1019 = vmul.f32 %v945, %v846
      %v1020 = vmul.f32 %v948, %v846
      %v1021 = vmul.f32 %v951, %v846
      %v1022 = vmul.f32 %v954, %v846
      %v1023 = vmul.f32 %v957, %v846
      %v1024 = vmul.f32 %v960, %v846
      %v1025 = vmul.f32 %v963, %v846
      %v1026 = vmul.f32 %v966, %v846
      %v1027 = vmul.f32 %v969, %v846
      %v1028 = vmul.f32 %v972, %v846
      %v1029 = vmul.f32 %v975, %v846
      %v1030 = vmul.f32 %v978, %v846
      %v1031 = vmul.f32 %v981, %v846
      %v1032 = vmul.f32 %v984, %v846
      %v1033 = vmul.f32 %v987, %v846
      %v1034 = vmul.f32 %v990, %v846
      %v1035 = vmul.f32 %v993, %v846
      %v1036 = vmul.f32 %v996, %v846
      %v1037 = vmul.f32 %v999, %v846
      %v1038 = vmul.f32 %v1002, %v846
      %v1039 = vmul.f32 %v1005, %v846
      %v1040 = vmul.f32 %v1008, %v846
      %v1041 = vmul.f32 %v1011, %v846
      %v1042 = vmul.f32 %v1014, %v846
      %v1043 = vadd.f32 %v1015, 1e-06
      %v1044 = vadd.f32 %v1016, 1e-06
      %v1045 = vadd.f32 %v1017, 1e-06
      %v1046 = vadd.f32 %v1018, 1e-06
      %v1047 = vadd.f32 %v1019, 1e-06
      %v1048 = vadd.f32 %v1020, 1e-06
      %v1049 = vadd.f32 %v1021, 1e-06
      %v1050 = vadd.f32 %v1022, 1e-06
      %v1051 = vadd.f32 %v1023, 1e-06
      %v1052 = vadd.f32 %v1024, 1e-06
      %v1053 = vadd.f32 %v1025, 1e-06
      %v1054 = vadd.f32 %v1026, 1e-06
      %v1055 = vadd.f32 %v1027, 1e-06
      %v1056 = vadd.f32 %v1028, 1e-06
      %v1057 = vadd.f32 %v1029, 1e-06
      %v1058 = vadd.f32 %v1030, 1e-06
      %v1059 = vadd.f32 %v1031, 1e-06
      %v1060 = vadd.f32 %v1032, 1e-06
      %v1061 = vadd.f32 %v1033, 1e-06
      %v1062 = vadd.f32 %v1034, 1e-06
      %v1063 = vadd.f32 %v1035, 1e-06
      %v1064 = vadd.f32 %v1036, 1e-06
      %v1065 = vadd.f32 %v1037, 1e-06
      %v1066 = vadd.f32 %v1038, 1e-06
      %v1067 = vadd.f32 %v1039, 1e-06
      %v1068 = vadd.f32 %v1040, 1e-06
      %v1069 = vadd.f32 %v1041, 1e-06
      %v1070 = vadd.f32 %v1042, 1e-06
      %v1071 = vrsqrt.pop %v1043
      %v1072 = vrsqrt.pop %v1044
      %v1073 = vrsqrt.pop %v1045
      %v1074 = vrsqrt.pop %v1046
      %v1075 = vrsqrt.pop %v1047
      %v1076 = vrsqrt.pop %v1048
      %v1077 = vrsqrt.pop %v1049
      %v1078 = vrsqrt.pop %v1050
      %v1079 = vrsqrt.pop %v1051
      %v1080 = vrsqrt.pop %v1052
      %v1081 = vrsqrt.pop %v1053
      %v1082 = vrsqrt.pop %v1054
      %v1083 = vrsqrt.pop %v1055
      %v1084 = vrsqrt.pop %v1056
      %v1085 = vrsqrt.pop %v1057
      %v1086 = vrsqrt.pop %v1058
      %v1087 = vrsqrt.pop %v1059
      %v1088 = vrsqrt.pop %v1060
      %v1089 = vrsqrt.pop %v1061
      %v1090 = vrsqrt.pop %v1062
      %v1091 = vrsqrt.pop %v1063
      %v1092 = vrsqrt.pop %v1064
      %v1093 = vrsqrt.pop %v1065
      %v1094 = vrsqrt.pop %v1066
      %v1095 = vrsqrt.pop %v1067
      %v1096 = vrsqrt.pop %v1068
      %v1097 = vrsqrt.pop %v1069
      %v1098 = vrsqrt.pop %v1070
      %v1099 = vmul.f32 %v875, %v1071
      %v1100 = vmul.f32 %v876, %v1072
      %v1101 = vmul.f32 %v877, %v1073
      %v1102 = vmul.f32 %v878, %v1074
      %v1103 = vmul.f32 %v879, %v1075
      %v1104 = vmul.f32 %v880, %v1076
      %v1105 = vmul.f32 %v881, %v1077
      %v1106 = vmul.f32 %v882, %v1078
      %v1107 = vmul.f32 %v883, %v1079
      %v1108 = vmul.f32 %v884, %v1080
      %v1109 = vmul.f32 %v885, %v1081
      %v1110 = vmul.f32 %v886, %v1082
      %v1111 = vmul.f32 %v887, %v1083
      %v1112 = vmul.f32 %v888, %v1084
      %v1113 = vmul.f32 %v889, %v1085
      %v1114 = vmul.f32 %v890, %v1086
      %v1115 = vmul.f32 %v891, %v1087
      %v1116 = vmul.f32 %v892, %v1088
      %v1117 = vmul.f32 %v893, %v1089
      %v1118 = vmul.f32 %v894, %v1090
      %v1119 = vmul.f32 %v895, %v1091
      %v1120 = vmul.f32 %v896, %v1092
      %v1121 = vmul.f32 %v897, %v1093
      %v1122 = vmul.f32 %v898, %v1094
      %v1123 = vmul.f32 %v899, %v1095
      %v1124 = vmul.f32 %v900, %v1096
      %v1125 = vmul.f32 %v901, %v1097
      %v1126 = vmul.f32 %v902, %v1098
      %v1127 = vld [vmem:[%s1] sm:$0x1]
      %v1129 = vlaneseq
      %v1130 = vshrl.u32 %v1129, 7
      %v1131 = vsub.s32 0, %v1130
      %v1132 = vrot.slane %v1127, %v1131
      %v1134 = vmul.f32 %v1099, %v1132
      %v1135 = vmul.f32 %v1100, %v1132
      %v1136 = vmul.f32 %v1101, %v1132
      %v1137 = vmul.f32 %v1102, %v1132
      %v1138 = vmul.f32 %v1103, %v1132
      %v1139 = vmul.f32 %v1104, %v1132
      %v1140 = vmul.f32 %v1105, %v1132
      %v1141 = vmul.f32 %v1106, %v1132
      %v1142 = vmul.f32 %v1107, %v1132
      %v1143 = vmul.f32 %v1108, %v1132
      %v1144 = vmul.f32 %v1109, %v1132
      %v1145 = vmul.f32 %v1110, %v1132
      %v1146 = vmul.f32 %v1111, %v1132
      %v1147 = vmul.f32 %v1112, %v1132
      %v1148 = vmul.f32 %v1113, %v1132
      %v1149 = vmul.f32 %v1114, %v1132
      %v1150 = vmul.f32 %v1115, %v1132
      %v1151 = vmul.f32 %v1116, %v1132
      %v1152 = vmul.f32 %v1117, %v1132
      %v1153 = vmul.f32 %v1118, %v1132
      %v1154 = vmul.f32 %v1119, %v1132
      %v1155 = vmul.f32 %v1120, %v1132
      %v1156 = vmul.f32 %v1121, %v1132
      %v1157 = vmul.f32 %v1122, %v1132
      %v1158 = vmul.f32 %v1123, %v1132
      %v1159 = vmul.f32 %v1124, %v1132
      %v1160 = vmul.f32 %v1125, %v1132
      %v1161 = vmul.f32 %v1126, %v1132
      %v1162 = vld [vmem:[%s2] sm:$0x1]
      %v1164 = vlaneseq
      %v1165 = vshrl.u32 %v1164, 7
      %v1166 = vsub.s32 0, %v1165
      %v1167 = vrot.slane %v1162, %v1166
      %v1169 = vadd.f32 %v1134, %v1167
      %v1170 = vadd.f32 %v1135, %v1167
      %v1171 = vadd.f32 %v1136, %v1167
      %v1172 = vadd.f32 %v1137, %v1167
      %v1173 = vadd.f32 %v1138, %v1167
      %v1174 = vadd.f32 %v1139, %v1167
      %v1175 = vadd.f32 %v1140, %v1167
      %v1176 = vadd.f32 %v1141, %v1167
      %v1177 = vadd.f32 %v1142, %v1167
      %v1178 = vadd.f32 %v1143, %v1167
      %v1179 = vadd.f32 %v1144, %v1167
      %v1180 = vadd.f32 %v1145, %v1167
      %v1181 = vadd.f32 %v1146, %v1167
      %v1182 = vadd.f32 %v1147, %v1167
      %v1183 = vadd.f32 %v1148, %v1167
      %v1184 = vadd.f32 %v1149, %v1167
      %v1185 = vadd.f32 %v1150, %v1167
      %v1186 = vadd.f32 %v1151, %v1167
      %v1187 = vadd.f32 %v1152, %v1167
      %v1188 = vadd.f32 %v1153, %v1167
      %v1189 = vadd.f32 %v1154, %v1167
      %v1190 = vadd.f32 %v1155, %v1167
      %v1191 = vadd.f32 %v1156, %v1167
      %v1192 = vadd.f32 %v1157, %v1167
      %v1193 = vadd.f32 %v1158, %v1167
      %v1194 = vadd.f32 %v1159, %v1167
      %v1195 = vadd.f32 %v1160, %v1167
      %v1196 = vadd.f32 %v1161, %v1167
      %v1197 = vld [vmem:[%s3] sm:$0x1]
      %v1199 = vlaneseq
      %v1200 = vshrl.u32 %v1199, 7
      %v1201 = vsub.s32 0, %v1200
      %v1202 = vrot.slane %v1197, %v1201
      %v1204 = vmul.f32 %v1099, %v1202
      %v1205 = vmul.f32 %v1100, %v1202
      %v1206 = vmul.f32 %v1101, %v1202
      %v1207 = vmul.f32 %v1102, %v1202
      %v1208 = vmul.f32 %v1103, %v1202
      %v1209 = vmul.f32 %v1104, %v1202
      %v1210 = vmul.f32 %v1105, %v1202
      %v1211 = vmul.f32 %v1106, %v1202
      %v1212 = vmul.f32 %v1107, %v1202
      %v1213 = vmul.f32 %v1108, %v1202
      %v1214 = vmul.f32 %v1109, %v1202
      %v1215 = vmul.f32 %v1110, %v1202
      %v1216 = vmul.f32 %v1111, %v1202
      %v1217 = vmul.f32 %v1112, %v1202
      %v1218 = vmul.f32 %v1113, %v1202
      %v1219 = vmul.f32 %v1114, %v1202
      %v1220 = vmul.f32 %v1115, %v1202
      %v1221 = vmul.f32 %v1116, %v1202
      %v1222 = vmul.f32 %v1117, %v1202
      %v1223 = vmul.f32 %v1118, %v1202
      %v1224 = vmul.f32 %v1119, %v1202
      %v1225 = vmul.f32 %v1120, %v1202
      %v1226 = vmul.f32 %v1121, %v1202
      %v1227 = vmul.f32 %v1122, %v1202
      %v1228 = vmul.f32 %v1123, %v1202
      %v1229 = vmul.f32 %v1124, %v1202
      %v1230 = vmul.f32 %v1125, %v1202
      %v1231 = vmul.f32 %v1126, %v1202
      %v1232 = vld [vmem:[%s4] sm:$0x1]
      %v1234 = vlaneseq
      %v1235 = vshrl.u32 %v1234, 7
      %v1236 = vsub.s32 0, %v1235
      %v1237 = vrot.slane %v1232, %v1236
      %v1239 = vadd.f32 %v1204, %v1237
      %v1240 = vadd.f32 %v1205, %v1237
      %v1241 = vadd.f32 %v1206, %v1237
      %v1242 = vadd.f32 %v1207, %v1237
      %v1243 = vadd.f32 %v1208, %v1237
      %v1244 = vadd.f32 %v1209, %v1237
      %v1245 = vadd.f32 %v1210, %v1237
      %v1246 = vadd.f32 %v1211, %v1237
      %v1247 = vadd.f32 %v1212, %v1237
      %v1248 = vadd.f32 %v1213, %v1237
      %v1249 = vadd.f32 %v1214, %v1237
      %v1250 = vadd.f32 %v1215, %v1237
      %v1251 = vadd.f32 %v1216, %v1237
      %v1252 = vadd.f32 %v1217, %v1237
      %v1253 = vadd.f32 %v1218, %v1237
      %v1254 = vadd.f32 %v1219, %v1237
      %v1255 = vadd.f32 %v1220, %v1237
      %v1256 = vadd.f32 %v1221, %v1237
      %v1257 = vadd.f32 %v1222, %v1237
      %v1258 = vadd.f32 %v1223, %v1237
      %v1259 = vadd.f32 %v1224, %v1237
      %v1260 = vadd.f32 %v1225, %v1237
      %v1261 = vadd.f32 %v1226, %v1237
      %v1262 = vadd.f32 %v1227, %v1237
      %v1263 = vadd.f32 %v1228, %v1237
      %v1264 = vadd.f32 %v1229, %v1237
      %v1265 = vadd.f32 %v1230, %v1237
      %v1266 = vadd.f32 %v1231, %v1237
      %v1267 = vld [vmem:[%s5] sm:$0x1]
      %v1269 = vlaneseq
      %v1270 = vshrl.u32 %v1269, 7
      %v1271 = vsub.s32 0, %v1270
      %v1272 = vrot.slane %v1267, %v1271
      %v1274 = vmul.f32 %v1099, %v1272
      %v1275 = vmul.f32 %v1100, %v1272
      %v1276 = vmul.f32 %v1101, %v1272
      %v1277 = vmul.f32 %v1102, %v1272
      %v1278 = vmul.f32 %v1103, %v1272
      %v1279 = vmul.f32 %v1104, %v1272
      %v1280 = vmul.f32 %v1105, %v1272
      %v1281 = vmul.f32 %v1106, %v1272
      %v1282 = vmul.f32 %v1107, %v1272
      %v1283 = vmul.f32 %v1108, %v1272
      %v1284 = vmul.f32 %v1109, %v1272
      %v1285 = vmul.f32 %v1110, %v1272
      %v1286 = vmul.f32 %v1111, %v1272
      %v1287 = vmul.f32 %v1112, %v1272
      %v1288 = vmul.f32 %v1113, %v1272
      %v1289 = vmul.f32 %v1114, %v1272
      %v1290 = vmul.f32 %v1115, %v1272
      %v1291 = vmul.f32 %v1116, %v1272
      %v1292 = vmul.f32 %v1117, %v1272
      %v1293 = vmul.f32 %v1118, %v1272
      %v1294 = vmul.f32 %v1119, %v1272
      %v1295 = vmul.f32 %v1120, %v1272
      %v1296 = vmul.f32 %v1121, %v1272
      %v1297 = vmul.f32 %v1122, %v1272
      %v1298 = vmul.f32 %v1123, %v1272
      %v1299 = vmul.f32 %v1124, %v1272
      %v1300 = vmul.f32 %v1125, %v1272
      %v1301 = vmul.f32 %v1126, %v1272
      %v1302 = vld [vmem:[%s6] sm:$0x1]
      %v1304 = vlaneseq
      %v1305 = vshrl.u32 %v1304, 7
      %v1306 = vsub.s32 0, %v1305
      %v1307 = vrot.slane %v1302, %v1306
      %v1309 = vadd.f32 %v1274, %v1307
      %v1310 = vadd.f32 %v1275, %v1307
      %v1311 = vadd.f32 %v1276, %v1307
      %v1312 = vadd.f32 %v1277, %v1307
      %v1313 = vadd.f32 %v1278, %v1307
      %v1314 = vadd.f32 %v1279, %v1307
      %v1315 = vadd.f32 %v1280, %v1307
      %v1316 = vadd.f32 %v1281, %v1307
      %v1317 = vadd.f32 %v1282, %v1307
      %v1318 = vadd.f32 %v1283, %v1307
      %v1319 = vadd.f32 %v1284, %v1307
      %v1320 = vadd.f32 %v1285, %v1307
      %v1321 = vadd.f32 %v1286, %v1307
      %v1322 = vadd.f32 %v1287, %v1307
      %v1323 = vadd.f32 %v1288, %v1307
      %v1324 = vadd.f32 %v1289, %v1307
      %v1325 = vadd.f32 %v1290, %v1307
      %v1326 = vadd.f32 %v1291, %v1307
      %v1327 = vadd.f32 %v1292, %v1307
      %v1328 = vadd.f32 %v1293, %v1307
      %v1329 = vadd.f32 %v1294, %v1307
      %v1330 = vadd.f32 %v1295, %v1307
      %v1331 = vadd.f32 %v1296, %v1307
      %v1332 = vadd.f32 %v1297, %v1307
      %v1333 = vadd.f32 %v1298, %v1307
      %v1334 = vadd.f32 %v1299, %v1307
      %v1335 = vadd.f32 %v1300, %v1307
      %v1336 = vadd.f32 %v1301, %v1307
      %vm1337 = vcmask 261120
      %v1339 = vsel %vm1337, %v1169, 0
      %v1342 = vsel %vm1337, %v1170, 0
      %v1345 = vsel %vm1337, %v1171, 0
      %v1348 = vsel %vm1337, %v1172, 0
      %v1351 = vsel %vm1337, %v1173, 0
      %v1354 = vsel %vm1337, %v1174, 0
      %v1357 = vsel %vm1337, %v1175, 0
      %v1360 = vsel %vm1337, %v1239, 0
      %v1363 = vsel %vm1337, %v1240, 0
      %v1366 = vsel %vm1337, %v1241, 0
      %v1369 = vsel %vm1337, %v1242, 0
      %v1372 = vsel %vm1337, %v1243, 0
      %v1375 = vsel %vm1337, %v1244, 0
      %v1378 = vsel %vm1337, %v1245, 0
      %1380 = vmatprep.subr.mxu0 0.0
      %1381 = vmatpush1.xpose.msra.mxu0 %v1360
      %1382 = vmatprep.subr.mxu0 0.0
      %1383 = vmatpush1.xpose.msra.mxu0 %v1363
      %1384 = vmatprep.subr.mxu0 0.0
      %1385 = vmatpush1.xpose.msra.mxu0 %v1366
      %1386 = vmatprep.subr.mxu0 0.0
      %1387 = vmatpush1.xpose.msra.mxu0 %v1369
      %1388 = vmatprep.subr.mxu0 0.0
      %1389 = vmatpush1.xpose.msra.mxu0 %v1372
      %1390 = vmatprep.subr.mxu0 0.0
      %1391 = vmatpush1.xpose.msra.mxu0 %v1375
      %1392 = vmatprep.subr.mxu0 0.0
      %1393 = vmatpush1.xpose.msra.mxu0 %v1378
      %1394 = vmatprep.subr.mxu0 0.0
      %1395 = vmatpush1.xpose.msra.mxu0 0.0
      %1396 = vmatprep.subr.mxu0 0.0
      %1397 = vmatpush1.xpose.msra.mxu0 0.0
      %1398 = vmatprep.subr.mxu0 0.0
      %1399 = vmatpush1.xpose.msra.mxu0 0.0
      %1400 = vmatprep.subr.mxu0 0.0
      %1401 = vmatpush1.xpose.msra.mxu0 0.0
      %1402 = vmatprep.subr.mxu0 0.0
      %1403 = vmatpush1.xpose.msra.mxu0 0.0
      %1404 = vmatprep.subr.mxu0 0.0
      %1405 = vmatpush1.xpose.msra.mxu0 0.0
      %1406 = vmatprep.subr.mxu0 0.0
      %1407 = vmatpush1.xpose.msra.mxu0 0.0
      %1408 = vmatprep.subr.mxu0 0.0
      %1409 = vmatpush1.xpose.msra.mxu0 0.0
      %1410 = vmatprep.subr.mxu0 0.0
      %1411 = vmatpush1.xpose.msra.mxu0 0.0
      %1412 = vmatprep.subr.mxu0 0.0
      %1413 = vmatpush1.xpose.msra.mxu0 0.0
      %1414 = vmatprep.subr.mxu0 0.0
      %1415 = vmatpush1.xpose.msra.mxu0 0.0
      %1416 = vmatprep.subr.mxu0 0.0
      %1417 = vmatpush1.xpose.msra.mxu0 0.0
      %1418 = vmatprep.subr.mxu0 0.0
      %1419 = vmatpush1.xpose.msra.mxu0 0.0
      %1420 = vmatprep.subr.mxu0 0.0
      %1421 = vmatpush1.xpose.msra.mxu0 0.0
      %1422 = vmatprep.subr.mxu0 0.0
      %1423 = vmatpush1.xpose.msra.mxu0 0.0
      %1424 = vmatprep.subr.mxu0 0.0
      %1425 = vmatpush1.xpose.msra.mxu0 0.0
      %1426 = vmatprep.subr.mxu0 0.0
      %1427 = vmatpush1.xpose.msra.mxu0 0.0
      %1428 = vmatprep.subr.mxu0 0.0
      %1429 = vmatpush1.xpose.msra.mxu0 0.0
      %1430 = vmatprep.subr.mxu0 0.0
      %1431 = vmatpush1.xpose.msra.mxu0 0.0
      %1432 = vmatprep.subr.mxu0 0.0
      %1433 = vmatpush1.xpose.msra.mxu0 0.0
      %1434 = vmatprep.subr.mxu0 0.0
      %1435 = vmatpush1.xpose.msra.mxu0 0.0
      %1436 = vmatprep.subr.mxu0 0.0
      %1437 = vmatpush1.xpose.msra.mxu0 0.0
      %1438 = vmatprep.subr.mxu0 0.0
      %1439 = vmatpush1.xpose.msra.mxu0 0.0
      %1440 = vmatprep.subr.mxu0 0.0
      %1441 = vmatpush1.xpose.msra.mxu0 0.0
      %1442 = vmatprep.subr.mxu0 0.0
      %1443 = vmatpush1.xpose.msra.mxu0 0.0
      %1444 = vmatprep.mubr.f32.mxu0 0.0
      %1445 = vmatmul.mubr.f32.gmra.mrb[0].mxu0 %v1339
      %v1446 = vpop.f32.mrb[0].mxu0
      %v1447 = vadd.f32 0.0, %v1446
      %v1448 = vpop.f32.mrb[0].mxu0
      %1449 = vmatprep.mubr.f32.mxu0 0.0
      %1450 = vmatmul.mubr.f32.gmra.mrb[0].mxu0 %v1342
      %v1451 = vpop.f32.mrb[0].mxu0
      %v1452 = vadd.f32 0.0, %v1451
      %v1453 = vpop.f32.mrb[0].mxu0
      %1454 = vmatprep.mubr.f32.mxu0 0.0
      %1455 = vmatmul.mubr.f32.gmra.mrb[0].mxu0 %v1345
      %v1456 = vpop.f32.mrb[0].mxu0
      %v1457 = vadd.f32 0.0, %v1456
      %v1458 = vpop.f32.mrb[0].mxu0
      %1459 = vmatprep.mubr.f32.mxu0 0.0
      %1460 = vmatmul.mubr.f32.gmra.mrb[0].mxu0 %v1348
      %v1461 = vpop.f32.mrb[0].mxu0
      %v1462 = vadd.f32 0.0, %v1461
      %v1463 = vpop.f32.mrb[0].mxu0
      %1464 = vmatprep.mubr.f32.mxu0 0.0
      %1465 = vmatmul.mubr.f32.gmra.mrb[0].mxu0 %v1351
      %v1466 = vpop.f32.mrb[0].mxu0
      %v1467 = vadd.f32 0.0, %v1466
      %v1468 = vpop.f32.mrb[0].mxu0
      %1469 = vmatprep.mubr.f32.mxu0 0.0
      %1470 = vmatmul.mubr.f32.gmra.mrb[0].mxu0 %v1354
      %v1471 = vpop.f32.mrb[0].mxu0
      %v1472 = vadd.f32 0.0, %v1471
      %v1473 = vpop.f32.mrb[0].mxu0
      %1474 = vmatprep.mubr.f32.mxu0 0.0
      %1475 = vmatmul.mubr.f32.gmra.mrb[0].mxu0 %v1357
      %v1476 = vpop.f32.mrb[0].mxu0
      %v1477 = vadd.f32 0.0, %v1476
      %v1478 = vpop.f32.mrb[0].mxu0
      %1479 = vdwg.mxu0
      %v1481 = vsel %vm1337, %v1176, 0
      %v1484 = vsel %vm1337, %v1177, 0
      %v1487 = vsel %vm1337, %v1178, 0
      %v1490 = vsel %vm1337, %v1179, 0
      %v1493 = vsel %vm1337, %v1180, 0
      %v1496 = vsel %vm1337, %v1181, 0
      %v1499 = vsel %vm1337, %v1182, 0
      %v1502 = vsel %vm1337, %v1246, 0
      %v1505 = vsel %vm1337, %v1247, 0
      %v1508 = vsel %vm1337, %v1248, 0
      %v1511 = vsel %vm1337, %v1249, 0
      %v1514 = vsel %vm1337, %v1250, 0
      %v1517 = vsel %vm1337, %v1251, 0
      %v1520 = vsel %vm1337, %v1252, 0
      %1522 = vmatprep.subr.mxu0 0.0
      %1523 = vmatpush1.xpose.msra.mxu0 %v1502
      %1524 = vmatprep.subr.mxu0 0.0
      %1525 = vmatpush1.xpose.msra.mxu0 %v1505
      %1526 = vmatprep.subr.mxu0 0.0
      %1527 = vmatpush1.xpose.msra.mxu0 %v1508
      %1528 = vmatprep.subr.mxu0 0.0
      %1529 = vmatpush1.xpose.msra.mxu0 %v1511
      %1530 = vmatprep.subr.mxu0 0.0
      %1531 = vmatpush1.xpose.msra.mxu0 %v1514
      %1532 = vmatprep.subr.mxu0 0.0
      %1533 = vmatpush1.xpose.msra.mxu0 %v1517
      %1534 = vmatprep.subr.mxu0 0.0
      %1535 = vmatpush1.xpose.msra.mxu0 %v1520
      %1536 = vmatprep.subr.mxu0 0.0
      %1537 = vmatpush1.xpose.msra.mxu0 0.0
      %1538 = vmatprep.subr.mxu0 0.0
      %1539 = vmatpush1.xpose.msra.mxu0 0.0
      %1540 = vmatprep.subr.mxu0 0.0
      %1541 = vmatpush1.xpose.msra.mxu0 0.0
      %1542 = vmatprep.subr.mxu0 0.0
      %1543 = vmatpush1.xpose.msra.mxu0 0.0
      %1544 = vmatprep.subr.mxu0 0.0
      %1545 = vmatpush1.xpose.msra.mxu0 0.0
      %1546 = vmatprep.subr.mxu0 0.0
      %1547 = vmatpush1.xpose.msra.mxu0 0.0
      %1548 = vmatprep.subr.mxu0 0.0
      %1549 = vmatpush1.xpose.msra.mxu0 0.0
      %1550 = vmatprep.subr.mxu0 0.0
      %1551 = vmatpush1.xpose.msra.mxu0 0.0
      %1552 = vmatprep.subr.mxu0 0.0
      %1553 = vmatpush1.xpose.msra.mxu0 0.0
      %1554 = vmatprep.subr.mxu0 0.0
      %1555 = vmatpush1.xpose.msra.mxu0 0.0
      %1556 = vmatprep.subr.mxu0 0.0
      %1557 = vmatpush1.xpose.msra.mxu0 0.0
      %1558 = vmatprep.subr.mxu0 0.0
      %1559 = vmatpush1.xpose.msra.mxu0 0.0
      %1560 = vmatprep.subr.mxu0 0.0
      %1561 = vmatpush1.xpose.msra.mxu0 0.0
      %1562 = vmatprep.subr.mxu0 0.0
      %1563 = vmatpush1.xpose.msra.mxu0 0.0
      %1564 = vmatprep.subr.mxu0 0.0
      %1565 = vmatpush1.xpose.msra.mxu0 0.0
      %1566 = vmatprep.subr.mxu0 0.0
      %1567 = vmatpush1.xpose.msra.mxu0 0.0
      %1568 = vmatprep.subr.mxu0 0.0
      %1569 = vmatpush1.xpose.msra.mxu0 0.0
      %1570 = vmatprep.subr.mxu0 0.0
      %1571 = vmatpush1.xpose.msra.mxu0 0.0
      %1572 = vmatprep.subr.mxu0 0.0
      %1573 = vmatpush1.xpose.msra.mxu0 0.0
      %1574 = vmatprep.subr.mxu0 0.0
      %1575 = vmatpush1.xpose.msra.mxu0 0.0
      %1576 = vmatprep.subr.mxu0 0.0
      %1577 = vmatpush1.xpose.msra.mxu0 0.0
      %1578 = vmatprep.subr.mxu0 0.0
      %1579 = vmatpush1.xpose.msra.mxu0 0.0
      %1580 = vmatprep.subr.mxu0 0.0
      %1581 = vmatpush1.xpose.msra.mxu0 0.0
      %1582 = vmatprep.subr.mxu0 0.0
      %1583 = vmatpush1.xpose.msra.mxu0 0.0
      %1584 = vmatprep.subr.mxu0 0.0
      %1585 = vmatpush1.xpose.msra.mxu0 0.0
      %1586 = vmatprep.mubr.f32.mxu0 0.0
      %1587 = vmatmul.mubr.f32.gmra.mrb[0].mxu0 %v1481
      %v1588 = vpop.f32.mrb[0].mxu0
      %v1589 = vadd.f32 0.0, %v1588
      %v1590 = vpop.f32.mrb[0].mxu0
      %1591 = vmatprep.mubr.f32.mxu0 0.0
      %1592 = vmatmul.mubr.f32.gmra.mrb[0].mxu0 %v1484
      %v1593 = vpop.f32.mrb[0].mxu0
      %v1594 = vadd.f32 0.0, %v1593
      %v1595 = vpop.f32.mrb[0].mxu0
      %1596 = vmatprep.mubr.f32.mxu0 0.0
      %1597 = vmatmul.mubr.f32.gmra.mrb[0].mxu0 %v1487
      %v1598 = vpop.f32.mrb[0].mxu0
      %v1599 = vadd.f32 0.0, %v1598
      %v1600 = vpop.f32.mrb[0].mxu0
      %1601 = vmatprep.mubr.f32.mxu0 0.0
      %1602 = vmatmul.mubr.f32.gmra.mrb[0].mxu0 %v1490
      %v1603 = vpop.f32.mrb[0].mxu0
      %v1604 = vadd.f32 0.0, %v1603
      %v1605 = vpop.f32.mrb[0].mxu0
      %1606 = vmatprep.mubr.f32.mxu0 0.0
      %1607 = vmatmul.mubr.f32.gmra.mrb[0].mxu0 %v1493
      %v1608 = vpop.f32.mrb[0].mxu0
      %v1609 = vadd.f32 0.0, %v1608
      %v1610 = vpop.f32.mrb[0].mxu0
      %1611 = vmatprep.mubr.f32.mxu0 0.0
      %1612 = vmatmul.mubr.f32.gmra.mrb[0].mxu0 %v1496
      %v1613 = vpop.f32.mrb[0].mxu0
      %v1614 = vadd.f32 0.0, %v1613
      %v1615 = vpop.f32.mrb[0].mxu0
      %1616 = vmatprep.mubr.f32.mxu0 0.0
      %1617 = vmatmul.mubr.f32.gmra.mrb[0].mxu0 %v1499
      %v1618 = vpop.f32.mrb[0].mxu0
      %v1619 = vadd.f32 0.0, %v1618
      %v1620 = vpop.f32.mrb[0].mxu0
      %1621 = vdwg.mxu0
      %v1623 = vsel %vm1337, %v1183, 0
      %v1626 = vsel %vm1337, %v1184, 0
      %v1629 = vsel %vm1337, %v1185, 0
      %v1632 = vsel %vm1337, %v1186, 0
      %v1635 = vsel %vm1337, %v1187, 0
      %v1638 = vsel %vm1337, %v1188, 0
      %v1641 = vsel %vm1337, %v1189, 0
      %v1644 = vsel %vm1337, %v1253, 0
      %v1647 = vsel %vm1337, %v1254, 0
      %v1650 = vsel %vm1337, %v1255, 0
      %v1653 = vsel %vm1337, %v1256, 0
      %v1656 = vsel %vm1337, %v1257, 0
      %v1659 = vsel %vm1337, %v1258, 0
      %v1662 = vsel %vm1337, %v1259, 0
      %1664 = vmatprep.subr.mxu0 0.0
      %1665 = vmatpush1.xpose.msra.mxu0 %v1644
      %1666 = vmatprep.subr.mxu0 0.0
      %1667 = vmatpush1.xpose.msra.mxu0 %v1647
      %1668 = vmatprep.subr.mxu0 0.0
      %1669 = vmatpush1.xpose.msra.mxu0 %v1650
      %1670 = vmatprep.subr.mxu0 0.0
      %1671 = vmatpush1.xpose.msra.mxu0 %v1653
      %1672 = vmatprep.subr.mxu0 0.0
      %1673 = vmatpush1.xpose.msra.mxu0 %v1656
      %1674 = vmatprep.subr.mxu0 0.0
      %1675 = vmatpush1.xpose.msra.mxu0 %v1659
      %1676 = vmatprep.subr.mxu0 0.0
      %1677 = vmatpush1.xpose.msra.mxu0 %v1662
      %1678 = vmatprep.subr.mxu0 0.0
      %1679 = vmatpush1.xpose.msra.mxu0 0.0
      %1680 = vmatprep.subr.mxu0 0.0
      %1681 = vmatpush1.xpose.msra.mxu0 0.0
      %1682 = vmatprep.subr.mxu0 0.0
      %1683 = vmatpush1.xpose.msra.mxu0 0.0
      %1684 = vmatprep.subr.mxu0 0.0
      %1685 = vmatpush1.xpose.msra.mxu0 0.0
      %1686 = vmatprep.subr.mxu0 0.0
      %1687 = vmatpush1.xpose.msra.mxu0 0.0
      %1688 = vmatprep.subr.mxu0 0.0
      %1689 = vmatpush1.xpose.msra.mxu0 0.0
      %1690 = vmatprep.subr.mxu0 0.0
      %1691 = vmatpush1.xpose.msra.mxu0 0.0
      %1692 = vmatprep.subr.mxu0 0.0
      %1693 = vmatpush1.xpose.msra.mxu0 0.0
      %1694 = vmatprep.subr.mxu0 0.0
      %1695 = vmatpush1.xpose.msra.mxu0 0.0
      %1696 = vmatprep.subr.mxu0 0.0
      %1697 = vmatpush1.xpose.msra.mxu0 0.0
      %1698 = vmatprep.subr.mxu0 0.0
      %1699 = vmatpush1.xpose.msra.mxu0 0.0
      %1700 = vmatprep.subr.mxu0 0.0
      %1701 = vmatpush1.xpose.msra.mxu0 0.0
      %1702 = vmatprep.subr.mxu0 0.0
      %1703 = vmatpush1.xpose.msra.mxu0 0.0
      %1704 = vmatprep.subr.mxu0 0.0
      %1705 = vmatpush1.xpose.msra.mxu0 0.0
      %1706 = vmatprep.subr.mxu0 0.0
      %1707 = vmatpush1.xpose.msra.mxu0 0.0
      %1708 = vmatprep.subr.mxu0 0.0
      %1709 = vmatpush1.xpose.msra.mxu0 0.0
      %1710 = vmatprep.subr.mxu0 0.0
      %1711 = vmatpush1.xpose.msra.mxu0 0.0
      %1712 = vmatprep.subr.mxu0 0.0
      %1713 = vmatpush1.xpose.msra.mxu0 0.0
      %1714 = vmatprep.subr.mxu0 0.0
      %1715 = vmatpush1.xpose.msra.mxu0 0.0
      %1716 = vmatprep.subr.mxu0 0.0
      %1717 = vmatpush1.xpose.msra.mxu0 0.0
      %1718 = vmatprep.subr.mxu0 0.0
      %1719 = vmatpush1.xpose.msra.mxu0 0.0
      %1720 = vmatprep.subr.mxu0 0.0
      %1721 = vmatpush1.xpose.msra.mxu0 0.0
      %1722 = vmatprep.subr.mxu0 0.0
      %1723 = vmatpush1.xpose.msra.mxu0 0.0
      %1724 = vmatprep.subr.mxu0 0.0
      %1725 = vmatpush1.xpose.msra.mxu0 0.0
      %1726 = vmatprep.subr.mxu0 0.0
      %1727 = vmatpush1.xpose.msra.mxu0 0.0
      %1728 = vmatprep.mubr.f32.mxu0 0.0
      %1729 = vmatmul.mubr.f32.gmra.mrb[0].mxu0 %v1623
      %v1730 = vpop.f32.mrb[0].mxu0
      %v1731 = vadd.f32 0.0, %v1730
      %v1732 = vpop.f32.mrb[0].mxu0
      %1733 = vmatprep.mubr.f32.mxu0 0.0
      %1734 = vmatmul.mubr.f32.gmra.mrb[0].mxu0 %v1626
      %v1735 = vpop.f32.mrb[0].mxu0
      %v1736 = vadd.f32 0.0, %v1735
      %v1737 = vpop.f32.mrb[0].mxu0
      %1738 = vmatprep.mubr.f32.mxu0 0.0
      %1739 = vmatmul.mubr.f32.gmra.mrb[0].mxu0 %v1629
      %v1740 = vpop.f32.mrb[0].mxu0
      %v1741 = vadd.f32 0.0, %v1740
      %v1742 = vpop.f32.mrb[0].mxu0
      %1743 = vmatprep.mubr.f32.mxu0 0.0
      %1744 = vmatmul.mubr.f32.gmra.mrb[0].mxu0 %v1632
      %v1745 = vpop.f32.mrb[0].mxu0
      %v1746 = vadd.f32 0.0, %v1745
      %v1747 = vpop.f32.mrb[0].mxu0
      %1748 = vmatprep.mubr.f32.mxu0 0.0
      %1749 = vmatmul.mubr.f32.gmra.mrb[0].mxu0 %v1635
      %v1750 = vpop.f32.mrb[0].mxu0
      %v1751 = vadd.f32 0.0, %v1750
      %v1752 = vpop.f32.mrb[0].mxu0
      %1753 = vmatprep.mubr.f32.mxu0 0.0
      %1754 = vmatmul.mubr.f32.gmra.mrb[0].mxu0 %v1638
      %v1755 = vpop.f32.mrb[0].mxu0
      %v1756 = vadd.f32 0.0, %v1755
      %v1757 = vpop.f32.mrb[0].mxu0
      %1758 = vmatprep.mubr.f32.mxu0 0.0
      %1759 = vmatmul.mubr.f32.gmra.mrb[0].mxu0 %v1641
      %v1760 = vpop.f32.mrb[0].mxu0
      %v1761 = vadd.f32 0.0, %v1760
      %v1762 = vpop.f32.mrb[0].mxu0
      %1763 = vdwg.mxu0
      %v1765 = vsel %vm1337, %v1190, 0
      %v1768 = vsel %vm1337, %v1191, 0
      %v1771 = vsel %vm1337, %v1192, 0
      %v1774 = vsel %vm1337, %v1193, 0
      %v1777 = vsel %vm1337, %v1194, 0
      %v1780 = vsel %vm1337, %v1195, 0
      %v1783 = vsel %vm1337, %v1196, 0
      %v1786 = vsel %vm1337, %v1260, 0
      %v1789 = vsel %vm1337, %v1261, 0
      %v1792 = vsel %vm1337, %v1262, 0
      %v1795 = vsel %vm1337, %v1263, 0
      %v1798 = vsel %vm1337, %v1264, 0
      %v1801 = vsel %vm1337, %v1265, 0
      %v1804 = vsel %vm1337, %v1266, 0
      %1806 = vmatprep.subr.mxu0 0.0
      %1807 = vmatpush1.xpose.msra.mxu0 %v1786
      %1808 = vmatprep.subr.mxu0 0.0
      %1809 = vmatpush1.xpose.msra.mxu0 %v1789
      %1810 = vmatprep.subr.mxu0 0.0
      %1811 = vmatpush1.xpose.msra.mxu0 %v1792
      %1812 = vmatprep.subr.mxu0 0.0
      %1813 = vmatpush1.xpose.msra.mxu0 %v1795
      %1814 = vmatprep.subr.mxu0 0.0
      %1815 = vmatpush1.xpose.msra.mxu0 %v1798
      %1816 = vmatprep.subr.mxu0 0.0
      %1817 = vmatpush1.xpose.msra.mxu0 %v1801
      %1818 = vmatprep.subr.mxu0 0.0
      %1819 = vmatpush1.xpose.msra.mxu0 %v1804
      %1820 = vmatprep.subr.mxu0 0.0
      %1821 = vmatpush1.xpose.msra.mxu0 0.0
      %1822 = vmatprep.subr.mxu0 0.0
      %1823 = vmatpush1.xpose.msra.mxu0 0.0
      %1824 = vmatprep.subr.mxu0 0.0
      %1825 = vmatpush1.xpose.msra.mxu0 0.0
      %1826 = vmatprep.subr.mxu0 0.0
      %1827 = vmatpush1.xpose.msra.mxu0 0.0
      %1828 = vmatprep.subr.mxu0 0.0
      %1829 = vmatpush1.xpose.msra.mxu0 0.0
      %1830 = vmatprep.subr.mxu0 0.0
      %1831 = vmatpush1.xpose.msra.mxu0 0.0
      %1832 = vmatprep.subr.mxu0 0.0
      %1833 = vmatpush1.xpose.msra.mxu0 0.0
      %1834 = vmatprep.subr.mxu0 0.0
      %1835 = vmatpush1.xpose.msra.mxu0 0.0
      %1836 = vmatprep.subr.mxu0 0.0
      %1837 = vmatpush1.xpose.msra.mxu0 0.0
      %1838 = vmatprep.subr.mxu0 0.0
      %1839 = vmatpush1.xpose.msra.mxu0 0.0
      %1840 = vmatprep.subr.mxu0 0.0
      %1841 = vmatpush1.xpose.msra.mxu0 0.0
      %1842 = vmatprep.subr.mxu0 0.0
      %1843 = vmatpush1.xpose.msra.mxu0 0.0
      %1844 = vmatprep.subr.mxu0 0.0
      %1845 = vmatpush1.xpose.msra.mxu0 0.0
      %1846 = vmatprep.subr.mxu0 0.0
      %1847 = vmatpush1.xpose.msra.mxu0 0.0
      %1848 = vmatprep.subr.mxu0 0.0
      %1849 = vmatpush1.xpose.msra.mxu0 0.0
      %1850 = vmatprep.subr.mxu0 0.0
      %1851 = vmatpush1.xpose.msra.mxu0 0.0
      %1852 = vmatprep.subr.mxu0 0.0
      %1853 = vmatpush1.xpose.msra.mxu0 0.0
      %1854 = vmatprep.subr.mxu0 0.0
      %1855 = vmatpush1.xpose.msra.mxu0 0.0
      %1856 = vmatprep.subr.mxu0 0.0
      %1857 = vmatpush1.xpose.msra.mxu0 0.0
      %1858 = vmatprep.subr.mxu0 0.0
      %1859 = vmatpush1.xpose.msra.mxu0 0.0
      %1860 = vmatprep.subr.mxu0 0.0
      %1861 = vmatpush1.xpose.msra.mxu0 0.0
      %1862 = vmatprep.subr.mxu0 0.0
      %1863 = vmatpush1.xpose.msra.mxu0 0.0
      %1864 = vmatprep.subr.mxu0 0.0
      %1865 = vmatpush1.xpose.msra.mxu0 0.0
      %1866 = vmatprep.subr.mxu0 0.0
      %1867 = vmatpush1.xpose.msra.mxu0 0.0
      %1868 = vmatprep.subr.mxu0 0.0
      %1869 = vmatpush1.xpose.msra.mxu0 0.0
      %1870 = vmatprep.mubr.f32.mxu0 0.0
      %1871 = vmatmul.mubr.f32.gmra.mrb[0].mxu0 %v1765
      %v1872 = vpop.f32.mrb[0].mxu0
      %v1873 = vadd.f32 0.0, %v1872
      %v1874 = vpop.f32.mrb[0].mxu0
      %1875 = vmatprep.mubr.f32.mxu0 0.0
      %1876 = vmatmul.mubr.f32.gmra.mrb[0].mxu0 %v1768
      %v1877 = vpop.f32.mrb[0].mxu0
      %v1878 = vadd.f32 0.0, %v1877
      %v1879 = vpop.f32.mrb[0].mxu0
      %1880 = vmatprep.mubr.f32.mxu0 0.0
      %1881 = vmatmul.mubr.f32.gmra.mrb[0].mxu0 %v1771
      %v1882 = vpop.f32.mrb[0].mxu0
      %v1883 = vadd.f32 0.0, %v1882
      %v1884 = vpop.f32.mrb[0].mxu0
      %1885 = vmatprep.mubr.f32.mxu0 0.0
      %1886 = vmatmul.mubr.f32.gmra.mrb[0].mxu0 %v1774
      %v1887 = vpop.f32.mrb[0].mxu0
      %v1888 = vadd.f32 0.0, %v1887
      %v1889 = vpop.f32.mrb[0].mxu0
      %1890 = vmatprep.mubr.f32.mxu0 0.0
      %1891 = vmatmul.mubr.f32.gmra.mrb[0].mxu0 %v1777
      %v1892 = vpop.f32.mrb[0].mxu0
      %v1893 = vadd.f32 0.0, %v1892
      %v1894 = vpop.f32.mrb[0].mxu0
      %1895 = vmatprep.mubr.f32.mxu0 0.0
      %1896 = vmatmul.mubr.f32.gmra.mrb[0].mxu0 %v1780
      %v1897 = vpop.f32.mrb[0].mxu0
      %v1898 = vadd.f32 0.0, %v1897
      %v1899 = vpop.f32.mrb[0].mxu0
      %1900 = vmatprep.mubr.f32.mxu0 0.0
      %1901 = vmatmul.mubr.f32.gmra.mrb[0].mxu0 %v1783
      %v1902 = vpop.f32.mrb[0].mxu0
      %v1903 = vadd.f32 0.0, %v1902
      %v1904 = vpop.f32.mrb[0].mxu0
      %1905 = vdwg.mxu0
      %v1906 = vmul.f32 %v1447, 0.17677669
      %v1907 = vmul.f32 %v1452, 0.17677669
      %v1908 = vmul.f32 %v1457, 0.17677669
      %v1909 = vmul.f32 %v1462, 0.17677669
      %v1910 = vmul.f32 %v1467, 0.17677669
      %v1911 = vmul.f32 %v1472, 0.17677669
      %v1912 = vmul.f32 %v1477, 0.17677669
      %v1913 = vmul.f32 %v1589, 0.17677669
      %v1914 = vmul.f32 %v1594, 0.17677669
      %v1915 = vmul.f32 %v1599, 0.17677669
      %v1916 = vmul.f32 %v1604, 0.17677669
      %v1917 = vmul.f32 %v1609, 0.17677669
      %v1918 = vmul.f32 %v1614, 0.17677669
      %v1919 = vmul.f32 %v1619, 0.17677669
      %v1920 = vmul.f32 %v1731, 0.17677669
      %v1921 = vmul.f32 %v1736, 0.17677669
      %v1922 = vmul.f32 %v1741, 0.17677669
      %v1923 = vmul.f32 %v1746, 0.17677669
      %v1924 = vmul.f32 %v1751, 0.17677669
      %v1925 = vmul.f32 %v1756, 0.17677669
      %v1926 = vmul.f32 %v1761, 0.17677669
      %v1927 = vmul.f32 %v1873, 0.17677669
      %v1928 = vmul.f32 %v1878, 0.17677669
      %v1929 = vmul.f32 %v1883, 0.17677669
      %v1930 = vmul.f32 %v1888, 0.17677669
      %v1931 = vmul.f32 %v1893, 0.17677669
      %v1932 = vmul.f32 %v1898, 0.17677669
      %v1933 = vmul.f32 %v1903, 0.17677669
      %vm1934 = vcmask 400384
      %v1935 = vsel %vm1934, %v1906, -inf
      %1936 = vmax.xlane.f32.xlu0 %v1935
      %v1937 = vpop.xlane.xlu0 %1936
      %v1938 = vsel %vm1934, %v1907, -inf
      %1939 = vmax.xlane.f32.xlu0 %v1938
      %v1940 = vpop.xlane.xlu0 %1939
      %v1941 = vsel %vm1934, %v1908, -inf
      %1942 = vmax.xlane.f32.xlu0 %v1941
      %v1943 = vpop.xlane.xlu0 %1942
      %v1944 = vsel %vm1934, %v1909, -inf
      %1945 = vmax.xlane.f32.xlu0 %v1944
      %v1946 = vpop.xlane.xlu0 %1945
      %v1947 = vsel %vm1934, %v1910, -inf
      %1948 = vmax.xlane.f32.xlu0 %v1947
      %v1949 = vpop.xlane.xlu0 %1948
      %v1950 = vsel %vm1934, %v1911, -inf
      %1951 = vmax.xlane.f32.xlu0 %v1950
      %v1952 = vpop.xlane.xlu0 %1951
      %vm1953 = vcmask 393216
      %v1954 = vsel %vm1953, %v1912, -inf
      %1955 = vmax.xlane.f32.xlu0 %v1954
      %v1956 = vpop.xlane.xlu0 %1955
      %v1957 = vsel %vm1934, %v1913, -inf
      %1958 = vmax.xlane.f32.xlu0 %v1957
      %v1959 = vpop.xlane.xlu0 %1958
      %v1960 = vsel %vm1934, %v1914, -inf
      %1961 = vmax.xlane.f32.xlu0 %v1960
      %v1962 = vpop.xlane.xlu0 %1961
      %v1963 = vsel %vm1934, %v1915, -inf
      %1964 = vmax.xlane.f32.xlu0 %v1963
      %v1965 = vpop.xlane.xlu0 %1964
      %v1966 = vsel %vm1934, %v1916, -inf
      %1967 = vmax.xlane.f32.xlu0 %v1966
      %v1968 = vpop.xlane.xlu0 %1967
      %v1969 = vsel %vm1934, %v1917, -inf
      %1970 = vmax.xlane.f32.xlu0 %v1969
      %v1971 = vpop.xlane.xlu0 %1970
      %v1972 = vsel %vm1934, %v1918, -inf
      %1973 = vmax.xlane.f32.xlu0 %v1972
      %v1974 = vpop.xlane.xlu0 %1973
      %v1975 = vsel %vm1953, %v1919, -inf
      %1976 = vmax.xlane.f32.xlu0 %v1975
      %v1977 = vpop.xlane.xlu0 %1976
      %v1978 = vsel %vm1934, %v1920, -inf
      %1979 = vmax.xlane.f32.xlu0 %v1978
      %v1980 = vpop.xlane.xlu0 %1979
      %v1981 = vsel %vm1934, %v1921, -inf
      %1982 = vmax.xlane.f32.xlu0 %v1981
      %v1983 = vpop.xlane.xlu0 %1982
      %v1984 = vsel %vm1934, %v1922, -inf
      %1985 = vmax.xlane.f32.xlu0 %v1984
      %v1986 = vpop.xlane.xlu0 %1985
      %v1987 = vsel %vm1934, %v1923, -inf
      %1988 = vmax.xlane.f32.xlu0 %v1987
      %v1989 = vpop.xlane.xlu0 %1988
      %v1990 = vsel %vm1934, %v1924, -inf
      %1991 = vmax.xlane.f32.xlu0 %v1990
      %v1992 = vpop.xlane.xlu0 %1991
      %v1993 = vsel %vm1934, %v1925, -inf
      %1994 = vmax.xlane.f32.xlu0 %v1993
      %v1995 = vpop.xlane.xlu0 %1994
      %v1996 = vsel %vm1953, %v1926, -inf
      %1997 = vmax.xlane.f32.xlu0 %v1996
      %v1998 = vpop.xlane.xlu0 %1997
      %v1999 = vsel %vm1934, %v1927, -inf
      %2000 = vmax.xlane.f32.xlu0 %v1999
      %v2001 = vpop.xlane.xlu0 %2000
      %v2002 = vsel %vm1934, %v1928, -inf
      %2003 = vmax.xlane.f32.xlu0 %v2002
      %v2004 = vpop.xlane.xlu0 %2003
      %v2005 = vsel %vm1934, %v1929, -inf
      %2006 = vmax.xlane.f32.xlu0 %v2005
      %v2007 = vpop.xlane.xlu0 %2006
      %v2008 = vsel %vm1934, %v1930, -inf
      %2009 = vmax.xlane.f32.xlu0 %v2008
      %v2010 = vpop.xlane.xlu0 %2009
      %v2011 = vsel %vm1934, %v1931, -inf
      %2012 = vmax.xlane.f32.xlu0 %v2011
      %v2013 = vpop.xlane.xlu0 %2012
      %v2014 = vsel %vm1934, %v1932, -inf
      %2015 = vmax.xlane.f32.xlu0 %v2014
      %v2016 = vpop.xlane.xlu0 %2015
      %v2017 = vsel %vm1953, %v1933, -inf
      %2018 = vmax.xlane.f32.xlu0 %v2017
      %v2019 = vpop.xlane.xlu0 %2018
      %v2020 = vsub.f32 %v1906, %v1937
      %v2021 = vsub.f32 %v1907, %v1940
      %v2022 = vsub.f32 %v1908, %v1943
      %v2023 = vsub.f32 %v1909, %v1946
      %v2024 = vsub.f32 %v1910, %v1949
      %v2025 = vsub.f32 %v1911, %v1952
      %v2026 = vsub.f32 %v1912, %v1956
      %v2027 = vsub.f32 %v1913, %v1959
      %v2028 = vsub.f32 %v1914, %v1962
      %v2029 = vsub.f32 %v1915, %v1965
      %v2030 = vsub.f32 %v1916, %v1968
      %v2031 = vsub.f32 %v1917, %v1971
      %v2032 = vsub.f32 %v1918, %v1974
      %v2033 = vsub.f32 %v1919, %v1977
      %v2034 = vsub.f32 %v1920, %v1980
      %v2035 = vsub.f32 %v1921, %v1983
      %v2036 = vsub.f32 %v1922, %v1986
      %v2037 = vsub.f32 %v1923, %v1989
      %v2038 = vsub.f32 %v1924, %v1992
      %v2039 = vsub.f32 %v1925, %v1995
      %v2040 = vsub.f32 %v1926, %v1998
      %v2041 = vsub.f32 %v1927, %v2001
      %v2042 = vsub.f32 %v1928, %v2004
      %v2043 = vsub.f32 %v1929, %v2007
      %v2044 = vsub.f32 %v1930, %v2010
      %v2045 = vsub.f32 %v1931, %v2013
      %v2046 = vsub.f32 %v1932, %v2016
      %v2047 = vsub.f32 %v1933, %v2019
      %v2048 = vmul.f32 %v2020, 1.442695
      %v2049 = vpow.pop %v2048
      %v2050 = vmul.f32 %v2021, 1.442695
      %v2051 = vpow.pop %v2050
      %v2052 = vmul.f32 %v2022, 1.442695
      %v2053 = vpow.pop %v2052
      %v2054 = vmul.f32 %v2023, 1.442695
      %v2055 = vpow.pop %v2054
      %v2056 = vmul.f32 %v2024, 1.442695
      %v2057 = vpow.pop %v2056
      %v2058 = vmul.f32 %v2025, 1.442695
      %v2059 = vpow.pop %v2058
      %v2060 = vmul.f32 %v2026, 1.442695
      %v2061 = vpow.pop %v2060
      %v2062 = vmul.f32 %v2027, 1.442695
      %v2063 = vpow.pop %v2062
      %v2064 = vmul.f32 %v2028, 1.442695
      %v2065 = vpow.pop %v2064
      %v2066 = vmul.f32 %v2029, 1.442695
      %v2067 = vpow.pop %v2066
      %v2068 = vmul.f32 %v2030, 1.442695
      %v2069 = vpow.pop %v2068
      %v2070 = vmul.f32 %v2031, 1.442695
      %v2071 = vpow.pop %v2070
      %v2072 = vmul.f32 %v2032, 1.442695
      %v2073 = vpow.pop %v2072
      %v2074 = vmul.f32 %v2033, 1.442695
      %v2075 = vpow.pop %v2074
      %v2076 = vmul.f32 %v2034, 1.442695
      %v2077 = vpow.pop %v2076
      %v2078 = vmul.f32 %v2035, 1.442695
      %v2079 = vpow.pop %v2078
      %v2080 = vmul.f32 %v2036, 1.442695
      %v2081 = vpow.pop %v2080
      %v2082 = vmul.f32 %v2037, 1.442695
      %v2083 = vpow.pop %v2082
      %v2084 = vmul.f32 %v2038, 1.442695
      %v2085 = vpow.pop %v2084
      %v2086 = vmul.f32 %v2039, 1.442695
      %v2087 = vpow.pop %v2086
      %v2088 = vmul.f32 %v2040, 1.442695
      %v2089 = vpow.pop %v2088
      %v2090 = vmul.f32 %v2041, 1.442695
      %v2091 = vpow.pop %v2090
      %v2092 = vmul.f32 %v2042, 1.442695
      %v2093 = vpow.pop %v2092
      %v2094 = vmul.f32 %v2043, 1.442695
      %v2095 = vpow.pop %v2094
      %v2096 = vmul.f32 %v2044, 1.442695
      %v2097 = vpow.pop %v2096
      %v2098 = vmul.f32 %v2045, 1.442695
      %v2099 = vpow.pop %v2098
      %v2100 = vmul.f32 %v2046, 1.442695
      %v2101 = vpow.pop %v2100
      %v2102 = vmul.f32 %v2047, 1.442695
      %v2103 = vpow.pop %v2102
      %v2104 = vsel %vm1934, %v2049, 0.0
      %2105 = vadd.xlane.f32.xlu0 %v2104
      %v2106 = vpop.xlane.xlu0 %2105
      %v2107 = vsel %vm1934, %v2051, 0.0
      %2108 = vadd.xlane.f32.xlu0 %v2107
      %v2109 = vpop.xlane.xlu0 %2108
      %v2110 = vsel %vm1934, %v2053, 0.0
      %2111 = vadd.xlane.f32.xlu0 %v2110
      %v2112 = vpop.xlane.xlu0 %2111
      %v2113 = vsel %vm1934, %v2055, 0.0
      %2114 = vadd.xlane.f32.xlu0 %v2113
      %v2115 = vpop.xlane.xlu0 %2114
      %v2116 = vsel %vm1934, %v2057, 0.0
      %2117 = vadd.xlane.f32.xlu0 %v2116
      %v2118 = vpop.xlane.xlu0 %2117
      %v2119 = vsel %vm1934, %v2059, 0.0
      %2120 = vadd.xlane.f32.xlu0 %v2119
      %v2121 = vpop.xlane.xlu0 %2120
      %v2122 = vsel %vm1953, %v2061, 0.0
      %2123 = vadd.xlane.f32.xlu0 %v2122
      %v2124 = vpop.xlane.xlu0 %2123
      %v2125 = vsel %vm1934, %v2063, 0.0
      %2126 = vadd.xlane.f32.xlu0 %v2125
      %v2127 = vpop.xlane.xlu0 %2126
      %v2128 = vsel %vm1934, %v2065, 0.0
      %2129 = vadd.xlane.f32.xlu0 %v2128
      %v2130 = vpop.xlane.xlu0 %2129
      %v2131 = vsel %vm1934, %v2067, 0.0
      %2132 = vadd.xlane.f32.xlu0 %v2131
      %v2133 = vpop.xlane.xlu0 %2132
      %v2134 = vsel %vm1934, %v2069, 0.0
      %2135 = vadd.xlane.f32.xlu0 %v2134
      %v2136 = vpop.xlane.xlu0 %2135
      %v2137 = vsel %vm1934, %v2071, 0.0
      %2138 = vadd.xlane.f32.xlu0 %v2137
      %v2139 = vpop.xlane.xlu0 %2138
      %v2140 = vsel %vm1934, %v2073, 0.0
      %2141 = vadd.xlane.f32.xlu0 %v2140
      %v2142 = vpop.xlane.xlu0 %2141
      %v2143 = vsel %vm1953, %v2075, 0.0
      %2144 = vadd.xlane.f32.xlu0 %v2143
      %v2145 = vpop.xlane.xlu0 %2144
      %v2146 = vsel %vm1934, %v2077, 0.0
      %2147 = vadd.xlane.f32.xlu0 %v2146
      %v2148 = vpop.xlane.xlu0 %2147
      %v2149 = vsel %vm1934, %v2079, 0.0
      %2150 = vadd.xlane.f32.xlu0 %v2149
      %v2151 = vpop.xlane.xlu0 %2150
      %v2152 = vsel %vm1934, %v2081, 0.0
      %2153 = vadd.xlane.f32.xlu0 %v2152
      %v2154 = vpop.xlane.xlu0 %2153
      %v2155 = vsel %vm1934, %v2083, 0.0
      %2156 = vadd.xlane.f32.xlu0 %v2155
      %v2157 = vpop.xlane.xlu0 %2156
      %v2158 = vsel %vm1934, %v2085, 0.0
      %2159 = vadd.xlane.f32.xlu0 %v2158
      %v2160 = vpop.xlane.xlu0 %2159
      %v2161 = vsel %vm1934, %v2087, 0.0
      %2162 = vadd.xlane.f32.xlu0 %v2161
      %v2163 = vpop.xlane.xlu0 %2162
      %v2164 = vsel %vm1953, %v2089, 0.0
      %2165 = vadd.xlane.f32.xlu0 %v2164
      %v2166 = vpop.xlane.xlu0 %2165
      %v2167 = vsel %vm1934, %v2091, 0.0
      %2168 = vadd.xlane.f32.xlu0 %v2167
      %v2169 = vpop.xlane.xlu0 %2168
      %v2170 = vsel %vm1934, %v2093, 0.0
      %2171 = vadd.xlane.f32.xlu0 %v2170
      %v2172 = vpop.xlane.xlu0 %2171
      %v2173 = vsel %vm1934, %v2095, 0.0
      %2174 = vadd.xlane.f32.xlu0 %v2173
      %v2175 = vpop.xlane.xlu0 %2174
      %v2176 = vsel %vm1934, %v2097, 0.0
      %2177 = vadd.xlane.f32.xlu0 %v2176
      %v2178 = vpop.xlane.xlu0 %2177
      %v2179 = vsel %vm1934, %v2099, 0.0
      %2180 = vadd.xlane.f32.xlu0 %v2179
      %v2181 = vpop.xlane.xlu0 %2180
      %v2182 = vsel %vm1934, %v2101, 0.0
      %2183 = vadd.xlane.f32.xlu0 %v2182
      %v2184 = vpop.xlane.xlu0 %2183
      %v2185 = vsel %vm1953, %v2103, 0.0
      %2186 = vadd.xlane.f32.xlu0 %v2185
      %v2187 = vpop.xlane.xlu0 %2186
      %v2188 = vrcp.pop %v2106
      %v2189 = vrcp.pop %v2109
      %v2190 = vrcp.pop %v2112
      %v2191 = vrcp.pop %v2115
      %v2192 = vrcp.pop %v2118
      %v2193 = vrcp.pop %v2121
      %v2194 = vrcp.pop %v2124
      %v2195 = vrcp.pop %v2127
      %v2196 = vrcp.pop %v2130
      %v2197 = vrcp.pop %v2133
      %v2198 = vrcp.pop %v2136
      %v2199 = vrcp.pop %v2139
      %v2200 = vrcp.pop %v2142
      %v2201 = vrcp.pop %v2145
      %v2202 = vrcp.pop %v2148
      %v2203 = vrcp.pop %v2151
      %v2204 = vrcp.pop %v2154
      %v2205 = vrcp.pop %v2157
      %v2206 = vrcp.pop %v2160
      %v2207 = vrcp.pop %v2163
      %v2208 = vrcp.pop %v2166
      %v2209 = vrcp.pop %v2169
      %v2210 = vrcp.pop %v2172
      %v2211 = vrcp.pop %v2175
      %v2212 = vrcp.pop %v2178
      %v2213 = vrcp.pop %v2181
      %v2214 = vrcp.pop %v2184
      %v2215 = vrcp.pop %v2187
      %v2216 = vmul.f32 %v2049, %v2188
      %v2217 = vmul.f32 %v2051, %v2189
      %v2218 = vmul.f32 %v2053, %v2190
      %v2219 = vmul.f32 %v2055, %v2191
      %v2220 = vmul.f32 %v2057, %v2192
      %v2221 = vmul.f32 %v2059, %v2193
      %v2222 = vmul.f32 %v2061, %v2194
      %v2223 = vmul.f32 %v2063, %v2195
      %v2224 = vmul.f32 %v2065, %v2196
      %v2225 = vmul.f32 %v2067, %v2197
      %v2226 = vmul.f32 %v2069, %v2198
      %v2227 = vmul.f32 %v2071, %v2199
      %v2228 = vmul.f32 %v2073, %v2200
      %v2229 = vmul.f32 %v2075, %v2201
      %v2230 = vmul.f32 %v2077, %v2202
      %v2231 = vmul.f32 %v2079, %v2203
      %v2232 = vmul.f32 %v2081, %v2204
      %v2233 = vmul.f32 %v2083, %v2205
      %v2234 = vmul.f32 %v2085, %v2206
      %v2235 = vmul.f32 %v2087, %v2207
      %v2236 = vmul.f32 %v2089, %v2208
      %v2237 = vmul.f32 %v2091, %v2209
      %v2238 = vmul.f32 %v2093, %v2210
      %v2239 = vmul.f32 %v2095, %v2211
      %v2240 = vmul.f32 %v2097, %v2212
      %v2241 = vmul.f32 %v2099, %v2213
      %v2242 = vmul.f32 %v2101, %v2214
      %v2243 = vmul.f32 %v2103, %v2215
      %v2245 = vsel %vm1934, %v2216, 0
      %v2248 = vsel %vm1934, %v2217, 0
      %v2251 = vsel %vm1934, %v2218, 0
      %v2254 = vsel %vm1934, %v2219, 0
      %v2257 = vsel %vm1934, %v2220, 0
      %v2260 = vsel %vm1934, %v2221, 0
      %v2263 = vsel %vm1934, %v2222, 0
      %vm2265 = vcmask 1040384
      %v2267 = vsel %vm2265, %v1315, 0
      %2269 = vmatprep.subr.mxu0 0.0
      %2270 = vmatpush1.msra.mxu0 %v1309
      %2271 = vmatprep.subr.mxu0 0.0
      %2272 = vmatpush1.msra.mxu0 %v1310
      %2273 = vmatprep.subr.mxu0 0.0
      %2274 = vmatpush1.msra.mxu0 %v1311
      %2275 = vmatprep.subr.mxu0 0.0
      %2276 = vmatpush1.msra.mxu0 %v1312
      %2277 = vmatprep.subr.mxu0 0.0
      %2278 = vmatpush1.msra.mxu0 %v1313
      %2279 = vmatprep.subr.mxu0 0.0
      %2280 = vmatpush1.msra.mxu0 %v1314
      %2281 = vmatprep.subr.mxu0 0.0
      %2282 = vmatpush1.msra.mxu0 %v2267
      %2283 = vmatprep.subr.mxu0 0.0
      %2284 = vmatpush1.msra.mxu0 0.0
      %2285 = vmatprep.subr.mxu0 0.0
      %2286 = vmatpush1.msra.mxu0 0.0
      %2287 = vmatprep.subr.mxu0 0.0
      %2288 = vmatpush1.msra.mxu0 0.0
      %2289 = vmatprep.subr.mxu0 0.0
      %2290 = vmatpush1.msra.mxu0 0.0
      %2291 = vmatprep.subr.mxu0 0.0
      %2292 = vmatpush1.msra.mxu0 0.0
      %2293 = vmatprep.subr.mxu0 0.0
      %2294 = vmatpush1.msra.mxu0 0.0
      %2295 = vmatprep.subr.mxu0 0.0
      %2296 = vmatpush1.msra.mxu0 0.0
      %2297 = vmatprep.subr.mxu0 0.0
      %2298 = vmatpush1.msra.mxu0 0.0
      %2299 = vmatprep.subr.mxu0 0.0
      %2300 = vmatpush1.msra.mxu0 0.0
      %2301 = vmatprep.subr.mxu0 0.0
      %2302 = vmatpush1.msra.mxu0 0.0
      %2303 = vmatprep.subr.mxu0 0.0
      %2304 = vmatpush1.msra.mxu0 0.0
      %2305 = vmatprep.subr.mxu0 0.0
      %2306 = vmatpush1.msra.mxu0 0.0
      %2307 = vmatprep.subr.mxu0 0.0
      %2308 = vmatpush1.msra.mxu0 0.0
      %2309 = vmatprep.subr.mxu0 0.0
      %2310 = vmatpush1.msra.mxu0 0.0
      %2311 = vmatprep.subr.mxu0 0.0
      %2312 = vmatpush1.msra.mxu0 0.0
      %2313 = vmatprep.subr.mxu0 0.0
      %2314 = vmatpush1.msra.mxu0 0.0
      %2315 = vmatprep.subr.mxu0 0.0
      %2316 = vmatpush1.msra.mxu0 0.0
      %2317 = vmatprep.subr.mxu0 0.0
      %2318 = vmatpush1.msra.mxu0 0.0
      %2319 = vmatprep.subr.mxu0 0.0
      %2320 = vmatpush1.msra.mxu0 0.0
      %2321 = vmatprep.subr.mxu0 0.0
      %2322 = vmatpush1.msra.mxu0 0.0
      %2323 = vmatprep.subr.mxu0 0.0
      %2324 = vmatpush1.msra.mxu0 0.0
      %2325 = vmatprep.subr.mxu0 0.0
      %2326 = vmatpush1.msra.mxu0 0.0
      %2327 = vmatprep.subr.mxu0 0.0
      %2328 = vmatpush1.msra.mxu0 0.0
      %2329 = vmatprep.subr.mxu0 0.0
      %2330 = vmatpush1.msra.mxu0 0.0
      %2331 = vmatprep.subr.mxu0 0.0
      %2332 = vmatpush1.msra.mxu0 0.0
      %2333 = vmatprep.mubr.f32.mxu0 0.0
      %2334 = vmatmul.mubr.f32.gmra.mrb[0].mxu0 %v2245
      %v2335 = vpop.f32.mrb[0].mxu0
      %v2336 = vadd.f32 0.0, %v2335
      %v2337 = vpop.f32.mrb[0].mxu0
      %2338 = vmatprep.mubr.f32.mxu0 0.0
      %2339 = vmatmul.mubr.f32.gmra.mrb[0].mxu0 %v2248
      %v2340 = vpop.f32.mrb[0].mxu0
      %v2341 = vadd.f32 0.0, %v2340
      %v2342 = vpop.f32.mrb[0].mxu0
      %2343 = vmatprep.mubr.f32.mxu0 0.0
      %2344 = vmatmul.mubr.f32.gmra.mrb[0].mxu0 %v2251
      %v2345 = vpop.f32.mrb[0].mxu0
      %v2346 = vadd.f32 0.0, %v2345
      %v2347 = vpop.f32.mrb[0].mxu0
      %2348 = vmatprep.mubr.f32.mxu0 0.0
      %2349 = vmatmul.mubr.f32.gmra.mrb[0].mxu0 %v2254
      %v2350 = vpop.f32.mrb[0].mxu0
      %v2351 = vadd.f32 0.0, %v2350
      %v2352 = vpop.f32.mrb[0].mxu0
      %2353 = vmatprep.mubr.f32.mxu0 0.0
      %2354 = vmatmul.mubr.f32.gmra.mrb[0].mxu0 %v2257
      %v2355 = vpop.f32.mrb[0].mxu0
      %v2356 = vadd.f32 0.0, %v2355
      %v2357 = vpop.f32.mrb[0].mxu0
      %2358 = vmatprep.mubr.f32.mxu0 0.0
      %2359 = vmatmul.mubr.f32.gmra.mrb[0].mxu0 %v2260
      %v2360 = vpop.f32.mrb[0].mxu0
      %v2361 = vadd.f32 0.0, %v2360
      %v2362 = vpop.f32.mrb[0].mxu0
      %2363 = vmatprep.mubr.f32.mxu0 0.0
      %2364 = vmatmul.mubr.f32.gmra.mrb[0].mxu0 %v2263
      %v2365 = vpop.f32.mrb[0].mxu0
      %v2366 = vadd.f32 0.0, %v2365
      %v2367 = vpop.f32.mrb[0].mxu0
      %2368 = vdwg.mxu0
      %v2370 = vsel %vm1934, %v2223, 0
      %v2373 = vsel %vm1934, %v2224, 0
      %v2376 = vsel %vm1934, %v2225, 0
      %v2379 = vsel %vm1934, %v2226, 0
      %v2382 = vsel %vm1934, %v2227, 0
      %v2385 = vsel %vm1934, %v2228, 0
      %v2388 = vsel %vm1934, %v2229, 0
      %v2391 = vsel %vm2265, %v1322, 0
      %2393 = vmatprep.subr.mxu0 0.0
      %2394 = vmatpush1.msra.mxu0 %v1316
      %2395 = vmatprep.subr.mxu0 0.0
      %2396 = vmatpush1.msra.mxu0 %v1317
      %2397 = vmatprep.subr.mxu0 0.0
      %2398 = vmatpush1.msra.mxu0 %v1318
      %2399 = vmatprep.subr.mxu0 0.0
      %2400 = vmatpush1.msra.mxu0 %v1319
      %2401 = vmatprep.subr.mxu0 0.0
      %2402 = vmatpush1.msra.mxu0 %v1320
      %2403 = vmatprep.subr.mxu0 0.0
      %2404 = vmatpush1.msra.mxu0 %v1321
      %2405 = vmatprep.subr.mxu0 0.0
      %2406 = vmatpush1.msra.mxu0 %v2391
      %2407 = vmatprep.subr.mxu0 0.0
      %2408 = vmatpush1.msra.mxu0 0.0
      %2409 = vmatprep.subr.mxu0 0.0
      %2410 = vmatpush1.msra.mxu0 0.0
      %2411 = vmatprep.subr.mxu0 0.0
      %2412 = vmatpush1.msra.mxu0 0.0
      %2413 = vmatprep.subr.mxu0 0.0
      %2414 = vmatpush1.msra.mxu0 0.0
      %2415 = vmatprep.subr.mxu0 0.0
      %2416 = vmatpush1.msra.mxu0 0.0
      %2417 = vmatprep.subr.mxu0 0.0
      %2418 = vmatpush1.msra.mxu0 0.0
      %2419 = vmatprep.subr.mxu0 0.0
      %2420 = vmatpush1.msra.mxu0 0.0
      %2421 = vmatprep.subr.mxu0 0.0
      %2422 = vmatpush1.msra.mxu0 0.0
      %2423 = vmatprep.subr.mxu0 0.0
      %2424 = vmatpush1.msra.mxu0 0.0
      %2425 = vmatprep.subr.mxu0 0.0
      %2426 = vmatpush1.msra.mxu0 0.0
      %2427 = vmatprep.subr.mxu0 0.0
      %2428 = vmatpush1.msra.mxu0 0.0
      %2429 = vmatprep.subr.mxu0 0.0
      %2430 = vmatpush1.msra.mxu0 0.0
      %2431 = vmatprep.subr.mxu0 0.0
      %2432 = vmatpush1.msra.mxu0 0.0
      %2433 = vmatprep.subr.mxu0 0.0
      %2434 = vmatpush1.msra.mxu0 0.0
      %2435 = vmatprep.subr.mxu0 0.0
      %2436 = vmatpush1.msra.mxu0 0.0
      %2437 = vmatprep.subr.mxu0 0.0
      %2438 = vmatpush1.msra.mxu0 0.0
      %2439 = vmatprep.subr.mxu0 0.0
      %2440 = vmatpush1.msra.mxu0 0.0
      %2441 = vmatprep.subr.mxu0 0.0
      %2442 = vmatpush1.msra.mxu0 0.0
      %2443 = vmatprep.subr.mxu0 0.0
      %2444 = vmatpush1.msra.mxu0 0.0
      %2445 = vmatprep.subr.mxu0 0.0
      %2446 = vmatpush1.msra.mxu0 0.0
      %2447 = vmatprep.subr.mxu0 0.0
      %2448 = vmatpush1.msra.mxu0 0.0
      %2449 = vmatprep.subr.mxu0 0.0
      %2450 = vmatpush1.msra.mxu0 0.0
      %2451 = vmatprep.subr.mxu0 0.0
      %2452 = vmatpush1.msra.mxu0 0.0
      %2453 = vmatprep.subr.mxu0 0.0
      %2454 = vmatpush1.msra.mxu0 0.0
      %2455 = vmatprep.subr.mxu0 0.0
      %2456 = vmatpush1.msra.mxu0 0.0
      %2457 = vmatprep.mubr.f32.mxu0 0.0
      %2458 = vmatmul.mubr.f32.gmra.mrb[0].mxu0 %v2370
      %v2459 = vpop.f32.mrb[0].mxu0
      %v2460 = vadd.f32 0.0, %v2459
      %v2461 = vpop.f32.mrb[0].mxu0
      %2462 = vmatprep.mubr.f32.mxu0 0.0
      %2463 = vmatmul.mubr.f32.gmra.mrb[0].mxu0 %v2373
      %v2464 = vpop.f32.mrb[0].mxu0
      %v2465 = vadd.f32 0.0, %v2464
      %v2466 = vpop.f32.mrb[0].mxu0
      %2467 = vmatprep.mubr.f32.mxu0 0.0
      %2468 = vmatmul.mubr.f32.gmra.mrb[0].mxu0 %v2376
      %v2469 = vpop.f32.mrb[0].mxu0
      %v2470 = vadd.f32 0.0, %v2469
      %v2471 = vpop.f32.mrb[0].mxu0
      %2472 = vmatprep.mubr.f32.mxu0 0.0
      %2473 = vmatmul.mubr.f32.gmra.mrb[0].mxu0 %v2379
      %v2474 = vpop.f32.mrb[0].mxu0
      %v2475 = vadd.f32 0.0, %v2474
      %v2476 = vpop.f32.mrb[0].mxu0
      %2477 = vmatprep.mubr.f32.mxu0 0.0
      %2478 = vmatmul.mubr.f32.gmra.mrb[0].mxu0 %v2382
      %v2479 = vpop.f32.mrb[0].mxu0
      %v2480 = vadd.f32 0.0, %v2479
      %v2481 = vpop.f32.mrb[0].mxu0
      %2482 = vmatprep.mubr.f32.mxu0 0.0
      %2483 = vmatmul.mubr.f32.gmra.mrb[0].mxu0 %v2385
      %v2484 = vpop.f32.mrb[0].mxu0
      %v2485 = vadd.f32 0.0, %v2484
      %v2486 = vpop.f32.mrb[0].mxu0
      %2487 = vmatprep.mubr.f32.mxu0 0.0
      %2488 = vmatmul.mubr.f32.gmra.mrb[0].mxu0 %v2388
      %v2489 = vpop.f32.mrb[0].mxu0
      %v2490 = vadd.f32 0.0, %v2489
      %v2491 = vpop.f32.mrb[0].mxu0
      %2492 = vdwg.mxu0
      %v2494 = vsel %vm1934, %v2230, 0
      %v2497 = vsel %vm1934, %v2231, 0
      %v2500 = vsel %vm1934, %v2232, 0
      %v2503 = vsel %vm1934, %v2233, 0
      %v2506 = vsel %vm1934, %v2234, 0
      %v2509 = vsel %vm1934, %v2235, 0
      %v2512 = vsel %vm1934, %v2236, 0
      %v2515 = vsel %vm2265, %v1329, 0
      %2517 = vmatprep.subr.mxu0 0.0
      %2518 = vmatpush1.msra.mxu0 %v1323
      %2519 = vmatprep.subr.mxu0 0.0
      %2520 = vmatpush1.msra.mxu0 %v1324
      %2521 = vmatprep.subr.mxu0 0.0
      %2522 = vmatpush1.msra.mxu0 %v1325
      %2523 = vmatprep.subr.mxu0 0.0
      %2524 = vmatpush1.msra.mxu0 %v1326
      %2525 = vmatprep.subr.mxu0 0.0
      %2526 = vmatpush1.msra.mxu0 %v1327
      %2527 = vmatprep.subr.mxu0 0.0
      %2528 = vmatpush1.msra.mxu0 %v1328
      %2529 = vmatprep.subr.mxu0 0.0
      %2530 = vmatpush1.msra.mxu0 %v2515
      %2531 = vmatprep.subr.mxu0 0.0
      %2532 = vmatpush1.msra.mxu0 0.0
      %2533 = vmatprep.subr.mxu0 0.0
      %2534 = vmatpush1.msra.mxu0 0.0
      %2535 = vmatprep.subr.mxu0 0.0
      %2536 = vmatpush1.msra.mxu0 0.0
      %2537 = vmatprep.subr.mxu0 0.0
      %2538 = vmatpush1.msra.mxu0 0.0
      %2539 = vmatprep.subr.mxu0 0.0
      %2540 = vmatpush1.msra.mxu0 0.0
      %2541 = vmatprep.subr.mxu0 0.0
      %2542 = vmatpush1.msra.mxu0 0.0
      %2543 = vmatprep.subr.mxu0 0.0
      %2544 = vmatpush1.msra.mxu0 0.0
      %2545 = vmatprep.subr.mxu0 0.0
      %2546 = vmatpush1.msra.mxu0 0.0
      %2547 = vmatprep.subr.mxu0 0.0
      %2548 = vmatpush1.msra.mxu0 0.0
      %2549 = vmatprep.subr.mxu0 0.0
      %2550 = vmatpush1.msra.mxu0 0.0
      %2551 = vmatprep.subr.mxu0 0.0
      %2552 = vmatpush1.msra.mxu0 0.0
      %2553 = vmatprep.subr.mxu0 0.0
      %2554 = vmatpush1.msra.mxu0 0.0
      %2555 = vmatprep.subr.mxu0 0.0
      %2556 = vmatpush1.msra.mxu0 0.0
      %2557 = vmatprep.subr.mxu0 0.0
      %2558 = vmatpush1.msra.mxu0 0.0
      %2559 = vmatprep.subr.mxu0 0.0
      %2560 = vmatpush1.msra.mxu0 0.0
      %2561 = vmatprep.subr.mxu0 0.0
      %2562 = vmatpush1.msra.mxu0 0.0
      %2563 = vmatprep.subr.mxu0 0.0
      %2564 = vmatpush1.msra.mxu0 0.0
      %2565 = vmatprep.subr.mxu0 0.0
      %2566 = vmatpush1.msra.mxu0 0.0
      %2567 = vmatprep.subr.mxu0 0.0
      %2568 = vmatpush1.msra.mxu0 0.0
      %2569 = vmatprep.subr.mxu0 0.0
      %2570 = vmatpush1.msra.mxu0 0.0
      %2571 = vmatprep.subr.mxu0 0.0
      %2572 = vmatpush1.msra.mxu0 0.0
      %2573 = vmatprep.subr.mxu0 0.0
      %2574 = vmatpush1.msra.mxu0 0.0
      %2575 = vmatprep.subr.mxu0 0.0
      %2576 = vmatpush1.msra.mxu0 0.0
      %2577 = vmatprep.subr.mxu0 0.0
      %2578 = vmatpush1.msra.mxu0 0.0
      %2579 = vmatprep.subr.mxu0 0.0
      %2580 = vmatpush1.msra.mxu0 0.0
      %2581 = vmatprep.mubr.f32.mxu0 0.0
      %2582 = vmatmul.mubr.f32.gmra.mrb[0].mxu0 %v2494
      %v2583 = vpop.f32.mrb[0].mxu0
      %v2584 = vadd.f32 0.0, %v2583
      %v2585 = vpop.f32.mrb[0].mxu0
      %2586 = vmatprep.mubr.f32.mxu0 0.0
      %2587 = vmatmul.mubr.f32.gmra.mrb[0].mxu0 %v2497
      %v2588 = vpop.f32.mrb[0].mxu0
      %v2589 = vadd.f32 0.0, %v2588
      %v2590 = vpop.f32.mrb[0].mxu0
      %2591 = vmatprep.mubr.f32.mxu0 0.0
      %2592 = vmatmul.mubr.f32.gmra.mrb[0].mxu0 %v2500
      %v2593 = vpop.f32.mrb[0].mxu0
      %v2594 = vadd.f32 0.0, %v2593
      %v2595 = vpop.f32.mrb[0].mxu0
      %2596 = vmatprep.mubr.f32.mxu0 0.0
      %2597 = vmatmul.mubr.f32.gmra.mrb[0].mxu0 %v2503
      %v2598 = vpop.f32.mrb[0].mxu0
      %v2599 = vadd.f32 0.0, %v2598
      %v2600 = vpop.f32.mrb[0].mxu0
      %2601 = vmatprep.mubr.f32.mxu0 0.0
      %2602 = vmatmul.mubr.f32.gmra.mrb[0].mxu0 %v2506
      %v2603 = vpop.f32.mrb[0].mxu0
      %v2604 = vadd.f32 0.0, %v2603
      %v2605 = vpop.f32.mrb[0].mxu0
      %2606 = vmatprep.mubr.f32.mxu0 0.0
      %2607 = vmatmul.mubr.f32.gmra.mrb[0].mxu0 %v2509
      %v2608 = vpop.f32.mrb[0].mxu0
      %v2609 = vadd.f32 0.0, %v2608
      %v2610 = vpop.f32.mrb[0].mxu0
      %2611 = vmatprep.mubr.f32.mxu0 0.0
      %2612 = vmatmul.mubr.f32.gmra.mrb[0].mxu0 %v2512
      %v2613 = vpop.f32.mrb[0].mxu0
      %v2614 = vadd.f32 0.0, %v2613
      %v2615 = vpop.f32.mrb[0].mxu0
      %2616 = vdwg.mxu0
      %v2618 = vsel %vm1934, %v2237, 0
      %v2621 = vsel %vm1934, %v2238, 0
      %v2624 = vsel %vm1934, %v2239, 0
      %v2627 = vsel %vm1934, %v2240, 0
      %v2630 = vsel %vm1934, %v2241, 0
      %v2633 = vsel %vm1934, %v2242, 0
      %v2636 = vsel %vm1934, %v2243, 0
      %v2639 = vsel %vm2265, %v1336, 0
      %2641 = vmatprep.subr.mxu0 0.0
      %2642 = vmatpush1.msra.mxu0 %v1330
      %2643 = vmatprep.subr.mxu0 0.0
      %2644 = vmatpush1.msra.mxu0 %v1331
      %2645 = vmatprep.subr.mxu0 0.0
      %2646 = vmatpush1.msra.mxu0 %v1332
      %2647 = vmatprep.subr.mxu0 0.0
      %2648 = vmatpush1.msra.mxu0 %v1333
      %2649 = vmatprep.subr.mxu0 0.0
      %2650 = vmatpush1.msra.mxu0 %v1334
      %2651 = vmatprep.subr.mxu0 0.0
      %2652 = vmatpush1.msra.mxu0 %v1335
      %2653 = vmatprep.subr.mxu0 0.0
      %2654 = vmatpush1.msra.mxu0 %v2639
      %2655 = vmatprep.subr.mxu0 0.0
      %2656 = vmatpush1.msra.mxu0 0.0
      %2657 = vmatprep.subr.mxu0 0.0
      %2658 = vmatpush1.msra.mxu0 0.0
      %2659 = vmatprep.subr.mxu0 0.0
      %2660 = vmatpush1.msra.mxu0 0.0
      %2661 = vmatprep.subr.mxu0 0.0
      %2662 = vmatpush1.msra.mxu0 0.0
      %2663 = vmatprep.subr.mxu0 0.0
      %2664 = vmatpush1.msra.mxu0 0.0
      %2665 = vmatprep.subr.mxu0 0.0
      %2666 = vmatpush1.msra.mxu0 0.0
      %2667 = vmatprep.subr.mxu0 0.0
      %2668 = vmatpush1.msra.mxu0 0.0
      %2669 = vmatprep.subr.mxu0 0.0
      %2670 = vmatpush1.msra.mxu0 0.0
      %2671 = vmatprep.subr.mxu0 0.0
      %2672 = vmatpush1.msra.mxu0 0.0
      %2673 = vmatprep.subr.mxu0 0.0
      %2674 = vmatpush1.msra.mxu0 0.0
      %2675 = vmatprep.subr.mxu0 0.0
      %2676 = vmatpush1.msra.mxu0 0.0
      %2677 = vmatprep.subr.mxu0 0.0
      %2678 = vmatpush1.msra.mxu0 0.0
      %2679 = vmatprep.subr.mxu0 0.0
      %2680 = vmatpush1.msra.mxu0 0.0
      %2681 = vmatprep.subr.mxu0 0.0
      %2682 = vmatpush1.msra.mxu0 0.0
      %2683 = vmatprep.subr.mxu0 0.0
      %2684 = vmatpush1.msra.mxu0 0.0
      %2685 = vmatprep.subr.mxu0 0.0
      %2686 = vmatpush1.msra.mxu0 0.0
      %2687 = vmatprep.subr.mxu0 0.0
      %2688 = vmatpush1.msra.mxu0 0.0
      %2689 = vmatprep.subr.mxu0 0.0
      %2690 = vmatpush1.msra.mxu0 0.0
      %2691 = vmatprep.subr.mxu0 0.0
      %2692 = vmatpush1.msra.mxu0 0.0
      %2693 = vmatprep.subr.mxu0 0.0
      %2694 = vmatpush1.msra.mxu0 0.0
      %2695 = vmatprep.subr.mxu0 0.0
      %2696 = vmatpush1.msra.mxu0 0.0
      %2697 = vmatprep.subr.mxu0 0.0
      %2698 = vmatpush1.msra.mxu0 0.0
      %2699 = vmatprep.subr.mxu0 0.0
      %2700 = vmatpush1.msra.mxu0 0.0
      %2701 = vmatprep.subr.mxu0 0.0
      %2702 = vmatpush1.msra.mxu0 0.0
      %2703 = vmatprep.subr.mxu0 0.0
      %2704 = vmatpush1.msra.mxu0 0.0
      %2705 = vmatprep.mubr.f32.mxu0 0.0
      %2706 = vmatmul.mubr.f32.gmra.mrb[0].mxu0 %v2618
      %v2707 = vpop.f32.mrb[0].mxu0
      %v2708 = vadd.f32 0.0, %v2707
      %v2709 = vpop.f32.mrb[0].mxu0
      %2710 = vmatprep.mubr.f32.mxu0 0.0
      %2711 = vmatmul.mubr.f32.gmra.mrb[0].mxu0 %v2621
      %v2712 = vpop.f32.mrb[0].mxu0
      %v2713 = vadd.f32 0.0, %v2712
      %v2714 = vpop.f32.mrb[0].mxu0
      %2715 = vmatprep.mubr.f32.mxu0 0.0
      %2716 = vmatmul.mubr.f32.gmra.mrb[0].mxu0 %v2624
      %v2717 = vpop.f32.mrb[0].mxu0
      %v2718 = vadd.f32 0.0, %v2717
      %v2719 = vpop.f32.mrb[0].mxu0
      %2720 = vmatprep.mubr.f32.mxu0 0.0
      %2721 = vmatmul.mubr.f32.gmra.mrb[0].mxu0 %v2627
      %v2722 = vpop.f32.mrb[0].mxu0
      %v2723 = vadd.f32 0.0, %v2722
      %v2724 = vpop.f32.mrb[0].mxu0
      %2725 = vmatprep.mubr.f32.mxu0 0.0
      %2726 = vmatmul.mubr.f32.gmra.mrb[0].mxu0 %v2630
      %v2727 = vpop.f32.mrb[0].mxu0
      %v2728 = vadd.f32 0.0, %v2727
      %v2729 = vpop.f32.mrb[0].mxu0
      %2730 = vmatprep.mubr.f32.mxu0 0.0
      %2731 = vmatmul.mubr.f32.gmra.mrb[0].mxu0 %v2633
      %v2732 = vpop.f32.mrb[0].mxu0
      %v2733 = vadd.f32 0.0, %v2732
      %v2734 = vpop.f32.mrb[0].mxu0
      %2735 = vmatprep.mubr.f32.mxu0 0.0
      %2736 = vmatmul.mubr.f32.gmra.mrb[0].mxu0 %v2636
      %v2737 = vpop.f32.mrb[0].mxu0
      %v2738 = vadd.f32 0.0, %v2737
      %v2739 = vpop.f32.mrb[0].mxu0
      %2740 = vdwg.mxu0
      %2741 = vrot.lane.b32.xlu0 %v1169, 96
      %v2742 = vpop.permute.xlu0 %2741
      %2743 = vrot.lane.b32.xlu0 %v1170, 96
      %v2744 = vpop.permute.xlu0 %2743
      %2745 = vrot.lane.b32.xlu0 %v1171, 96
      %v2746 = vpop.permute.xlu0 %2745
      %2747 = vrot.lane.b32.xlu0 %v1172, 96
      %v2748 = vpop.permute.xlu0 %2747
      %2749 = vrot.lane.b32.xlu0 %v1173, 96
      %v2750 = vpop.permute.xlu0 %2749
      %2751 = vrot.lane.b32.xlu0 %v1174, 96
      %v2752 = vpop.permute.xlu0 %2751
      %2753 = vrot.lane.b32.xlu0 %v1175, 96
      %v2754 = vpop.permute.xlu0 %2753
      %2755 = vrot.lane.b32.xlu0 %v1239, 96
      %v2756 = vpop.permute.xlu0 %2755
      %2757 = vrot.lane.b32.xlu0 %v1240, 96
      %v2758 = vpop.permute.xlu0 %2757
      %2759 = vrot.lane.b32.xlu0 %v1241, 96
      %v2760 = vpop.permute.xlu0 %2759
      %2761 = vrot.lane.b32.xlu0 %v1242, 96
      %v2762 = vpop.permute.xlu0 %2761
      %2763 = vrot.lane.b32.xlu0 %v1243, 96
      %v2764 = vpop.permute.xlu0 %2763
      %2765 = vrot.lane.b32.xlu0 %v1244, 96
      %v2766 = vpop.permute.xlu0 %2765
      %2767 = vrot.lane.b32.xlu0 %v1245, 96
      %v2768 = vpop.permute.xlu0 %2767
      %v2769 = vsel %vm1337, %v2742, 0
      %v2771 = vsel %vm1337, %v2744, 0
      %v2773 = vsel %vm1337, %v2746, 0
      %v2775 = vsel %vm1337, %v2748, 0
      %v2777 = vsel %vm1337, %v2750, 0
      %v2779 = vsel %vm1337, %v2752, 0
      %v2781 = vsel %vm1337, %v2754, 0
      %v2783 = vsel %vm1337, %v2756, 0
      %v2785 = vsel %vm1337, %v2758, 0
      %v2787 = vsel %vm1337, %v2760, 0
      %v2789 = vsel %vm1337, %v2762, 0
      %v2791 = vsel %vm1337, %v2764, 0
      %v2793 = vsel %vm1337, %v2766, 0
      %v2795 = vsel %vm1337, %v2768, 0
      %2797 = vmatprep.subr.mxu0 0.0
      %2798 = vmatpush1.xpose.msra.mxu0 %v2783
      %2799 = vmatprep.subr.mxu0 0.0
      %2800 = vmatpush1.xpose.msra.mxu0 %v2785
      %2801 = vmatprep.subr.mxu0 0.0
      %2802 = vmatpush1.xpose.msra.mxu0 %v2787
      %2803 = vmatprep.subr.mxu0 0.0
      %2804 = vmatpush1.xpose.msra.mxu0 %v2789
      %2805 = vmatprep.subr.mxu0 0.0
      %2806 = vmatpush1.xpose.msra.mxu0 %v2791
      %2807 = vmatprep.subr.mxu0 0.0
      %2808 = vmatpush1.xpose.msra.mxu0 %v2793
      %2809 = vmatprep.subr.mxu0 0.0
      %2810 = vmatpush1.xpose.msra.mxu0 %v2795
      %2811 = vmatprep.subr.mxu0 0.0
      %2812 = vmatpush1.xpose.msra.mxu0 0.0
      %2813 = vmatprep.subr.mxu0 0.0
      %2814 = vmatpush1.xpose.msra.mxu0 0.0
      %2815 = vmatprep.subr.mxu0 0.0
      %2816 = vmatpush1.xpose.msra.mxu0 0.0
      %2817 = vmatprep.subr.mxu0 0.0
      %2818 = vmatpush1.xpose.msra.mxu0 0.0
      %2819 = vmatprep.subr.mxu0 0.0
      %2820 = vmatpush1.xpose.msra.mxu0 0.0
      %2821 = vmatprep.subr.mxu0 0.0
      %2822 = vmatpush1.xpose.msra.mxu0 0.0
      %2823 = vmatprep.subr.mxu0 0.0
      %2824 = vmatpush1.xpose.msra.mxu0 0.0
      %2825 = vmatprep.subr.mxu0 0.0
      %2826 = vmatpush1.xpose.msra.mxu0 0.0
      %2827 = vmatprep.subr.mxu0 0.0
      %2828 = vmatpush1.xpose.msra.mxu0 0.0
      %2829 = vmatprep.subr.mxu0 0.0
      %2830 = vmatpush1.xpose.msra.mxu0 0.0
      %2831 = vmatprep.subr.mxu0 0.0
      %2832 = vmatpush1.xpose.msra.mxu0 0.0
      %2833 = vmatprep.subr.mxu0 0.0
      %2834 = vmatpush1.xpose.msra.mxu0 0.0
      %2835 = vmatprep.subr.mxu0 0.0
      %2836 = vmatpush1.xpose.msra.mxu0 0.0
      %2837 = vmatprep.subr.mxu0 0.0
      %2838 = vmatpush1.xpose.msra.mxu0 0.0
      %2839 = vmatprep.subr.mxu0 0.0
      %2840 = vmatpush1.xpose.msra.mxu0 0.0
      %2841 = vmatprep.subr.mxu0 0.0
      %2842 = vmatpush1.xpose.msra.mxu0 0.0
      %2843 = vmatprep.subr.mxu0 0.0
      %2844 = vmatpush1.xpose.msra.mxu0 0.0
      %2845 = vmatprep.subr.mxu0 0.0
      %2846 = vmatpush1.xpose.msra.mxu0 0.0
      %2847 = vmatprep.subr.mxu0 0.0
      %2848 = vmatpush1.xpose.msra.mxu0 0.0
      %2849 = vmatprep.subr.mxu0 0.0
      %2850 = vmatpush1.xpose.msra.mxu0 0.0
      %2851 = vmatprep.subr.mxu0 0.0
      %2852 = vmatpush1.xpose.msra.mxu0 0.0
      %2853 = vmatprep.subr.mxu0 0.0
      %2854 = vmatpush1.xpose.msra.mxu0 0.0
      %2855 = vmatprep.subr.mxu0 0.0
      %2856 = vmatpush1.xpose.msra.mxu0 0.0
      %2857 = vmatprep.subr.mxu0 0.0
      %2858 = vmatpush1.xpose.msra.mxu0 0.0
      %2859 = vmatprep.subr.mxu0 0.0
      %2860 = vmatpush1.xpose.msra.mxu0 0.0
      %2861 = vmatprep.mubr.f32.mxu0 0.0
      %2862 = vmatmul.mubr.f32.gmra.mrb[0].mxu0 %v2769
      %v2863 = vpop.f32.mrb[0].mxu0
      %v2864 = vadd.f32 0.0, %v2863
      %v2865 = vpop.f32.mrb[0].mxu0
      %2866 = vmatprep.mubr.f32.mxu0 0.0
      %2867 = vmatmul.mubr.f32.gmra.mrb[0].mxu0 %v2771
      %v2868 = vpop.f32.mrb[0].mxu0
      %v2869 = vadd.f32 0.0, %v2868
      %v2870 = vpop.f32.mrb[0].mxu0
      %2871 = vmatprep.mubr.f32.mxu0 0.0
      %2872 = vmatmul.mubr.f32.gmra.mrb[0].mxu0 %v2773
      %v2873 = vpop.f32.mrb[0].mxu0
      %v2874 = vadd.f32 0.0, %v2873
      %v2875 = vpop.f32.mrb[0].mxu0
      %2876 = vmatprep.mubr.f32.mxu0 0.0
      %2877 = vmatmul.mubr.f32.gmra.mrb[0].mxu0 %v2775
      %v2878 = vpop.f32.mrb[0].mxu0
      %v2879 = vadd.f32 0.0, %v2878
      %v2880 = vpop.f32.mrb[0].mxu0
      %2881 = vmatprep.mubr.f32.mxu0 0.0
      %2882 = vmatmul.mubr.f32.gmra.mrb[0].mxu0 %v2777
      %v2883 = vpop.f32.mrb[0].mxu0
      %v2884 = vadd.f32 0.0, %v2883
      %v2885 = vpop.f32.mrb[0].mxu0
      %2886 = vmatprep.mubr.f32.mxu0 0.0
      %2887 = vmatmul.mubr.f32.gmra.mrb[0].mxu0 %v2779
      %v2888 = vpop.f32.mrb[0].mxu0
      %v2889 = vadd.f32 0.0, %v2888
      %v2890 = vpop.f32.mrb[0].mxu0
      %2891 = vmatprep.mubr.f32.mxu0 0.0
      %2892 = vmatmul.mubr.f32.gmra.mrb[0].mxu0 %v2781
      %v2893 = vpop.f32.mrb[0].mxu0
      %v2894 = vadd.f32 0.0, %v2893
      %v2895 = vpop.f32.mrb[0].mxu0
      %2896 = vdwg.mxu0
      %2897 = vrot.lane.b32.xlu0 %v1176, 96
      %v2898 = vpop.permute.xlu0 %2897
      %2899 = vrot.lane.b32.xlu0 %v1177, 96
      %v2900 = vpop.permute.xlu0 %2899
      %2901 = vrot.lane.b32.xlu0 %v1178, 96
      %v2902 = vpop.permute.xlu0 %2901
      %2903 = vrot.lane.b32.xlu0 %v1179, 96
      %v2904 = vpop.permute.xlu0 %2903
      %2905 = vrot.lane.b32.xlu0 %v1180, 96
      %v2906 = vpop.permute.xlu0 %2905
      %2907 = vrot.lane.b32.xlu0 %v1181, 96
      %v2908 = vpop.permute.xlu0 %2907
      %2909 = vrot.lane.b32.xlu0 %v1182, 96
      %v2910 = vpop.permute.xlu0 %2909
      %2911 = vrot.lane.b32.xlu0 %v1246, 96
      %v2912 = vpop.permute.xlu0 %2911
      %2913 = vrot.lane.b32.xlu0 %v1247, 96
      %v2914 = vpop.permute.xlu0 %2913
      %2915 = vrot.lane.b32.xlu0 %v1248, 96
      %v2916 = vpop.permute.xlu0 %2915
      %2917 = vrot.lane.b32.xlu0 %v1249, 96
      %v2918 = vpop.permute.xlu0 %2917
      %2919 = vrot.lane.b32.xlu0 %v1250, 96
      %v2920 = vpop.permute.xlu0 %2919
      %2921 = vrot.lane.b32.xlu0 %v1251, 96
      %v2922 = vpop.permute.xlu0 %2921
      %2923 = vrot.lane.b32.xlu0 %v1252, 96
      %v2924 = vpop.permute.xlu0 %2923
      %v2925 = vsel %vm1337, %v2898, 0
      %v2927 = vsel %vm1337, %v2900, 0
      %v2929 = vsel %vm1337, %v2902, 0
      %v2931 = vsel %vm1337, %v2904, 0
      %v2933 = vsel %vm1337, %v2906, 0
      %v2935 = vsel %vm1337, %v2908, 0
      %v2937 = vsel %vm1337, %v2910, 0
      %v2939 = vsel %vm1337, %v2912, 0
      %v2941 = vsel %vm1337, %v2914, 0
      %v2943 = vsel %vm1337, %v2916, 0
      %v2945 = vsel %vm1337, %v2918, 0
      %v2947 = vsel %vm1337, %v2920, 0
      %v2949 = vsel %vm1337, %v2922, 0
      %v2951 = vsel %vm1337, %v2924, 0
      %2953 = vmatprep.subr.mxu0 0.0
      %2954 = vmatpush1.xpose.msra.mxu0 %v2939
      %2955 = vmatprep.subr.mxu0 0.0
      %2956 = vmatpush1.xpose.msra.mxu0 %v2941
      %2957 = vmatprep.subr.mxu0 0.0
      %2958 = vmatpush1.xpose.msra.mxu0 %v2943
      %2959 = vmatprep.subr.mxu0 0.0
      %2960 = vmatpush1.xpose.msra.mxu0 %v2945
      %2961 = vmatprep.subr.mxu0 0.0
      %2962 = vmatpush1.xpose.msra.mxu0 %v2947
      %2963 = vmatprep.subr.mxu0 0.0
      %2964 = vmatpush1.xpose.msra.mxu0 %v2949
      %2965 = vmatprep.subr.mxu0 0.0
      %2966 = vmatpush1.xpose.msra.mxu0 %v2951
      %2967 = vmatprep.subr.mxu0 0.0
      %2968 = vmatpush1.xpose.msra.mxu0 0.0
      %2969 = vmatprep.subr.mxu0 0.0
      %2970 = vmatpush1.xpose.msra.mxu0 0.0
      %2971 = vmatprep.subr.mxu0 0.0
      %2972 = vmatpush1.xpose.msra.mxu0 0.0
      %2973 = vmatprep.subr.mxu0 0.0
      %2974 = vmatpush1.xpose.msra.mxu0 0.0
      %2975 = vmatprep.subr.mxu0 0.0
      %2976 = vmatpush1.xpose.msra.mxu0 0.0
      %2977 = vmatprep.subr.mxu0 0.0
      %2978 = vmatpush1.xpose.msra.mxu0 0.0
      %2979 = vmatprep.subr.mxu0 0.0
      %2980 = vmatpush1.xpose.msra.mxu0 0.0
      %2981 = vmatprep.subr.mxu0 0.0
      %2982 = vmatpush1.xpose.msra.mxu0 0.0
      %2983 = vmatprep.subr.mxu0 0.0
      %2984 = vmatpush1.xpose.msra.mxu0 0.0
      %2985 = vmatprep.subr.mxu0 0.0
      %2986 = vmatpush1.xpose.msra.mxu0 0.0
      %2987 = vmatprep.subr.mxu0 0.0
      %2988 = vmatpush1.xpose.msra.mxu0 0.0
      %2989 = vmatprep.subr.mxu0 0.0
      %2990 = vmatpush1.xpose.msra.mxu0 0.0
      %2991 = vmatprep.subr.mxu0 0.0
      %2992 = vmatpush1.xpose.msra.mxu0 0.0
      %2993 = vmatprep.subr.mxu0 0.0
      %2994 = vmatpush1.xpose.msra.mxu0 0.0
      %2995 = vmatprep.subr.mxu0 0.0
      %2996 = vmatpush1.xpose.msra.mxu0 0.0
      %2997 = vmatprep.subr.mxu0 0.0
      %2998 = vmatpush1.xpose.msra.mxu0 0.0
      %2999 = vmatprep.subr.mxu0 0.0
      %3000 = vmatpush1.xpose.msra.mxu0 0.0
      %3001 = vmatprep.subr.mxu0 0.0
      %3002 = vmatpush1.xpose.msra.mxu0 0.0
      %3003 = vmatprep.subr.mxu0 0.0
      %3004 = vmatpush1.xpose.msra.mxu0 0.0
      %3005 = vmatprep.subr.mxu0 0.0
      %3006 = vmatpush1.xpose.msra.mxu0 0.0
      %3007 = vmatprep.subr.mxu0 0.0
      %3008 = vmatpush1.xpose.msra.mxu0 0.0
      %3009 = vmatprep.subr.mxu0 0.0
      %3010 = vmatpush1.xpose.msra.mxu0 0.0
      %3011 = vmatprep.subr.mxu0 0.0
      %3012 = vmatpush1.xpose.msra.mxu0 0.0
      %3013 = vmatprep.subr.mxu0 0.0
      %3014 = vmatpush1.xpose.msra.mxu0 0.0
      %3015 = vmatprep.subr.mxu0 0.0
      %3016 = vmatpush1.xpose.msra.mxu0 0.0
      %3017 = vmatprep.mubr.f32.mxu0 0.0
      %3018 = vmatmul.mubr.f32.gmra.mrb[0].mxu0 %v2925
      %v3019 = vpop.f32.mrb[0].mxu0
      %v3020 = vadd.f32 0.0, %v3019
      %v3021 = vpop.f32.mrb[0].mxu0
      %3022 = vmatprep.mubr.f32.mxu0 0.0
      %3023 = vmatmul.mubr.f32.gmra.mrb[0].mxu0 %v2927
      %v3024 = vpop.f32.mrb[0].mxu0
      %v3025 = vadd.f32 0.0, %v3024
      %v3026 = vpop.f32.mrb[0].mxu0
      %3027 = vmatprep.mubr.f32.mxu0 0.0
      %3028 = vmatmul.mubr.f32.gmra.mrb[0].mxu0 %v2929
      %v3029 = vpop.f32.mrb[0].mxu0
      %v3030 = vadd.f32 0.0, %v3029
      %v3031 = vpop.f32.mrb[0].mxu0
      %3032 = vmatprep.mubr.f32.mxu0 0.0
      %3033 = vmatmul.mubr.f32.gmra.mrb[0].mxu0 %v2931
      %v3034 = vpop.f32.mrb[0].mxu0
      %v3035 = vadd.f32 0.0, %v3034
      %v3036 = vpop.f32.mrb[0].mxu0
      %3037 = vmatprep.mubr.f32.mxu0 0.0
      %3038 = vmatmul.mubr.f32.gmra.mrb[0].mxu0 %v2933
      %v3039 = vpop.f32.mrb[0].mxu0
      %v3040 = vadd.f32 0.0, %v3039
      %v3041 = vpop.f32.mrb[0].mxu0
      %3042 = vmatprep.mubr.f32.mxu0 0.0
      %3043 = vmatmul.mubr.f32.gmra.mrb[0].mxu0 %v2935
      %v3044 = vpop.f32.mrb[0].mxu0
      %v3045 = vadd.f32 0.0, %v3044
      %v3046 = vpop.f32.mrb[0].mxu0
      %3047 = vmatprep.mubr.f32.mxu0 0.0
      %3048 = vmatmul.mubr.f32.gmra.mrb[0].mxu0 %v2937
      %v3049 = vpop.f32.mrb[0].mxu0
      %v3050 = vadd.f32 0.0, %v3049
      %v3051 = vpop.f32.mrb[0].mxu0
      %3052 = vdwg.mxu0
      %3053 = vrot.lane.b32.xlu0 %v1183, 96
      %v3054 = vpop.permute.xlu0 %3053
      %3055 = vrot.lane.b32.xlu0 %v1184, 96
      %v3056 = vpop.permute.xlu0 %3055
      %3057 = vrot.lane.b32.xlu0 %v1185, 96
      %v3058 = vpop.permute.xlu0 %3057
      %3059 = vrot.lane.b32.xlu0 %v1186, 96
      %v3060 = vpop.permute.xlu0 %3059
      %3061 = vrot.lane.b32.xlu0 %v1187, 96
      %v3062 = vpop.permute.xlu0 %3061
      %3063 = vrot.lane.b32.xlu0 %v1188, 96
      %v3064 = vpop.permute.xlu0 %3063
      %3065 = vrot.lane.b32.xlu0 %v1189, 96
      %v3066 = vpop.permute.xlu0 %3065
      %3067 = vrot.lane.b32.xlu0 %v1253, 96
      %v3068 = vpop.permute.xlu0 %3067
      %3069 = vrot.lane.b32.xlu0 %v1254, 96
      %v3070 = vpop.permute.xlu0 %3069
      %3071 = vrot.lane.b32.xlu0 %v1255, 96
      %v3072 = vpop.permute.xlu0 %3071
      %3073 = vrot.lane.b32.xlu0 %v1256, 96
      %v3074 = vpop.permute.xlu0 %3073
      %3075 = vrot.lane.b32.xlu0 %v1257, 96
      %v3076 = vpop.permute.xlu0 %3075
      %3077 = vrot.lane.b32.xlu0 %v1258, 96
      %v3078 = vpop.permute.xlu0 %3077
      %3079 = vrot.lane.b32.xlu0 %v1259, 96
      %v3080 = vpop.permute.xlu0 %3079
      %v3081 = vsel %vm1337, %v3054, 0
      %v3083 = vsel %vm1337, %v3056, 0
      %v3085 = vsel %vm1337, %v3058, 0
      %v3087 = vsel %vm1337, %v3060, 0
      %v3089 = vsel %vm1337, %v3062, 0
      %v3091 = vsel %vm1337, %v3064, 0
      %v3093 = vsel %vm1337, %v3066, 0
      %v3095 = vsel %vm1337, %v3068, 0
      %v3097 = vsel %vm1337, %v3070, 0
      %v3099 = vsel %vm1337, %v3072, 0
      %v3101 = vsel %vm1337, %v3074, 0
      %v3103 = vsel %vm1337, %v3076, 0
      %v3105 = vsel %vm1337, %v3078, 0
      %v3107 = vsel %vm1337, %v3080, 0
      %3109 = vmatprep.subr.mxu0 0.0
      %3110 = vmatpush1.xpose.msra.mxu0 %v3095
      %3111 = vmatprep.subr.mxu0 0.0
      %3112 = vmatpush1.xpose.msra.mxu0 %v3097
      %3113 = vmatprep.subr.mxu0 0.0
      %3114 = vmatpush1.xpose.msra.mxu0 %v3099
      %3115 = vmatprep.subr.mxu0 0.0
      %3116 = vmatpush1.xpose.msra.mxu0 %v3101
      %3117 = vmatprep.subr.mxu0 0.0
      %3118 = vmatpush1.xpose.msra.mxu0 %v3103
      %3119 = vmatprep.subr.mxu0 0.0
      %3120 = vmatpush1.xpose.msra.mxu0 %v3105
      %3121 = vmatprep.subr.mxu0 0.0
      %3122 = vmatpush1.xpose.msra.mxu0 %v3107
      %3123 = vmatprep.subr.mxu0 0.0
      %3124 = vmatpush1.xpose.msra.mxu0 0.0
      %3125 = vmatprep.subr.mxu0 0.0
      %3126 = vmatpush1.xpose.msra.mxu0 0.0
      %3127 = vmatprep.subr.mxu0 0.0
      %3128 = vmatpush1.xpose.msra.mxu0 0.0
      %3129 = vmatprep.subr.mxu0 0.0
      %3130 = vmatpush1.xpose.msra.mxu0 0.0
      %3131 = vmatprep.subr.mxu0 0.0
      %3132 = vmatpush1.xpose.msra.mxu0 0.0
      %3133 = vmatprep.subr.mxu0 0.0
      %3134 = vmatpush1.xpose.msra.mxu0 0.0
      %3135 = vmatprep.subr.mxu0 0.0
      %3136 = vmatpush1.xpose.msra.mxu0 0.0
      %3137 = vmatprep.subr.mxu0 0.0
      %3138 = vmatpush1.xpose.msra.mxu0 0.0
      %3139 = vmatprep.subr.mxu0 0.0
      %3140 = vmatpush1.xpose.msra.mxu0 0.0
      %3141 = vmatprep.subr.mxu0 0.0
      %3142 = vmatpush1.xpose.msra.mxu0 0.0
      %3143 = vmatprep.subr.mxu0 0.0
      %3144 = vmatpush1.xpose.msra.mxu0 0.0
      %3145 = vmatprep.subr.mxu0 0.0
      %3146 = vmatpush1.xpose.msra.mxu0 0.0
      %3147 = vmatprep.subr.mxu0 0.0
      %3148 = vmatpush1.xpose.msra.mxu0 0.0
      %3149 = vmatprep.subr.mxu0 0.0
      %3150 = vmatpush1.xpose.msra.mxu0 0.0
      %3151 = vmatprep.subr.mxu0 0.0
      %3152 = vmatpush1.xpose.msra.mxu0 0.0
      %3153 = vmatprep.subr.mxu0 0.0
      %3154 = vmatpush1.xpose.msra.mxu0 0.0
      %3155 = vmatprep.subr.mxu0 0.0
      %3156 = vmatpush1.xpose.msra.mxu0 0.0
      %3157 = vmatprep.subr.mxu0 0.0
      %3158 = vmatpush1.xpose.msra.mxu0 0.0
      %3159 = vmatprep.subr.mxu0 0.0
      %3160 = vmatpush1.xpose.msra.mxu0 0.0
      %3161 = vmatprep.subr.mxu0 0.0
      %3162 = vmatpush1.xpose.msra.mxu0 0.0
      %3163 = vmatprep.subr.mxu0 0.0
      %3164 = vmatpush1.xpose.msra.mxu0 0.0
      %3165 = vmatprep.subr.mxu0 0.0
      %3166 = vmatpush1.xpose.msra.mxu0 0.0
      %3167 = vmatprep.subr.mxu0 0.0
      %3168 = vmatpush1.xpose.msra.mxu0 0.0
      %3169 = vmatprep.subr.mxu0 0.0
      %3170 = vmatpush1.xpose.msra.mxu0 0.0
      %3171 = vmatprep.subr.mxu0 0.0
      %3172 = vmatpush1.xpose.msra.mxu0 0.0
      %3173 = vmatprep.mubr.f32.mxu0 0.0
      %3174 = vmatmul.mubr.f32.gmra.mrb[0].mxu0 %v3081
      %v3175 = vpop.f32.mrb[0].mxu0
      %v3176 = vadd.f32 0.0, %v3175
      %v3177 = vpop.f32.mrb[0].mxu0
      %3178 = vmatprep.mubr.f32.mxu0 0.0
      %3179 = vmatmul.mubr.f32.gmra.mrb[0].mxu0 %v3083
      %v3180 = vpop.f32.mrb[0].mxu0
      %v3181 = vadd.f32 0.0, %v3180
      %v3182 = vpop.f32.mrb[0].mxu0
      %3183 = vmatprep.mubr.f32.mxu0 0.0
      %3184 = vmatmul.mubr.f32.gmra.mrb[0].mxu0 %v3085
      %v3185 = vpop.f32.mrb[0].mxu0
      %v3186 = vadd.f32 0.0, %v3185
      %v3187 = vpop.f32.mrb[0].mxu0
      %3188 = vmatprep.mubr.f32.mxu0 0.0
      %3189 = vmatmul.mubr.f32.gmra.mrb[0].mxu0 %v3087
      %v3190 = vpop.f32.mrb[0].mxu0
      %v3191 = vadd.f32 0.0, %v3190
      %v3192 = vpop.f32.mrb[0].mxu0
      %3193 = vmatprep.mubr.f32.mxu0 0.0
      %3194 = vmatmul.mubr.f32.gmra.mrb[0].mxu0 %v3089
      %v3195 = vpop.f32.mrb[0].mxu0
      %v3196 = vadd.f32 0.0, %v3195
      %v3197 = vpop.f32.mrb[0].mxu0
      %3198 = vmatprep.mubr.f32.mxu0 0.0
      %3199 = vmatmul.mubr.f32.gmra.mrb[0].mxu0 %v3091
      %v3200 = vpop.f32.mrb[0].mxu0
      %v3201 = vadd.f32 0.0, %v3200
      %v3202 = vpop.f32.mrb[0].mxu0
      %3203 = vmatprep.mubr.f32.mxu0 0.0
      %3204 = vmatmul.mubr.f32.gmra.mrb[0].mxu0 %v3093
      %v3205 = vpop.f32.mrb[0].mxu0
      %v3206 = vadd.f32 0.0, %v3205
      %v3207 = vpop.f32.mrb[0].mxu0
      %3208 = vdwg.mxu0
      %3209 = vrot.lane.b32.xlu0 %v1190, 96
      %v3210 = vpop.permute.xlu0 %3209
      %3211 = vrot.lane.b32.xlu0 %v1191, 96
      %v3212 = vpop.permute.xlu0 %3211
      %3213 = vrot.lane.b32.xlu0 %v1192, 96
      %v3214 = vpop.permute.xlu0 %3213
      %3215 = vrot.lane.b32.xlu0 %v1193, 96
      %v3216 = vpop.permute.xlu0 %3215
      %3217 = vrot.lane.b32.xlu0 %v1194, 96
      %v3218 = vpop.permute.xlu0 %3217
      %3219 = vrot.lane.b32.xlu0 %v1195, 96
      %v3220 = vpop.permute.xlu0 %3219
      %3221 = vrot.lane.b32.xlu0 %v1196, 96
      %v3222 = vpop.permute.xlu0 %3221
      %3223 = vrot.lane.b32.xlu0 %v1260, 96
      %v3224 = vpop.permute.xlu0 %3223
      %3225 = vrot.lane.b32.xlu0 %v1261, 96
      %v3226 = vpop.permute.xlu0 %3225
      %3227 = vrot.lane.b32.xlu0 %v1262, 96
      %v3228 = vpop.permute.xlu0 %3227
      %3229 = vrot.lane.b32.xlu0 %v1263, 96
      %v3230 = vpop.permute.xlu0 %3229
      %3231 = vrot.lane.b32.xlu0 %v1264, 96
      %v3232 = vpop.permute.xlu0 %3231
      %3233 = vrot.lane.b32.xlu0 %v1265, 96
      %v3234 = vpop.permute.xlu0 %3233
      %3235 = vrot.lane.b32.xlu0 %v1266, 96
      %v3236 = vpop.permute.xlu0 %3235
      %v3237 = vsel %vm1337, %v3210, 0
      %v3239 = vsel %vm1337, %v3212, 0
      %v3241 = vsel %vm1337, %v3214, 0
      %v3243 = vsel %vm1337, %v3216, 0
      %v3245 = vsel %vm1337, %v3218, 0
      %v3247 = vsel %vm1337, %v3220, 0
      %v3249 = vsel %vm1337, %v3222, 0
      %v3251 = vsel %vm1337, %v3224, 0
      %v3253 = vsel %vm1337, %v3226, 0
      %v3255 = vsel %vm1337, %v3228, 0
      %v3257 = vsel %vm1337, %v3230, 0
      %v3259 = vsel %vm1337, %v3232, 0
      %v3261 = vsel %vm1337, %v3234, 0
      %v3263 = vsel %vm1337, %v3236, 0
      %3265 = vmatprep.subr.mxu0 0.0
      %3266 = vmatpush1.xpose.msra.mxu0 %v3251
      %3267 = vmatprep.subr.mxu0 0.0
      %3268 = vmatpush1.xpose.msra.mxu0 %v3253
      %3269 = vmatprep.subr.mxu0 0.0
      %3270 = vmatpush1.xpose.msra.mxu0 %v3255
      %3271 = vmatprep.subr.mxu0 0.0
      %3272 = vmatpush1.xpose.msra.mxu0 %v3257
      %3273 = vmatprep.subr.mxu0 0.0
      %3274 = vmatpush1.xpose.msra.mxu0 %v3259
      %3275 = vmatprep.subr.mxu0 0.0
      %3276 = vmatpush1.xpose.msra.mxu0 %v3261
      %3277 = vmatprep.subr.mxu0 0.0
      %3278 = vmatpush1.xpose.msra.mxu0 %v3263
      %3279 = vmatprep.subr.mxu0 0.0
      %3280 = vmatpush1.xpose.msra.mxu0 0.0
      %3281 = vmatprep.subr.mxu0 0.0
      %3282 = vmatpush1.xpose.msra.mxu0 0.0
      %3283 = vmatprep.subr.mxu0 0.0
      %3284 = vmatpush1.xpose.msra.mxu0 0.0
      %3285 = vmatprep.subr.mxu0 0.0
      %3286 = vmatpush1.xpose.msra.mxu0 0.0
      %3287 = vmatprep.subr.mxu0 0.0
      %3288 = vmatpush1.xpose.msra.mxu0 0.0
      %3289 = vmatprep.subr.mxu0 0.0
      %3290 = vmatpush1.xpose.msra.mxu0 0.0
      %3291 = vmatprep.subr.mxu0 0.0
      %3292 = vmatpush1.xpose.msra.mxu0 0.0
      %3293 = vmatprep.subr.mxu0 0.0
      %3294 = vmatpush1.xpose.msra.mxu0 0.0
      %3295 = vmatprep.subr.mxu0 0.0
      %3296 = vmatpush1.xpose.msra.mxu0 0.0
      %3297 = vmatprep.subr.mxu0 0.0
      %3298 = vmatpush1.xpose.msra.mxu0 0.0
      %3299 = vmatprep.subr.mxu0 0.0
      %3300 = vmatpush1.xpose.msra.mxu0 0.0
      %3301 = vmatprep.subr.mxu0 0.0
      %3302 = vmatpush1.xpose.msra.mxu0 0.0
      %3303 = vmatprep.subr.mxu0 0.0
      %3304 = vmatpush1.xpose.msra.mxu0 0.0
      %3305 = vmatprep.subr.mxu0 0.0
      %3306 = vmatpush1.xpose.msra.mxu0 0.0
      %3307 = vmatprep.subr.mxu0 0.0
      %3308 = vmatpush1.xpose.msra.mxu0 0.0
      %3309 = vmatprep.subr.mxu0 0.0
      %3310 = vmatpush1.xpose.msra.mxu0 0.0
      %3311 = vmatprep.subr.mxu0 0.0
      %3312 = vmatpush1.xpose.msra.mxu0 0.0
      %3313 = vmatprep.subr.mxu0 0.0
      %3314 = vmatpush1.xpose.msra.mxu0 0.0
      %3315 = vmatprep.subr.mxu0 0.0
      %3316 = vmatpush1.xpose.msra.mxu0 0.0
      %3317 = vmatprep.subr.mxu0 0.0
      %3318 = vmatpush1.xpose.msra.mxu0 0.0
      %3319 = vmatprep.subr.mxu0 0.0
      %3320 = vmatpush1.xpose.msra.mxu0 0.0
      %3321 = vmatprep.subr.mxu0 0.0
      %3322 = vmatpush1.xpose.msra.mxu0 0.0
      %3323 = vmatprep.subr.mxu0 0.0
      %3324 = vmatpush1.xpose.msra.mxu0 0.0
      %3325 = vmatprep.subr.mxu0 0.0
      %3326 = vmatpush1.xpose.msra.mxu0 0.0
      %3327 = vmatprep.subr.mxu0 0.0
      %3328 = vmatpush1.xpose.msra.mxu0 0.0
      %3329 = vmatprep.mubr.f32.mxu0 0.0
      %3330 = vmatmul.mubr.f32.gmra.mrb[0].mxu0 %v3237
      %v3331 = vpop.f32.mrb[0].mxu0
      %v3332 = vadd.f32 0.0, %v3331
      %v3333 = vpop.f32.mrb[0].mxu0
      %3334 = vmatprep.mubr.f32.mxu0 0.0
      %3335 = vmatmul.mubr.f32.gmra.mrb[0].mxu0 %v3239
      %v3336 = vpop.f32.mrb[0].mxu0
      %v3337 = vadd.f32 0.0, %v3336
      %v3338 = vpop.f32.mrb[0].mxu0
      %3339 = vmatprep.mubr.f32.mxu0 0.0
      %3340 = vmatmul.mubr.f32.gmra.mrb[0].mxu0 %v3241
      %v3341 = vpop.f32.mrb[0].mxu0
      %v3342 = vadd.f32 0.0, %v3341
      %v3343 = vpop.f32.mrb[0].mxu0
      %3344 = vmatprep.mubr.f32.mxu0 0.0
      %3345 = vmatmul.mubr.f32.gmra.mrb[0].mxu0 %v3243
      %v3346 = vpop.f32.mrb[0].mxu0
      %v3347 = vadd.f32 0.0, %v3346
      %v3348 = vpop.f32.mrb[0].mxu0
      %3349 = vmatprep.mubr.f32.mxu0 0.0
      %3350 = vmatmul.mubr.f32.gmra.mrb[0].mxu0 %v3245
      %v3351 = vpop.f32.mrb[0].mxu0
      %v3352 = vadd.f32 0.0, %v3351
      %v3353 = vpop.f32.mrb[0].mxu0
      %3354 = vmatprep.mubr.f32.mxu0 0.0
      %3355 = vmatmul.mubr.f32.gmra.mrb[0].mxu0 %v3247
      %v3356 = vpop.f32.mrb[0].mxu0
      %v3357 = vadd.f32 0.0, %v3356
      %v3358 = vpop.f32.mrb[0].mxu0
      %3359 = vmatprep.mubr.f32.mxu0 0.0
      %3360 = vmatmul.mubr.f32.gmra.mrb[0].mxu0 %v3249
      %v3361 = vpop.f32.mrb[0].mxu0
      %v3362 = vadd.f32 0.0, %v3361
      %v3363 = vpop.f32.mrb[0].mxu0
      %3364 = vdwg.mxu0
      %v3365 = vmul.f32 %v2864, 0.17677669
      %v3366 = vmul.f32 %v2869, 0.17677669
      %v3367 = vmul.f32 %v2874, 0.17677669
      %v3368 = vmul.f32 %v2879, 0.17677669
      %v3369 = vmul.f32 %v2884, 0.17677669
      %v3370 = vmul.f32 %v2889, 0.17677669
      %v3371 = vmul.f32 %v2894, 0.17677669
      %v3372 = vmul.f32 %v3020, 0.17677669
      %v3373 = vmul.f32 %v3025, 0.17677669
      %v3374 = vmul.f32 %v3030, 0.17677669
      %v3375 = vmul.f32 %v3035, 0.17677669
      %v3376 = vmul.f32 %v3040, 0.17677669
      %v3377 = vmul.f32 %v3045, 0.17677669
      %v3378 = vmul.f32 %v3050, 0.17677669
      %v3379 = vmul.f32 %v3176, 0.17677669
      %v3380 = vmul.f32 %v3181, 0.17677669
      %v3381 = vmul.f32 %v3186, 0.17677669
      %v3382 = vmul.f32 %v3191, 0.17677669
      %v3383 = vmul.f32 %v3196, 0.17677669
      %v3384 = vmul.f32 %v3201, 0.17677669
      %v3385 = vmul.f32 %v3206, 0.17677669
      %v3386 = vmul.f32 %v3332, 0.17677669
      %v3387 = vmul.f32 %v3337, 0.17677669
      %v3388 = vmul.f32 %v3342, 0.17677669
      %v3389 = vmul.f32 %v3347, 0.17677669
      %v3390 = vmul.f32 %v3352, 0.17677669
      %v3391 = vmul.f32 %v3357, 0.17677669
      %v3392 = vmul.f32 %v3362, 0.17677669
      %v3393 = vsel %vm1934, %v3365, -inf
      %3394 = vmax.xlane.f32.xlu0 %v3393
      %v3395 = vpop.xlane.xlu0 %3394
      %v3396 = vsel %vm1934, %v3366, -inf
      %3397 = vmax.xlane.f32.xlu0 %v3396
      %v3398 = vpop.xlane.xlu0 %3397
      %v3399 = vsel %vm1934, %v3367, -inf
      %3400 = vmax.xlane.f32.xlu0 %v3399
      %v3401 = vpop.xlane.xlu0 %3400
      %v3402 = vsel %vm1934, %v3368, -inf
      %3403 = vmax.xlane.f32.xlu0 %v3402
      %v3404 = vpop.xlane.xlu0 %3403
      %v3405 = vsel %vm1934, %v3369, -inf
      %3406 = vmax.xlane.f32.xlu0 %v3405
      %v3407 = vpop.xlane.xlu0 %3406
      %v3408 = vsel %vm1934, %v3370, -inf
      %3409 = vmax.xlane.f32.xlu0 %v3408
      %v3410 = vpop.xlane.xlu0 %3409
      %v3411 = vsel %vm1953, %v3371, -inf
      %3412 = vmax.xlane.f32.xlu0 %v3411
      %v3413 = vpop.xlane.xlu0 %3412
      %v3414 = vsel %vm1934, %v3372, -inf
      %3415 = vmax.xlane.f32.xlu0 %v3414
      %v3416 = vpop.xlane.xlu0 %3415
      %v3417 = vsel %vm1934, %v3373, -inf
      %3418 = vmax.xlane.f32.xlu0 %v3417
      %v3419 = vpop.xlane.xlu0 %3418
      %v3420 = vsel %vm1934, %v3374, -inf
      %3421 = vmax.xlane.f32.xlu0 %v3420
      %v3422 = vpop.xlane.xlu0 %3421
      %v3423 = vsel %vm1934, %v3375, -inf
      %3424 = vmax.xlane.f32.xlu0 %v3423
      %v3425 = vpop.xlane.xlu0 %3424
      %v3426 = vsel %vm1934, %v3376, -inf
      %3427 = vmax.xlane.f32.xlu0 %v3426
      %v3428 = vpop.xlane.xlu0 %3427
      %v3429 = vsel %vm1934, %v3377, -inf
      %3430 = vmax.xlane.f32.xlu0 %v3429
      %v3431 = vpop.xlane.xlu0 %3430
      %v3432 = vsel %vm1953, %v3378, -inf
      %3433 = vmax.xlane.f32.xlu0 %v3432
      %v3434 = vpop.xlane.xlu0 %3433
      %v3435 = vsel %vm1934, %v3379, -inf
      %3436 = vmax.xlane.f32.xlu0 %v3435
      %v3437 = vpop.xlane.xlu0 %3436
      %v3438 = vsel %vm1934, %v3380, -inf
      %3439 = vmax.xlane.f32.xlu0 %v3438
      %v3440 = vpop.xlane.xlu0 %3439
      %v3441 = vsel %vm1934, %v3381, -inf
      %3442 = vmax.xlane.f32.xlu0 %v3441
      %v3443 = vpop.xlane.xlu0 %3442
      %v3444 = vsel %vm1934, %v3382, -inf
      %3445 = vmax.xlane.f32.xlu0 %v3444
      %v3446 = vpop.xlane.xlu0 %3445
      %v3447 = vsel %vm1934, %v3383, -inf
      %3448 = vmax.xlane.f32.xlu0 %v3447
      %v3449 = vpop.xlane.xlu0 %3448
      %v3450 = vsel %vm1934, %v3384, -inf
      %3451 = vmax.xlane.f32.xlu0 %v3450
      %v3452 = vpop.xlane.xlu0 %3451
      %v3453 = vsel %vm1953, %v3385, -inf
      %3454 = vmax.xlane.f32.xlu0 %v3453
      %v3455 = vpop.xlane.xlu0 %3454
      %v3456 = vsel %vm1934, %v3386, -inf
      %3457 = vmax.xlane.f32.xlu0 %v3456
      %v3458 = vpop.xlane.xlu0 %3457
      %v3459 = vsel %vm1934, %v3387, -inf
      %3460 = vmax.xlane.f32.xlu0 %v3459
      %v3461 = vpop.xlane.xlu0 %3460
      %v3462 = vsel %vm1934, %v3388, -inf
      %3463 = vmax.xlane.f32.xlu0 %v3462
      %v3464 = vpop.xlane.xlu0 %3463
      %v3465 = vsel %vm1934, %v3389, -inf
      %3466 = vmax.xlane.f32.xlu0 %v3465
      %v3467 = vpop.xlane.xlu0 %3466
      %v3468 = vsel %vm1934, %v3390, -inf
      %3469 = vmax.xlane.f32.xlu0 %v3468
      %v3470 = vpop.xlane.xlu0 %3469
      %v3471 = vsel %vm1934, %v3391, -inf
      %3472 = vmax.xlane.f32.xlu0 %v3471
      %v3473 = vpop.xlane.xlu0 %3472
      %v3474 = vsel %vm1953, %v3392, -inf
      %3475 = vmax.xlane.f32.xlu0 %v3474
      %v3476 = vpop.xlane.xlu0 %3475
      %v3477 = vsub.f32 %v3365, %v3395
      %v3478 = vsub.f32 %v3366, %v3398
      %v3479 = vsub.f32 %v3367, %v3401
      %v3480 = vsub.f32 %v3368, %v3404
      %v3481 = vsub.f32 %v3369, %v3407
      %v3482 = vsub.f32 %v3370, %v3410
      %v3483 = vsub.f32 %v3371, %v3413
      %v3484 = vsub.f32 %v3372, %v3416
      %v3485 = vsub.f32 %v3373, %v3419
      %v3486 = vsub.f32 %v3374, %v3422
      %v3487 = vsub.f32 %v3375, %v3425
      %v3488 = vsub.f32 %v3376, %v3428
      %v3489 = vsub.f32 %v3377, %v3431
      %v3490 = vsub.f32 %v3378, %v3434
      %v3491 = vsub.f32 %v3379, %v3437
      %v3492 = vsub.f32 %v3380, %v3440
      %v3493 = vsub.f32 %v3381, %v3443
      %v3494 = vsub.f32 %v3382, %v3446
      %v3495 = vsub.f32 %v3383, %v3449
      %v3496 = vsub.f32 %v3384, %v3452
      %v3497 = vsub.f32 %v3385, %v3455
      %v3498 = vsub.f32 %v3386, %v3458
      %v3499 = vsub.f32 %v3387, %v3461
      %v3500 = vsub.f32 %v3388, %v3464
      %v3501 = vsub.f32 %v3389, %v3467
      %v3502 = vsub.f32 %v3390, %v3470
      %v3503 = vsub.f32 %v3391, %v3473
      %v3504 = vsub.f32 %v3392, %v3476
      %v3505 = vmul.f32 %v3477, 1.442695
      %v3506 = vpow.pop %v3505
      %v3507 = vmul.f32 %v3478, 1.442695
      %v3508 = vpow.pop %v3507
      %v3509 = vmul.f32 %v3479, 1.442695
      %v3510 = vpow.pop %v3509
      %v3511 = vmul.f32 %v3480, 1.442695
      %v3512 = vpow.pop %v3511
      %v3513 = vmul.f32 %v3481, 1.442695
      %v3514 = vpow.pop %v3513
      %v3515 = vmul.f32 %v3482, 1.442695
      %v3516 = vpow.pop %v3515
      %v3517 = vmul.f32 %v3483, 1.442695
      %v3518 = vpow.pop %v3517
      %v3519 = vmul.f32 %v3484, 1.442695
      %v3520 = vpow.pop %v3519
      %v3521 = vmul.f32 %v3485, 1.442695
      %v3522 = vpow.pop %v3521
      %v3523 = vmul.f32 %v3486, 1.442695
      %v3524 = vpow.pop %v3523
      %v3525 = vmul.f32 %v3487, 1.442695
      %v3526 = vpow.pop %v3525
      %v3527 = vmul.f32 %v3488, 1.442695
      %v3528 = vpow.pop %v3527
      %v3529 = vmul.f32 %v3489, 1.442695
      %v3530 = vpow.pop %v3529
      %v3531 = vmul.f32 %v3490, 1.442695
      %v3532 = vpow.pop %v3531
      %v3533 = vmul.f32 %v3491, 1.442695
      %v3534 = vpow.pop %v3533
      %v3535 = vmul.f32 %v3492, 1.442695
      %v3536 = vpow.pop %v3535
      %v3537 = vmul.f32 %v3493, 1.442695
      %v3538 = vpow.pop %v3537
      %v3539 = vmul.f32 %v3494, 1.442695
      %v3540 = vpow.pop %v3539
      %v3541 = vmul.f32 %v3495, 1.442695
      %v3542 = vpow.pop %v3541
      %v3543 = vmul.f32 %v3496, 1.442695
      %v3544 = vpow.pop %v3543
      %v3545 = vmul.f32 %v3497, 1.442695
      %v3546 = vpow.pop %v3545
      %v3547 = vmul.f32 %v3498, 1.442695
      %v3548 = vpow.pop %v3547
      %v3549 = vmul.f32 %v3499, 1.442695
      %v3550 = vpow.pop %v3549
      %v3551 = vmul.f32 %v3500, 1.442695
      %v3552 = vpow.pop %v3551
      %v3553 = vmul.f32 %v3501, 1.442695
      %v3554 = vpow.pop %v3553
      %v3555 = vmul.f32 %v3502, 1.442695
      %v3556 = vpow.pop %v3555
      %v3557 = vmul.f32 %v3503, 1.442695
      %v3558 = vpow.pop %v3557
      %v3559 = vmul.f32 %v3504, 1.442695
      %v3560 = vpow.pop %v3559
      %v3561 = vsel %vm1934, %v3506, 0.0
      %3562 = vadd.xlane.f32.xlu0 %v3561
      %v3563 = vpop.xlane.xlu0 %3562
      %v3564 = vsel %vm1934, %v3508, 0.0
      %3565 = vadd.xlane.f32.xlu0 %v3564
      %v3566 = vpop.xlane.xlu0 %3565
      %v3567 = vsel %vm1934, %v3510, 0.0
      %3568 = vadd.xlane.f32.xlu0 %v3567
      %v3569 = vpop.xlane.xlu0 %3568
      %v3570 = vsel %vm1934, %v3512, 0.0
      %3571 = vadd.xlane.f32.xlu0 %v3570
      %v3572 = vpop.xlane.xlu0 %3571
      %v3573 = vsel %vm1934, %v3514, 0.0
      %3574 = vadd.xlane.f32.xlu0 %v3573
      %v3575 = vpop.xlane.xlu0 %3574
      %v3576 = vsel %vm1934, %v3516, 0.0
      %3577 = vadd.xlane.f32.xlu0 %v3576
      %v3578 = vpop.xlane.xlu0 %3577
      %v3579 = vsel %vm1953, %v3518, 0.0
      %3580 = vadd.xlane.f32.xlu0 %v3579
      %v3581 = vpop.xlane.xlu0 %3580
      %v3582 = vsel %vm1934, %v3520, 0.0
      %3583 = vadd.xlane.f32.xlu0 %v3582
      %v3584 = vpop.xlane.xlu0 %3583
      %v3585 = vsel %vm1934, %v3522, 0.0
      %3586 = vadd.xlane.f32.xlu0 %v3585
      %v3587 = vpop.xlane.xlu0 %3586
      %v3588 = vsel %vm1934, %v3524, 0.0
      %3589 = vadd.xlane.f32.xlu0 %v3588
      %v3590 = vpop.xlane.xlu0 %3589
      %v3591 = vsel %vm1934, %v3526, 0.0
      %3592 = vadd.xlane.f32.xlu0 %v3591
      %v3593 = vpop.xlane.xlu0 %3592
      %v3594 = vsel %vm1934, %v3528, 0.0
      %3595 = vadd.xlane.f32.xlu0 %v3594
      %v3596 = vpop.xlane.xlu0 %3595
      %v3597 = vsel %vm1934, %v3530, 0.0
      %3598 = vadd.xlane.f32.xlu0 %v3597
      %v3599 = vpop.xlane.xlu0 %3598
      %v3600 = vsel %vm1953, %v3532, 0.0
      %3601 = vadd.xlane.f32.xlu0 %v3600
      %v3602 = vpop.xlane.xlu0 %3601
      %v3603 = vsel %vm1934, %v3534, 0.0
      %3604 = vadd.xlane.f32.xlu0 %v3603
      %v3605 = vpop.xlane.xlu0 %3604
      %v3606 = vsel %vm1934, %v3536, 0.0
      %3607 = vadd.xlane.f32.xlu0 %v3606
      %v3608 = vpop.xlane.xlu0 %3607
      %v3609 = vsel %vm1934, %v3538, 0.0
      %3610 = vadd.xlane.f32.xlu0 %v3609
      %v3611 = vpop.xlane.xlu0 %3610
      %v3612 = vsel %vm1934, %v3540, 0.0
      %3613 = vadd.xlane.f32.xlu0 %v3612
      %v3614 = vpop.xlane.xlu0 %3613
      %v3615 = vsel %vm1934, %v3542, 0.0
      %3616 = vadd.xlane.f32.xlu0 %v3615
      %v3617 = vpop.xlane.xlu0 %3616
      %v3618 = vsel %vm1934, %v3544, 0.0
      %3619 = vadd.xlane.f32.xlu0 %v3618
      %v3620 = vpop.xlane.xlu0 %3619
      %v3621 = vsel %vm1953, %v3546, 0.0
      %3622 = vadd.xlane.f32.xlu0 %v3621
      %v3623 = vpop.xlane.xlu0 %3622
      %v3624 = vsel %vm1934, %v3548, 0.0
      %3625 = vadd.xlane.f32.xlu0 %v3624
      %v3626 = vpop.xlane.xlu0 %3625
      %v3627 = vsel %vm1934, %v3550, 0.0
      %3628 = vadd.xlane.f32.xlu0 %v3627
      %v3629 = vpop.xlane.xlu0 %3628
      %v3630 = vsel %vm1934, %v3552, 0.0
      %3631 = vadd.xlane.f32.xlu0 %v3630
      %v3632 = vpop.xlane.xlu0 %3631
      %v3633 = vsel %vm1934, %v3554, 0.0
      %3634 = vadd.xlane.f32.xlu0 %v3633
      %v3635 = vpop.xlane.xlu0 %3634
      %v3636 = vsel %vm1934, %v3556, 0.0
      %3637 = vadd.xlane.f32.xlu0 %v3636
      %v3638 = vpop.xlane.xlu0 %3637
      %v3639 = vsel %vm1934, %v3558, 0.0
      %3640 = vadd.xlane.f32.xlu0 %v3639
      %v3641 = vpop.xlane.xlu0 %3640
      %v3642 = vsel %vm1953, %v3560, 0.0
      %3643 = vadd.xlane.f32.xlu0 %v3642
      %v3644 = vpop.xlane.xlu0 %3643
      %v3645 = vrcp.pop %v3563
      %v3646 = vrcp.pop %v3566
      %v3647 = vrcp.pop %v3569
      %v3648 = vrcp.pop %v3572
      %v3649 = vrcp.pop %v3575
      %v3650 = vrcp.pop %v3578
      %v3651 = vrcp.pop %v3581
      %v3652 = vrcp.pop %v3584
      %v3653 = vrcp.pop %v3587
      %v3654 = vrcp.pop %v3590
      %v3655 = vrcp.pop %v3593
      %v3656 = vrcp.pop %v3596
      %v3657 = vrcp.pop %v3599
      %v3658 = vrcp.pop %v3602
      %v3659 = vrcp.pop %v3605
      %v3660 = vrcp.pop %v3608
      %v3661 = vrcp.pop %v3611
      %v3662 = vrcp.pop %v3614
      %v3663 = vrcp.pop %v3617
      %v3664 = vrcp.pop %v3620
      %v3665 = vrcp.pop %v3623
      %v3666 = vrcp.pop %v3626
      %v3667 = vrcp.pop %v3629
      %v3668 = vrcp.pop %v3632
      %v3669 = vrcp.pop %v3635
      %v3670 = vrcp.pop %v3638
      %v3671 = vrcp.pop %v3641
      %v3672 = vrcp.pop %v3644
      %v3673 = vmul.f32 %v3506, %v3645
      %v3674 = vmul.f32 %v3508, %v3646
      %v3675 = vmul.f32 %v3510, %v3647
      %v3676 = vmul.f32 %v3512, %v3648
      %v3677 = vmul.f32 %v3514, %v3649
      %v3678 = vmul.f32 %v3516, %v3650
      %v3679 = vmul.f32 %v3518, %v3651
      %v3680 = vmul.f32 %v3520, %v3652
      %v3681 = vmul.f32 %v3522, %v3653
      %v3682 = vmul.f32 %v3524, %v3654
      %v3683 = vmul.f32 %v3526, %v3655
      %v3684 = vmul.f32 %v3528, %v3656
      %v3685 = vmul.f32 %v3530, %v3657
      %v3686 = vmul.f32 %v3532, %v3658
      %v3687 = vmul.f32 %v3534, %v3659
      %v3688 = vmul.f32 %v3536, %v3660
      %v3689 = vmul.f32 %v3538, %v3661
      %v3690 = vmul.f32 %v3540, %v3662
      %v3691 = vmul.f32 %v3542, %v3663
      %v3692 = vmul.f32 %v3544, %v3664
      %v3693 = vmul.f32 %v3546, %v3665
      %v3694 = vmul.f32 %v3548, %v3666
      %v3695 = vmul.f32 %v3550, %v3667
      %v3696 = vmul.f32 %v3552, %v3668
      %v3697 = vmul.f32 %v3554, %v3669
      %v3698 = vmul.f32 %v3556, %v3670
      %v3699 = vmul.f32 %v3558, %v3671
      %v3700 = vmul.f32 %v3560, %v3672
      %3707 = vrot.lane.b32.xlu0 %v1309, 96
      %v3708 = vpop.permute.xlu0 %3707
      %3709 = vrot.lane.b32.xlu0 %v1310, 96
      %v3710 = vpop.permute.xlu0 %3709
      %3711 = vrot.lane.b32.xlu0 %v1311, 96
      %v3712 = vpop.permute.xlu0 %3711
      %3713 = vrot.lane.b32.xlu0 %v1312, 96
      %v3714 = vpop.permute.xlu0 %3713
      %3715 = vrot.lane.b32.xlu0 %v1313, 96
      %v3716 = vpop.permute.xlu0 %3715
      %3717 = vrot.lane.b32.xlu0 %v1314, 96
      %v3718 = vpop.permute.xlu0 %3717
      %3719 = vrot.lane.b32.xlu0 %v1315, 96
      %v3720 = vpop.permute.xlu0 %3719
      %v3728 = vsel %vm1934, %v3673, 0
      %v3731 = vsel %vm1934, %v3674, 0
      %v3734 = vsel %vm1934, %v3675, 0
      %v3737 = vsel %vm1934, %v3676, 0
      %v3740 = vsel %vm1934, %v3677, 0
      %v3743 = vsel %vm1934, %v3678, 0
      %v3746 = vsel %vm1934, %v3679, 0
      %v3748 = vsel %vm2265, %v3720, 0
      %3750 = vmatprep.subr.mxu0 0.0
      %3751 = vmatpush1.msra.mxu0 %v3708
      %3752 = vmatprep.subr.mxu0 0.0
      %3753 = vmatpush1.msra.mxu0 %v3710
      %3754 = vmatprep.subr.mxu0 0.0
      %3755 = vmatpush1.msra.mxu0 %v3712
      %3756 = vmatprep.subr.mxu0 0.0
      %3757 = vmatpush1.msra.mxu0 %v3714
      %3758 = vmatprep.subr.mxu0 0.0
      %3759 = vmatpush1.msra.mxu0 %v3716
      %3760 = vmatprep.subr.mxu0 0.0
      %3761 = vmatpush1.msra.mxu0 %v3718
      %3762 = vmatprep.subr.mxu0 0.0
      %3763 = vmatpush1.msra.mxu0 %v3748
      %3764 = vmatprep.subr.mxu0 0.0
      %3765 = vmatpush1.msra.mxu0 0.0
      %3766 = vmatprep.subr.mxu0 0.0
      %3767 = vmatpush1.msra.mxu0 0.0
      %3768 = vmatprep.subr.mxu0 0.0
      %3769 = vmatpush1.msra.mxu0 0.0
      %3770 = vmatprep.subr.mxu0 0.0
      %3771 = vmatpush1.msra.mxu0 0.0
      %3772 = vmatprep.subr.mxu0 0.0
      %3773 = vmatpush1.msra.mxu0 0.0
      %3774 = vmatprep.subr.mxu0 0.0
      %3775 = vmatpush1.msra.mxu0 0.0
      %3776 = vmatprep.subr.mxu0 0.0
      %3777 = vmatpush1.msra.mxu0 0.0
      %3778 = vmatprep.subr.mxu0 0.0
      %3779 = vmatpush1.msra.mxu0 0.0
      %3780 = vmatprep.subr.mxu0 0.0
      %3781 = vmatpush1.msra.mxu0 0.0
      %3782 = vmatprep.subr.mxu0 0.0
      %3783 = vmatpush1.msra.mxu0 0.0
      %3784 = vmatprep.subr.mxu0 0.0
      %3785 = vmatpush1.msra.mxu0 0.0
      %3786 = vmatprep.subr.mxu0 0.0
      %3787 = vmatpush1.msra.mxu0 0.0
      %3788 = vmatprep.subr.mxu0 0.0
      %3789 = vmatpush1.msra.mxu0 0.0
      %3790 = vmatprep.subr.mxu0 0.0
      %3791 = vmatpush1.msra.mxu0 0.0
      %3792 = vmatprep.subr.mxu0 0.0
      %3793 = vmatpush1.msra.mxu0 0.0
      %3794 = vmatprep.subr.mxu0 0.0
      %3795 = vmatpush1.msra.mxu0 0.0
      %3796 = vmatprep.subr.mxu0 0.0
      %3797 = vmatpush1.msra.mxu0 0.0
      %3798 = vmatprep.subr.mxu0 0.0
      %3799 = vmatpush1.msra.mxu0 0.0
      %3800 = vmatprep.subr.mxu0 0.0
      %3801 = vmatpush1.msra.mxu0 0.0
      %3802 = vmatprep.subr.mxu0 0.0
      %3803 = vmatpush1.msra.mxu0 0.0
      %3804 = vmatprep.subr.mxu0 0.0
      %3805 = vmatpush1.msra.mxu0 0.0
      %3806 = vmatprep.subr.mxu0 0.0
      %3807 = vmatpush1.msra.mxu0 0.0
      %3808 = vmatprep.subr.mxu0 0.0
      %3809 = vmatpush1.msra.mxu0 0.0
      %3810 = vmatprep.subr.mxu0 0.0
      %3811 = vmatpush1.msra.mxu0 0.0
      %3812 = vmatprep.subr.mxu0 0.0
      %3813 = vmatpush1.msra.mxu0 0.0
      %3814 = vmatprep.mubr.f32.mxu0 0.0
      %3815 = vmatmul.mubr.f32.gmra.mrb[0].mxu0 %v3728
      %v3816 = vpop.f32.mrb[0].mxu0
      %v3817 = vadd.f32 0.0, %v3816
      %v3818 = vpop.f32.mrb[0].mxu0
      %3819 = vmatprep.mubr.f32.mxu0 0.0
      %3820 = vmatmul.mubr.f32.gmra.mrb[0].mxu0 %v3731
      %v3821 = vpop.f32.mrb[0].mxu0
      %v3822 = vadd.f32 0.0, %v3821
      %v3823 = vpop.f32.mrb[0].mxu0
      %3824 = vmatprep.mubr.f32.mxu0 0.0
      %3825 = vmatmul.mubr.f32.gmra.mrb[0].mxu0 %v3734
      %v3826 = vpop.f32.mrb[0].mxu0
      %v3827 = vadd.f32 0.0, %v3826
      %v3828 = vpop.f32.mrb[0].mxu0
      %3829 = vmatprep.mubr.f32.mxu0 0.0
      %3830 = vmatmul.mubr.f32.gmra.mrb[0].mxu0 %v3737
      %v3831 = vpop.f32.mrb[0].mxu0
      %v3832 = vadd.f32 0.0, %v3831
      %v3833 = vpop.f32.mrb[0].mxu0
      %3834 = vmatprep.mubr.f32.mxu0 0.0
      %3835 = vmatmul.mubr.f32.gmra.mrb[0].mxu0 %v3740
      %v3836 = vpop.f32.mrb[0].mxu0
      %v3837 = vadd.f32 0.0, %v3836
      %v3838 = vpop.f32.mrb[0].mxu0
      %3839 = vmatprep.mubr.f32.mxu0 0.0
      %3840 = vmatmul.mubr.f32.gmra.mrb[0].mxu0 %v3743
      %v3841 = vpop.f32.mrb[0].mxu0
      %v3842 = vadd.f32 0.0, %v3841
      %v3843 = vpop.f32.mrb[0].mxu0
      %3844 = vmatprep.mubr.f32.mxu0 0.0
      %3845 = vmatmul.mubr.f32.gmra.mrb[0].mxu0 %v3746
      %v3846 = vpop.f32.mrb[0].mxu0
      %v3847 = vadd.f32 0.0, %v3846
      %v3848 = vpop.f32.mrb[0].mxu0
      %3849 = vdwg.mxu0
      %3856 = vrot.lane.b32.xlu0 %v1316, 96
      %v3857 = vpop.permute.xlu0 %3856
      %3858 = vrot.lane.b32.xlu0 %v1317, 96
      %v3859 = vpop.permute.xlu0 %3858
      %3860 = vrot.lane.b32.xlu0 %v1318, 96
      %v3861 = vpop.permute.xlu0 %3860
      %3862 = vrot.lane.b32.xlu0 %v1319, 96
      %v3863 = vpop.permute.xlu0 %3862
      %3864 = vrot.lane.b32.xlu0 %v1320, 96
      %v3865 = vpop.permute.xlu0 %3864
      %3866 = vrot.lane.b32.xlu0 %v1321, 96
      %v3867 = vpop.permute.xlu0 %3866
      %3868 = vrot.lane.b32.xlu0 %v1322, 96
      %v3869 = vpop.permute.xlu0 %3868
      %v3877 = vsel %vm1934, %v3680, 0
      %v3880 = vsel %vm1934, %v3681, 0
      %v3883 = vsel %vm1934, %v3682, 0
      %v3886 = vsel %vm1934, %v3683, 0
      %v3889 = vsel %vm1934, %v3684, 0
      %v3892 = vsel %vm1934, %v3685, 0
      %v3895 = vsel %vm1934, %v3686, 0
      %v3897 = vsel %vm2265, %v3869, 0
      %3899 = vmatprep.subr.mxu0 0.0
      %3900 = vmatpush1.msra.mxu0 %v3857
      %3901 = vmatprep.subr.mxu0 0.0
      %3902 = vmatpush1.msra.mxu0 %v3859
      %3903 = vmatprep.subr.mxu0 0.0
      %3904 = vmatpush1.msra.mxu0 %v3861
      %3905 = vmatprep.subr.mxu0 0.0
      %3906 = vmatpush1.msra.mxu0 %v3863
      %3907 = vmatprep.subr.mxu0 0.0
      %3908 = vmatpush1.msra.mxu0 %v3865
      %3909 = vmatprep.subr.mxu0 0.0
      %3910 = vmatpush1.msra.mxu0 %v3867
      %3911 = vmatprep.subr.mxu0 0.0
      %3912 = vmatpush1.msra.mxu0 %v3897
      %3913 = vmatprep.subr.mxu0 0.0
      %3914 = vmatpush1.msra.mxu0 0.0
      %3915 = vmatprep.subr.mxu0 0.0
      %3916 = vmatpush1.msra.mxu0 0.0
      %3917 = vmatprep.subr.mxu0 0.0
      %3918 = vmatpush1.msra.mxu0 0.0
      %3919 = vmatprep.subr.mxu0 0.0
      %3920 = vmatpush1.msra.mxu0 0.0
      %3921 = vmatprep.subr.mxu0 0.0
      %3922 = vmatpush1.msra.mxu0 0.0
      %3923 = vmatprep.subr.mxu0 0.0
      %3924 = vmatpush1.msra.mxu0 0.0
      %3925 = vmatprep.subr.mxu0 0.0
      %3926 = vmatpush1.msra.mxu0 0.0
      %3927 = vmatprep.subr.mxu0 0.0
      %3928 = vmatpush1.msra.mxu0 0.0
      %3929 = vmatprep.subr.mxu0 0.0
      %3930 = vmatpush1.msra.mxu0 0.0
      %3931 = vmatprep.subr.mxu0 0.0
      %3932 = vmatpush1.msra.mxu0 0.0
      %3933 = vmatprep.subr.mxu0 0.0
      %3934 = vmatpush1.msra.mxu0 0.0
      %3935 = vmatprep.subr.mxu0 0.0
      %3936 = vmatpush1.msra.mxu0 0.0
      %3937 = vmatprep.subr.mxu0 0.0
      %3938 = vmatpush1.msra.mxu0 0.0
      %3939 = vmatprep.subr.mxu0 0.0
      %3940 = vmatpush1.msra.mxu0 0.0
      %3941 = vmatprep.subr.mxu0 0.0
      %3942 = vmatpush1.msra.mxu0 0.0
      %3943 = vmatprep.subr.mxu0 0.0
      %3944 = vmatpush1.msra.mxu0 0.0
      %3945 = vmatprep.subr.mxu0 0.0
      %3946 = vmatpush1.msra.mxu0 0.0
      %3947 = vmatprep.subr.mxu0 0.0
      %3948 = vmatpush1.msra.mxu0 0.0
      %3949 = vmatprep.subr.mxu0 0.0
      %3950 = vmatpush1.msra.mxu0 0.0
      %3951 = vmatprep.subr.mxu0 0.0
      %3952 = vmatpush1.msra.mxu0 0.0
      %3953 = vmatprep.subr.mxu0 0.0
      %3954 = vmatpush1.msra.mxu0 0.0
      %3955 = vmatprep.subr.mxu0 0.0
      %3956 = vmatpush1.msra.mxu0 0.0
      %3957 = vmatprep.subr.mxu0 0.0
      %3958 = vmatpush1.msra.mxu0 0.0
      %3959 = vmatprep.subr.mxu0 0.0
      %3960 = vmatpush1.msra.mxu0 0.0
      %3961 = vmatprep.subr.mxu0 0.0
      %3962 = vmatpush1.msra.mxu0 0.0
      %3963 = vmatprep.mubr.f32.mxu0 0.0
      %3964 = vmatmul.mubr.f32.gmra.mrb[0].mxu0 %v3877
      %v3965 = vpop.f32.mrb[0].mxu0
      %v3966 = vadd.f32 0.0, %v3965
      %v3967 = vpop.f32.mrb[0].mxu0
      %3968 = vmatprep.mubr.f32.mxu0 0.0
      %3969 = vmatmul.mubr.f32.gmra.mrb[0].mxu0 %v3880
      %v3970 = vpop.f32.mrb[0].mxu0
      %v3971 = vadd.f32 0.0, %v3970
      %v3972 = vpop.f32.mrb[0].mxu0
      %3973 = vmatprep.mubr.f32.mxu0 0.0
      %3974 = vmatmul.mubr.f32.gmra.mrb[0].mxu0 %v3883
      %v3975 = vpop.f32.mrb[0].mxu0
      %v3976 = vadd.f32 0.0, %v3975
      %v3977 = vpop.f32.mrb[0].mxu0
      %3978 = vmatprep.mubr.f32.mxu0 0.0
      %3979 = vmatmul.mubr.f32.gmra.mrb[0].mxu0 %v3886
      %v3980 = vpop.f32.mrb[0].mxu0
      %v3981 = vadd.f32 0.0, %v3980
      %v3982 = vpop.f32.mrb[0].mxu0
      %3983 = vmatprep.mubr.f32.mxu0 0.0
      %3984 = vmatmul.mubr.f32.gmra.mrb[0].mxu0 %v3889
      %v3985 = vpop.f32.mrb[0].mxu0
      %v3986 = vadd.f32 0.0, %v3985
      %v3987 = vpop.f32.mrb[0].mxu0
      %3988 = vmatprep.mubr.f32.mxu0 0.0
      %3989 = vmatmul.mubr.f32.gmra.mrb[0].mxu0 %v3892
      %v3990 = vpop.f32.mrb[0].mxu0
      %v3991 = vadd.f32 0.0, %v3990
      %v3992 = vpop.f32.mrb[0].mxu0
      %3993 = vmatprep.mubr.f32.mxu0 0.0
      %3994 = vmatmul.mubr.f32.gmra.mrb[0].mxu0 %v3895
      %v3995 = vpop.f32.mrb[0].mxu0
      %v3996 = vadd.f32 0.0, %v3995
      %v3997 = vpop.f32.mrb[0].mxu0
      %3998 = vdwg.mxu0
      %4005 = vrot.lane.b32.xlu0 %v1323, 96
      %v4006 = vpop.permute.xlu0 %4005
      %4007 = vrot.lane.b32.xlu0 %v1324, 96
      %v4008 = vpop.permute.xlu0 %4007
      %4009 = vrot.lane.b32.xlu0 %v1325, 96
      %v4010 = vpop.permute.xlu0 %4009
      %4011 = vrot.lane.b32.xlu0 %v1326, 96
      %v4012 = vpop.permute.xlu0 %4011
      %4013 = vrot.lane.b32.xlu0 %v1327, 96
      %v4014 = vpop.permute.xlu0 %4013
      %4015 = vrot.lane.b32.xlu0 %v1328, 96
      %v4016 = vpop.permute.xlu0 %4015
      %4017 = vrot.lane.b32.xlu0 %v1329, 96
      %v4018 = vpop.permute.xlu0 %4017
      %v4026 = vsel %vm1934, %v3687, 0
      %v4029 = vsel %vm1934, %v3688, 0
      %v4032 = vsel %vm1934, %v3689, 0
      %v4035 = vsel %vm1934, %v3690, 0
      %v4038 = vsel %vm1934, %v3691, 0
      %v4041 = vsel %vm1934, %v3692, 0
      %v4044 = vsel %vm1934, %v3693, 0
      %v4046 = vsel %vm2265, %v4018, 0
      %4048 = vmatprep.subr.mxu0 0.0
      %4049 = vmatpush1.msra.mxu0 %v4006
      %4050 = vmatprep.subr.mxu0 0.0
      %4051 = vmatpush1.msra.mxu0 %v4008
      %4052 = vmatprep.subr.mxu0 0.0
      %4053 = vmatpush1.msra.mxu0 %v4010
      %4054 = vmatprep.subr.mxu0 0.0
      %4055 = vmatpush1.msra.mxu0 %v4012
      %4056 = vmatprep.subr.mxu0 0.0
      %4057 = vmatpush1.msra.mxu0 %v4014
      %4058 = vmatprep.subr.mxu0 0.0
      %4059 = vmatpush1.msra.mxu0 %v4016
      %4060 = vmatprep.subr.mxu0 0.0
      %4061 = vmatpush1.msra.mxu0 %v4046
      %4062 = vmatprep.subr.mxu0 0.0
      %4063 = vmatpush1.msra.mxu0 0.0
      %4064 = vmatprep.subr.mxu0 0.0
      %4065 = vmatpush1.msra.mxu0 0.0
      %4066 = vmatprep.subr.mxu0 0.0
      %4067 = vmatpush1.msra.mxu0 0.0
      %4068 = vmatprep.subr.mxu0 0.0
      %4069 = vmatpush1.msra.mxu0 0.0
      %4070 = vmatprep.subr.mxu0 0.0
      %4071 = vmatpush1.msra.mxu0 0.0
      %4072 = vmatprep.subr.mxu0 0.0
      %4073 = vmatpush1.msra.mxu0 0.0
      %4074 = vmatprep.subr.mxu0 0.0
      %4075 = vmatpush1.msra.mxu0 0.0
      %4076 = vmatprep.subr.mxu0 0.0
      %4077 = vmatpush1.msra.mxu0 0.0
      %4078 = vmatprep.subr.mxu0 0.0
      %4079 = vmatpush1.msra.mxu0 0.0
      %4080 = vmatprep.subr.mxu0 0.0
      %4081 = vmatpush1.msra.mxu0 0.0
      %4082 = vmatprep.subr.mxu0 0.0
      %4083 = vmatpush1.msra.mxu0 0.0
      %4084 = vmatprep.subr.mxu0 0.0
      %4085 = vmatpush1.msra.mxu0 0.0
      %4086 = vmatprep.subr.mxu0 0.0
      %4087 = vmatpush1.msra.mxu0 0.0
      %4088 = vmatprep.subr.mxu0 0.0
      %4089 = vmatpush1.msra.mxu0 0.0
      %4090 = vmatprep.subr.mxu0 0.0
      %4091 = vmatpush1.msra.mxu0 0.0
      %4092 = vmatprep.subr.mxu0 0.0
      %4093 = vmatpush1.msra.mxu0 0.0
      %4094 = vmatprep.subr.mxu0 0.0
      %4095 = vmatpush1.msra.mxu0 0.0
      %4096 = vmatprep.subr.mxu0 0.0
      %4097 = vmatpush1.msra.mxu0 0.0
      %4098 = vmatprep.subr.mxu0 0.0
      %4099 = vmatpush1.msra.mxu0 0.0
      %4100 = vmatprep.subr.mxu0 0.0
      %4101 = vmatpush1.msra.mxu0 0.0
      %4102 = vmatprep.subr.mxu0 0.0
      %4103 = vmatpush1.msra.mxu0 0.0
      %4104 = vmatprep.subr.mxu0 0.0
      %4105 = vmatpush1.msra.mxu0 0.0
      %4106 = vmatprep.subr.mxu0 0.0
      %4107 = vmatpush1.msra.mxu0 0.0
      %4108 = vmatprep.subr.mxu0 0.0
      %4109 = vmatpush1.msra.mxu0 0.0
      %4110 = vmatprep.subr.mxu0 0.0
      %4111 = vmatpush1.msra.mxu0 0.0
      %4112 = vmatprep.mubr.f32.mxu0 0.0
      %4113 = vmatmul.mubr.f32.gmra.mrb[0].mxu0 %v4026
      %v4114 = vpop.f32.mrb[0].mxu0
      %v4115 = vadd.f32 0.0, %v4114
      %v4116 = vpop.f32.mrb[0].mxu0
      %4117 = vmatprep.mubr.f32.mxu0 0.0
      %4118 = vmatmul.mubr.f32.gmra.mrb[0].mxu0 %v4029
      %v4119 = vpop.f32.mrb[0].mxu0
      %v4120 = vadd.f32 0.0, %v4119
      %v4121 = vpop.f32.mrb[0].mxu0
      %4122 = vmatprep.mubr.f32.mxu0 0.0
      %4123 = vmatmul.mubr.f32.gmra.mrb[0].mxu0 %v4032
      %v4124 = vpop.f32.mrb[0].mxu0
      %v4125 = vadd.f32 0.0, %v4124
      %v4126 = vpop.f32.mrb[0].mxu0
      %4127 = vmatprep.mubr.f32.mxu0 0.0
      %4128 = vmatmul.mubr.f32.gmra.mrb[0].mxu0 %v4035
      %v4129 = vpop.f32.mrb[0].mxu0
      %v4130 = vadd.f32 0.0, %v4129
      %v4131 = vpop.f32.mrb[0].mxu0
      %4132 = vmatprep.mubr.f32.mxu0 0.0
      %4133 = vmatmul.mubr.f32.gmra.mrb[0].mxu0 %v4038
      %v4134 = vpop.f32.mrb[0].mxu0
      %v4135 = vadd.f32 0.0, %v4134
      %v4136 = vpop.f32.mrb[0].mxu0
      %4137 = vmatprep.mubr.f32.mxu0 0.0
      %4138 = vmatmul.mubr.f32.gmra.mrb[0].mxu0 %v4041
      %v4139 = vpop.f32.mrb[0].mxu0
      %v4140 = vadd.f32 0.0, %v4139
      %v4141 = vpop.f32.mrb[0].mxu0
      %4142 = vmatprep.mubr.f32.mxu0 0.0
      %4143 = vmatmul.mubr.f32.gmra.mrb[0].mxu0 %v4044
      %v4144 = vpop.f32.mrb[0].mxu0
      %v4145 = vadd.f32 0.0, %v4144
      %v4146 = vpop.f32.mrb[0].mxu0
      %4147 = vdwg.mxu0
      %4154 = vrot.lane.b32.xlu0 %v1330, 96
      %v4155 = vpop.permute.xlu0 %4154
      %4156 = vrot.lane.b32.xlu0 %v1331, 96
      %v4157 = vpop.permute.xlu0 %4156
      %4158 = vrot.lane.b32.xlu0 %v1332, 96
      %v4159 = vpop.permute.xlu0 %4158
      %4160 = vrot.lane.b32.xlu0 %v1333, 96
      %v4161 = vpop.permute.xlu0 %4160
      %4162 = vrot.lane.b32.xlu0 %v1334, 96
      %v4163 = vpop.permute.xlu0 %4162
      %4164 = vrot.lane.b32.xlu0 %v1335, 96
      %v4165 = vpop.permute.xlu0 %4164
      %4166 = vrot.lane.b32.xlu0 %v1336, 96
      %v4167 = vpop.permute.xlu0 %4166
      %v4175 = vsel %vm1934, %v3694, 0
      %v4178 = vsel %vm1934, %v3695, 0
      %v4181 = vsel %vm1934, %v3696, 0
      %v4184 = vsel %vm1934, %v3697, 0
      %v4187 = vsel %vm1934, %v3698, 0
      %v4190 = vsel %vm1934, %v3699, 0
      %v4193 = vsel %vm1934, %v3700, 0
      %v4195 = vsel %vm2265, %v4167, 0
      %4197 = vmatprep.subr.mxu0 0.0
      %4198 = vmatpush1.msra.mxu0 %v4155
      %4199 = vmatprep.subr.mxu0 0.0
      %4200 = vmatpush1.msra.mxu0 %v4157
      %4201 = vmatprep.subr.mxu0 0.0
      %4202 = vmatpush1.msra.mxu0 %v4159
      %4203 = vmatprep.subr.mxu0 0.0
      %4204 = vmatpush1.msra.mxu0 %v4161
      %4205 = vmatprep.subr.mxu0 0.0
      %4206 = vmatpush1.msra.mxu0 %v4163
      %4207 = vmatprep.subr.mxu0 0.0
      %4208 = vmatpush1.msra.mxu0 %v4165
      %4209 = vmatprep.subr.mxu0 0.0
      %4210 = vmatpush1.msra.mxu0 %v4195
      %4211 = vmatprep.subr.mxu0 0.0
      %4212 = vmatpush1.msra.mxu0 0.0
      %4213 = vmatprep.subr.mxu0 0.0
      %4214 = vmatpush1.msra.mxu0 0.0
      %4215 = vmatprep.subr.mxu0 0.0
      %4216 = vmatpush1.msra.mxu0 0.0
      %4217 = vmatprep.subr.mxu0 0.0
      %4218 = vmatpush1.msra.mxu0 0.0
      %4219 = vmatprep.subr.mxu0 0.0
      %4220 = vmatpush1.msra.mxu0 0.0
      %4221 = vmatprep.subr.mxu0 0.0
      %4222 = vmatpush1.msra.mxu0 0.0
      %4223 = vmatprep.subr.mxu0 0.0
      %4224 = vmatpush1.msra.mxu0 0.0
      %4225 = vmatprep.subr.mxu0 0.0
      %4226 = vmatpush1.msra.mxu0 0.0
      %4227 = vmatprep.subr.mxu0 0.0
      %4228 = vmatpush1.msra.mxu0 0.0
      %4229 = vmatprep.subr.mxu0 0.0
      %4230 = vmatpush1.msra.mxu0 0.0
      %4231 = vmatprep.subr.mxu0 0.0
      %4232 = vmatpush1.msra.mxu0 0.0
      %4233 = vmatprep.subr.mxu0 0.0
      %4234 = vmatpush1.msra.mxu0 0.0
      %4235 = vmatprep.subr.mxu0 0.0
      %4236 = vmatpush1.msra.mxu0 0.0
      %4237 = vmatprep.subr.mxu0 0.0
      %4238 = vmatpush1.msra.mxu0 0.0
      %4239 = vmatprep.subr.mxu0 0.0
      %4240 = vmatpush1.msra.mxu0 0.0
      %4241 = vmatprep.subr.mxu0 0.0
      %4242 = vmatpush1.msra.mxu0 0.0
      %4243 = vmatprep.subr.mxu0 0.0
      %4244 = vmatpush1.msra.mxu0 0.0
      %4245 = vmatprep.subr.mxu0 0.0
      %4246 = vmatpush1.msra.mxu0 0.0
      %4247 = vmatprep.subr.mxu0 0.0
      %4248 = vmatpush1.msra.mxu0 0.0
      %4249 = vmatprep.subr.mxu0 0.0
      %4250 = vmatpush1.msra.mxu0 0.0
      %4251 = vmatprep.subr.mxu0 0.0
      %4252 = vmatpush1.msra.mxu0 0.0
      %4253 = vmatprep.subr.mxu0 0.0
      %4254 = vmatpush1.msra.mxu0 0.0
      %4255 = vmatprep.subr.mxu0 0.0
      %4256 = vmatpush1.msra.mxu0 0.0
      %4257 = vmatprep.subr.mxu0 0.0
      %4258 = vmatpush1.msra.mxu0 0.0
      %4259 = vmatprep.subr.mxu0 0.0
      %4260 = vmatpush1.msra.mxu0 0.0
      %4261 = vmatprep.mubr.f32.mxu0 0.0
      %4262 = vmatmul.mubr.f32.gmra.mrb[0].mxu0 %v4175
      %v4263 = vpop.f32.mrb[0].mxu0
      %v4264 = vadd.f32 0.0, %v4263
      %v4265 = vpop.f32.mrb[0].mxu0
      %4266 = vmatprep.mubr.f32.mxu0 0.0
      %4267 = vmatmul.mubr.f32.gmra.mrb[0].mxu0 %v4178
      %v4268 = vpop.f32.mrb[0].mxu0
      %v4269 = vadd.f32 0.0, %v4268
      %v4270 = vpop.f32.mrb[0].mxu0
      %4271 = vmatprep.mubr.f32.mxu0 0.0
      %4272 = vmatmul.mubr.f32.gmra.mrb[0].mxu0 %v4181
      %v4273 = vpop.f32.mrb[0].mxu0
      %v4274 = vadd.f32 0.0, %v4273
      %v4275 = vpop.f32.mrb[0].mxu0
      %4276 = vmatprep.mubr.f32.mxu0 0.0
      %4277 = vmatmul.mubr.f32.gmra.mrb[0].mxu0 %v4184
      %v4278 = vpop.f32.mrb[0].mxu0
      %v4279 = vadd.f32 0.0, %v4278
      %v4280 = vpop.f32.mrb[0].mxu0
      %4281 = vmatprep.mubr.f32.mxu0 0.0
      %4282 = vmatmul.mubr.f32.gmra.mrb[0].mxu0 %v4187
      %v4283 = vpop.f32.mrb[0].mxu0
      %v4284 = vadd.f32 0.0, %v4283
      %v4285 = vpop.f32.mrb[0].mxu0
      %4286 = vmatprep.mubr.f32.mxu0 0.0
      %4287 = vmatmul.mubr.f32.gmra.mrb[0].mxu0 %v4190
      %v4288 = vpop.f32.mrb[0].mxu0
      %v4289 = vadd.f32 0.0, %v4288
      %v4290 = vpop.f32.mrb[0].mxu0
      %4291 = vmatprep.mubr.f32.mxu0 0.0
      %4292 = vmatmul.mubr.f32.gmra.mrb[0].mxu0 %v4193
      %v4293 = vpop.f32.mrb[0].mxu0
      %v4294 = vadd.f32 0.0, %v4293
      %v4295 = vpop.f32.mrb[0].mxu0
      %4296 = vdwg.mxu0
      %4325 = vrot.lane.b32.xlu0 %v3817, 32
      %v4326 = vpop.permute.xlu0 %4325
      %4327 = vrot.lane.b32.xlu0 %v3822, 32
      %v4328 = vpop.permute.xlu0 %4327
      %4329 = vrot.lane.b32.xlu0 %v3827, 32
      %v4330 = vpop.permute.xlu0 %4329
      %4331 = vrot.lane.b32.xlu0 %v3832, 32
      %v4332 = vpop.permute.xlu0 %4331
      %4333 = vrot.lane.b32.xlu0 %v3837, 32
      %v4334 = vpop.permute.xlu0 %4333
      %4335 = vrot.lane.b32.xlu0 %v3842, 32
      %v4336 = vpop.permute.xlu0 %4335
      %4337 = vrot.lane.b32.xlu0 %v3847, 32
      %v4338 = vpop.permute.xlu0 %4337
      %4339 = vrot.lane.b32.xlu0 %v3966, 32
      %v4340 = vpop.permute.xlu0 %4339
      %4341 = vrot.lane.b32.xlu0 %v3971, 32
      %v4342 = vpop.permute.xlu0 %4341
      %4343 = vrot.lane.b32.xlu0 %v3976, 32
      %v4344 = vpop.permute.xlu0 %4343
      %4345 = vrot.lane.b32.xlu0 %v3981, 32
      %v4346 = vpop.permute.xlu0 %4345
      %4347 = vrot.lane.b32.xlu0 %v3986, 32
      %v4348 = vpop.permute.xlu0 %4347
      %4349 = vrot.lane.b32.xlu0 %v3991, 32
      %v4350 = vpop.permute.xlu0 %4349
      %4351 = vrot.lane.b32.xlu0 %v3996, 32
      %v4352 = vpop.permute.xlu0 %4351
      %4353 = vrot.lane.b32.xlu0 %v4115, 32
      %v4354 = vpop.permute.xlu0 %4353
      %4355 = vrot.lane.b32.xlu0 %v4120, 32
      %v4356 = vpop.permute.xlu0 %4355
      %4357 = vrot.lane.b32.xlu0 %v4125, 32
      %v4358 = vpop.permute.xlu0 %4357
      %4359 = vrot.lane.b32.xlu0 %v4130, 32
      %v4360 = vpop.permute.xlu0 %4359
      %4361 = vrot.lane.b32.xlu0 %v4135, 32
      %v4362 = vpop.permute.xlu0 %4361
      %4363 = vrot.lane.b32.xlu0 %v4140, 32
      %v4364 = vpop.permute.xlu0 %4363
      %4365 = vrot.lane.b32.xlu0 %v4145, 32
      %v4366 = vpop.permute.xlu0 %4365
      %4367 = vrot.lane.b32.xlu0 %v4264, 32
      %v4368 = vpop.permute.xlu0 %4367
      %4369 = vrot.lane.b32.xlu0 %v4269, 32
      %v4370 = vpop.permute.xlu0 %4369
      %4371 = vrot.lane.b32.xlu0 %v4274, 32
      %v4372 = vpop.permute.xlu0 %4371
      %4373 = vrot.lane.b32.xlu0 %v4279, 32
      %v4374 = vpop.permute.xlu0 %4373
      %4375 = vrot.lane.b32.xlu0 %v4284, 32
      %v4376 = vpop.permute.xlu0 %4375
      %4377 = vrot.lane.b32.xlu0 %v4289, 32
      %v4378 = vpop.permute.xlu0 %4377
      %4379 = vrot.lane.b32.xlu0 %v4294, 32
      %v4380 = vpop.permute.xlu0 %4379
      %v4409 = vsel %vm1337, %v2336, %v4326
      %v4410 = vsel %vm1337, %v2341, %v4328
      %v4411 = vsel %vm1337, %v2346, %v4330
      %v4412 = vsel %vm1337, %v2351, %v4332
      %v4413 = vsel %vm1337, %v2356, %v4334
      %v4414 = vsel %vm1337, %v2361, %v4336
      %v4415 = vsel %vm1337, %v2366, %v4338
      %v4416 = vsel %vm1337, %v2460, %v4340
      %v4417 = vsel %vm1337, %v2465, %v4342
      %v4418 = vsel %vm1337, %v2470, %v4344
      %v4419 = vsel %vm1337, %v2475, %v4346
      %v4420 = vsel %vm1337, %v2480, %v4348
      %v4421 = vsel %vm1337, %v2485, %v4350
      %v4422 = vsel %vm1337, %v2490, %v4352
      %v4423 = vsel %vm1337, %v2584, %v4354
      %v4424 = vsel %vm1337, %v2589, %v4356
      %v4425 = vsel %vm1337, %v2594, %v4358
      %v4426 = vsel %vm1337, %v2599, %v4360
      %v4427 = vsel %vm1337, %v2604, %v4362
      %v4428 = vsel %vm1337, %v2609, %v4364
      %v4429 = vsel %vm1337, %v2614, %v4366
      %v4430 = vsel %vm1337, %v2708, %v4368
      %v4431 = vsel %vm1337, %v2713, %v4370
      %v4432 = vsel %vm1337, %v2718, %v4372
      %v4433 = vsel %vm1337, %v2723, %v4374
      %v4434 = vsel %vm1337, %v2728, %v4376
      %v4435 = vsel %vm1337, %v2733, %v4378
      %v4436 = vsel %vm1337, %v2738, %v4380
      %v4437 = vld [vmem:[%s7] sm:$0xff]
      %v4438 = vld [vmem:[%s7 + $0x8] sm:$0xff]
      %v4439 = vld [vmem:[%s7 + $0x10] sm:$0xff]
      %v4440 = vld [vmem:[%s7 + $0x18] sm:$0xff]
      %v4441 = vld [vmem:[%s7 + $0x20] sm:$0xff]
      %v4442 = vld [vmem:[%s7 + $0x28] sm:$0xff]
      %v4443 = vld [vmem:[%s7 + $0x30] sm:$0xff]
      %v4444 = vld [vmem:[%s7 + $0x38] sm:$0xff]
      %v4446 = vsel %vm760, %v4409, 0
      %v4449 = vsel %vm760, %v4410, 0
      %v4452 = vsel %vm760, %v4411, 0
      %v4455 = vsel %vm760, %v4412, 0
      %v4458 = vsel %vm760, %v4413, 0
      %v4461 = vsel %vm760, %v4414, 0
      %v4464 = vsel %vm760, %v4415, 0
      %4466 = vmatprep.subr.mxu0 0.0
      %4467 = vmatpush1.msra.mxu0 %v4437
      %4468 = vmatprep.subr.mxu0 0.0
      %4469 = vmatpush1.msra.mxu0 %v4438
      %4470 = vmatprep.subr.mxu0 0.0
      %4471 = vmatpush1.msra.mxu0 %v4439
      %4472 = vmatprep.subr.mxu0 0.0
      %4473 = vmatpush1.msra.mxu0 %v4440
      %4474 = vmatprep.subr.mxu0 0.0
      %4475 = vmatpush1.msra.mxu0 %v4441
      %4476 = vmatprep.subr.mxu0 0.0
      %4477 = vmatpush1.msra.mxu0 %v4442
      %4478 = vmatprep.subr.mxu0 0.0
      %4479 = vmatpush1.msra.mxu0 %v4443
      %4480 = vmatprep.subr.mxu0 0.0
      %4481 = vmatpush1.msra.mxu0 %v4444
      %4482 = vmatprep.subr.mxu0 0.0
      %4483 = vmatpush1.msra.mxu0 0.0
      %4484 = vmatprep.subr.mxu0 0.0
      %4485 = vmatpush1.msra.mxu0 0.0
      %4486 = vmatprep.subr.mxu0 0.0
      %4487 = vmatpush1.msra.mxu0 0.0
      %4488 = vmatprep.subr.mxu0 0.0
      %4489 = vmatpush1.msra.mxu0 0.0
      %4490 = vmatprep.subr.mxu0 0.0
      %4491 = vmatpush1.msra.mxu0 0.0
      %4492 = vmatprep.subr.mxu0 0.0
      %4493 = vmatpush1.msra.mxu0 0.0
      %4494 = vmatprep.subr.mxu0 0.0
      %4495 = vmatpush1.msra.mxu0 0.0
      %4496 = vmatprep.subr.mxu0 0.0
      %4497 = vmatpush1.msra.mxu0 0.0
      %4498 = vmatprep.subr.mxu0 0.0
      %4499 = vmatpush1.msra.mxu0 0.0
      %4500 = vmatprep.subr.mxu0 0.0
      %4501 = vmatpush1.msra.mxu0 0.0
      %4502 = vmatprep.subr.mxu0 0.0
      %4503 = vmatpush1.msra.mxu0 0.0
      %4504 = vmatprep.subr.mxu0 0.0
      %4505 = vmatpush1.msra.mxu0 0.0
      %4506 = vmatprep.subr.mxu0 0.0
      %4507 = vmatpush1.msra.mxu0 0.0
      %4508 = vmatprep.subr.mxu0 0.0
      %4509 = vmatpush1.msra.mxu0 0.0
      %4510 = vmatprep.subr.mxu0 0.0
      %4511 = vmatpush1.msra.mxu0 0.0
      %4512 = vmatprep.subr.mxu0 0.0
      %4513 = vmatpush1.msra.mxu0 0.0
      %4514 = vmatprep.subr.mxu0 0.0
      %4515 = vmatpush1.msra.mxu0 0.0
      %4516 = vmatprep.subr.mxu0 0.0
      %4517 = vmatpush1.msra.mxu0 0.0
      %4518 = vmatprep.subr.mxu0 0.0
      %4519 = vmatpush1.msra.mxu0 0.0
      %4520 = vmatprep.subr.mxu0 0.0
      %4521 = vmatpush1.msra.mxu0 0.0
      %4522 = vmatprep.subr.mxu0 0.0
      %4523 = vmatpush1.msra.mxu0 0.0
      %4524 = vmatprep.subr.mxu0 0.0
      %4525 = vmatpush1.msra.mxu0 0.0
      %4526 = vmatprep.subr.mxu0 0.0
      %4527 = vmatpush1.msra.mxu0 0.0
      %4528 = vmatprep.subr.mxu0 0.0
      %4529 = vmatpush1.msra.mxu0 0.0
      %4530 = vmatprep.mubr.f32.mxu0 0.0
      %4531 = vmatmul.mubr.f32.gmra.mrb[0].mxu0 %v4446
      %v4532 = vpop.f32.mrb[0].mxu0
      %v4533 = vadd.f32 0.0, %v4532
      %v4534 = vpop.f32.mrb[0].mxu0
      %4535 = vmatprep.mubr.f32.mxu0 0.0
      %4536 = vmatmul.mubr.f32.gmra.mrb[0].mxu0 %v4449
      %v4537 = vpop.f32.mrb[0].mxu0
      %v4538 = vadd.f32 0.0, %v4537
      %v4539 = vpop.f32.mrb[0].mxu0
      %4540 = vmatprep.mubr.f32.mxu0 0.0
      %4541 = vmatmul.mubr.f32.gmra.mrb[0].mxu0 %v4452
      %v4542 = vpop.f32.mrb[0].mxu0
      %v4543 = vadd.f32 0.0, %v4542
      %v4544 = vpop.f32.mrb[0].mxu0
      %4545 = vmatprep.mubr.f32.mxu0 0.0
      %4546 = vmatmul.mubr.f32.gmra.mrb[0].mxu0 %v4455
      %v4547 = vpop.f32.mrb[0].mxu0
      %v4548 = vadd.f32 0.0, %v4547
      %v4549 = vpop.f32.mrb[0].mxu0
      %4550 = vmatprep.mubr.f32.mxu0 0.0
      %4551 = vmatmul.mubr.f32.gmra.mrb[0].mxu0 %v4458
      %v4552 = vpop.f32.mrb[0].mxu0
      %v4553 = vadd.f32 0.0, %v4552
      %v4554 = vpop.f32.mrb[0].mxu0
      %4555 = vmatprep.mubr.f32.mxu0 0.0
      %4556 = vmatmul.mubr.f32.gmra.mrb[0].mxu0 %v4461
      %v4557 = vpop.f32.mrb[0].mxu0
      %v4558 = vadd.f32 0.0, %v4557
      %v4559 = vpop.f32.mrb[0].mxu0
      %4560 = vmatprep.mubr.f32.mxu0 0.0
      %4561 = vmatmul.mubr.f32.gmra.mrb[0].mxu0 %v4464
      %v4562 = vpop.f32.mrb[0].mxu0
      %v4563 = vadd.f32 0.0, %v4562
      %v4564 = vpop.f32.mrb[0].mxu0
      %4565 = vdwg.mxu0
      %v4567 = vsel %vm760, %v4416, 0
      %v4570 = vsel %vm760, %v4417, 0
      %v4573 = vsel %vm760, %v4418, 0
      %v4576 = vsel %vm760, %v4419, 0
      %v4579 = vsel %vm760, %v4420, 0
      %v4582 = vsel %vm760, %v4421, 0
      %v4585 = vsel %vm760, %v4422, 0
      %4587 = vmatprep.subr.mxu0 0.0
      %4588 = vmatpush1.msra.mxu0 %v4437
      %4589 = vmatprep.subr.mxu0 0.0
      %4590 = vmatpush1.msra.mxu0 %v4438
      %4591 = vmatprep.subr.mxu0 0.0
      %4592 = vmatpush1.msra.mxu0 %v4439
      %4593 = vmatprep.subr.mxu0 0.0
      %4594 = vmatpush1.msra.mxu0 %v4440
      %4595 = vmatprep.subr.mxu0 0.0
      %4596 = vmatpush1.msra.mxu0 %v4441
      %4597 = vmatprep.subr.mxu0 0.0
      %4598 = vmatpush1.msra.mxu0 %v4442
      %4599 = vmatprep.subr.mxu0 0.0
      %4600 = vmatpush1.msra.mxu0 %v4443
      %4601 = vmatprep.subr.mxu0 0.0
      %4602 = vmatpush1.msra.mxu0 %v4444
      %4603 = vmatprep.subr.mxu0 0.0
      %4604 = vmatpush1.msra.mxu0 0.0
      %4605 = vmatprep.subr.mxu0 0.0
      %4606 = vmatpush1.msra.mxu0 0.0
      %4607 = vmatprep.subr.mxu0 0.0
      %4608 = vmatpush1.msra.mxu0 0.0
      %4609 = vmatprep.subr.mxu0 0.0
      %4610 = vmatpush1.msra.mxu0 0.0
      %4611 = vmatprep.subr.mxu0 0.0
      %4612 = vmatpush1.msra.mxu0 0.0
      %4613 = vmatprep.subr.mxu0 0.0
      %4614 = vmatpush1.msra.mxu0 0.0
      %4615 = vmatprep.subr.mxu0 0.0
      %4616 = vmatpush1.msra.mxu0 0.0
      %4617 = vmatprep.subr.mxu0 0.0
      %4618 = vmatpush1.msra.mxu0 0.0
      %4619 = vmatprep.subr.mxu0 0.0
      %4620 = vmatpush1.msra.mxu0 0.0
      %4621 = vmatprep.subr.mxu0 0.0
      %4622 = vmatpush1.msra.mxu0 0.0
      %4623 = vmatprep.subr.mxu0 0.0
      %4624 = vmatpush1.msra.mxu0 0.0
      %4625 = vmatprep.subr.mxu0 0.0
      %4626 = vmatpush1.msra.mxu0 0.0
      %4627 = vmatprep.subr.mxu0 0.0
      %4628 = vmatpush1.msra.mxu0 0.0
      %4629 = vmatprep.subr.mxu0 0.0
      %4630 = vmatpush1.msra.mxu0 0.0
      %4631 = vmatprep.subr.mxu0 0.0
      %4632 = vmatpush1.msra.mxu0 0.0
      %4633 = vmatprep.subr.mxu0 0.0
      %4634 = vmatpush1.msra.mxu0 0.0
      %4635 = vmatprep.subr.mxu0 0.0
      %4636 = vmatpush1.msra.mxu0 0.0
      %4637 = vmatprep.subr.mxu0 0.0
      %4638 = vmatpush1.msra.mxu0 0.0
      %4639 = vmatprep.subr.mxu0 0.0
      %4640 = vmatpush1.msra.mxu0 0.0
      %4641 = vmatprep.subr.mxu0 0.0
      %4642 = vmatpush1.msra.mxu0 0.0
      %4643 = vmatprep.subr.mxu0 0.0
      %4644 = vmatpush1.msra.mxu0 0.0
      %4645 = vmatprep.subr.mxu0 0.0
      %4646 = vmatpush1.msra.mxu0 0.0
      %4647 = vmatprep.subr.mxu0 0.0
      %4648 = vmatpush1.msra.mxu0 0.0
      %4649 = vmatprep.subr.mxu0 0.0
      %4650 = vmatpush1.msra.mxu0 0.0
      %4651 = vmatprep.mubr.f32.mxu0 0.0
      %4652 = vmatmul.mubr.f32.gmra.mrb[0].mxu0 %v4567
      %v4653 = vpop.f32.mrb[0].mxu0
      %v4654 = vadd.f32 0.0, %v4653
      %v4655 = vpop.f32.mrb[0].mxu0
      %4656 = vmatprep.mubr.f32.mxu0 0.0
      %4657 = vmatmul.mubr.f32.gmra.mrb[0].mxu0 %v4570
      %v4658 = vpop.f32.mrb[0].mxu0
      %v4659 = vadd.f32 0.0, %v4658
      %v4660 = vpop.f32.mrb[0].mxu0
      %4661 = vmatprep.mubr.f32.mxu0 0.0
      %4662 = vmatmul.mubr.f32.gmra.mrb[0].mxu0 %v4573
      %v4663 = vpop.f32.mrb[0].mxu0
      %v4664 = vadd.f32 0.0, %v4663
      %v4665 = vpop.f32.mrb[0].mxu0
      %4666 = vmatprep.mubr.f32.mxu0 0.0
      %4667 = vmatmul.mubr.f32.gmra.mrb[0].mxu0 %v4576
      %v4668 = vpop.f32.mrb[0].mxu0
      %v4669 = vadd.f32 0.0, %v4668
      %v4670 = vpop.f32.mrb[0].mxu0
      %4671 = vmatprep.mubr.f32.mxu0 0.0
      %4672 = vmatmul.mubr.f32.gmra.mrb[0].mxu0 %v4579
      %v4673 = vpop.f32.mrb[0].mxu0
      %v4674 = vadd.f32 0.0, %v4673
      %v4675 = vpop.f32.mrb[0].mxu0
      %4676 = vmatprep.mubr.f32.mxu0 0.0
      %4677 = vmatmul.mubr.f32.gmra.mrb[0].mxu0 %v4582
      %v4678 = vpop.f32.mrb[0].mxu0
      %v4679 = vadd.f32 0.0, %v4678
      %v4680 = vpop.f32.mrb[0].mxu0
      %4681 = vmatprep.mubr.f32.mxu0 0.0
      %4682 = vmatmul.mubr.f32.gmra.mrb[0].mxu0 %v4585
      %v4683 = vpop.f32.mrb[0].mxu0
      %v4684 = vadd.f32 0.0, %v4683
      %v4685 = vpop.f32.mrb[0].mxu0
      %4686 = vdwg.mxu0
      %v4688 = vsel %vm760, %v4423, 0
      %v4691 = vsel %vm760, %v4424, 0
      %v4694 = vsel %vm760, %v4425, 0
      %v4697 = vsel %vm760, %v4426, 0
      %v4700 = vsel %vm760, %v4427, 0
      %v4703 = vsel %vm760, %v4428, 0
      %v4706 = vsel %vm760, %v4429, 0
      %4708 = vmatprep.subr.mxu0 0.0
      %4709 = vmatpush1.msra.mxu0 %v4437
      %4710 = vmatprep.subr.mxu0 0.0
      %4711 = vmatpush1.msra.mxu0 %v4438
      %4712 = vmatprep.subr.mxu0 0.0
      %4713 = vmatpush1.msra.mxu0 %v4439
      %4714 = vmatprep.subr.mxu0 0.0
      %4715 = vmatpush1.msra.mxu0 %v4440
      %4716 = vmatprep.subr.mxu0 0.0
      %4717 = vmatpush1.msra.mxu0 %v4441
      %4718 = vmatprep.subr.mxu0 0.0
      %4719 = vmatpush1.msra.mxu0 %v4442
      %4720 = vmatprep.subr.mxu0 0.0
      %4721 = vmatpush1.msra.mxu0 %v4443
      %4722 = vmatprep.subr.mxu0 0.0
      %4723 = vmatpush1.msra.mxu0 %v4444
      %4724 = vmatprep.subr.mxu0 0.0
      %4725 = vmatpush1.msra.mxu0 0.0
      %4726 = vmatprep.subr.mxu0 0.0
      %4727 = vmatpush1.msra.mxu0 0.0
      %4728 = vmatprep.subr.mxu0 0.0
      %4729 = vmatpush1.msra.mxu0 0.0
      %4730 = vmatprep.subr.mxu0 0.0
      %4731 = vmatpush1.msra.mxu0 0.0
      %4732 = vmatprep.subr.mxu0 0.0
      %4733 = vmatpush1.msra.mxu0 0.0
      %4734 = vmatprep.subr.mxu0 0.0
      %4735 = vmatpush1.msra.mxu0 0.0
      %4736 = vmatprep.subr.mxu0 0.0
      %4737 = vmatpush1.msra.mxu0 0.0
      %4738 = vmatprep.subr.mxu0 0.0
      %4739 = vmatpush1.msra.mxu0 0.0
      %4740 = vmatprep.subr.mxu0 0.0
      %4741 = vmatpush1.msra.mxu0 0.0
      %4742 = vmatprep.subr.mxu0 0.0
      %4743 = vmatpush1.msra.mxu0 0.0
      %4744 = vmatprep.subr.mxu0 0.0
      %4745 = vmatpush1.msra.mxu0 0.0
      %4746 = vmatprep.subr.mxu0 0.0
      %4747 = vmatpush1.msra.mxu0 0.0
      %4748 = vmatprep.subr.mxu0 0.0
      %4749 = vmatpush1.msra.mxu0 0.0
      %4750 = vmatprep.subr.mxu0 0.0
      %4751 = vmatpush1.msra.mxu0 0.0
      %4752 = vmatprep.subr.mxu0 0.0
      %4753 = vmatpush1.msra.mxu0 0.0
      %4754 = vmatprep.subr.mxu0 0.0
      %4755 = vmatpush1.msra.mxu0 0.0
      %4756 = vmatprep.subr.mxu0 0.0
      %4757 = vmatpush1.msra.mxu0 0.0
      %4758 = vmatprep.subr.mxu0 0.0
      %4759 = vmatpush1.msra.mxu0 0.0
      %4760 = vmatprep.subr.mxu0 0.0
      %4761 = vmatpush1.msra.mxu0 0.0
      %4762 = vmatprep.subr.mxu0 0.0
      %4763 = vmatpush1.msra.mxu0 0.0
      %4764 = vmatprep.subr.mxu0 0.0
      %4765 = vmatpush1.msra.mxu0 0.0
      %4766 = vmatprep.subr.mxu0 0.0
      %4767 = vmatpush1.msra.mxu0 0.0
      %4768 = vmatprep.subr.mxu0 0.0
      %4769 = vmatpush1.msra.mxu0 0.0
      %4770 = vmatprep.subr.mxu0 0.0
      %4771 = vmatpush1.msra.mxu0 0.0
      %4772 = vmatprep.mubr.f32.mxu0 0.0
      %4773 = vmatmul.mubr.f32.gmra.mrb[0].mxu0 %v4688
      %v4774 = vpop.f32.mrb[0].mxu0
      %v4775 = vadd.f32 0.0, %v4774
      %v4776 = vpop.f32.mrb[0].mxu0
      %4777 = vmatprep.mubr.f32.mxu0 0.0
      %4778 = vmatmul.mubr.f32.gmra.mrb[0].mxu0 %v4691
      %v4779 = vpop.f32.mrb[0].mxu0
      %v4780 = vadd.f32 0.0, %v4779
      %v4781 = vpop.f32.mrb[0].mxu0
      %4782 = vmatprep.mubr.f32.mxu0 0.0
      %4783 = vmatmul.mubr.f32.gmra.mrb[0].mxu0 %v4694
      %v4784 = vpop.f32.mrb[0].mxu0
      %v4785 = vadd.f32 0.0, %v4784
      %v4786 = vpop.f32.mrb[0].mxu0
      %4787 = vmatprep.mubr.f32.mxu0 0.0
      %4788 = vmatmul.mubr.f32.gmra.mrb[0].mxu0 %v4697
      %v4789 = vpop.f32.mrb[0].mxu0
      %v4790 = vadd.f32 0.0, %v4789
      %v4791 = vpop.f32.mrb[0].mxu0
      %4792 = vmatprep.mubr.f32.mxu0 0.0
      %4793 = vmatmul.mubr.f32.gmra.mrb[0].mxu0 %v4700
      %v4794 = vpop.f32.mrb[0].mxu0
      %v4795 = vadd.f32 0.0, %v4794
      %v4796 = vpop.f32.mrb[0].mxu0
      %4797 = vmatprep.mubr.f32.mxu0 0.0
      %4798 = vmatmul.mubr.f32.gmra.mrb[0].mxu0 %v4703
      %v4799 = vpop.f32.mrb[0].mxu0
      %v4800 = vadd.f32 0.0, %v4799
      %v4801 = vpop.f32.mrb[0].mxu0
      %4802 = vmatprep.mubr.f32.mxu0 0.0
      %4803 = vmatmul.mubr.f32.gmra.mrb[0].mxu0 %v4706
      %v4804 = vpop.f32.mrb[0].mxu0
      %v4805 = vadd.f32 0.0, %v4804
      %v4806 = vpop.f32.mrb[0].mxu0
      %4807 = vdwg.mxu0
      %v4809 = vsel %vm760, %v4430, 0
      %v4812 = vsel %vm760, %v4431, 0
      %v4815 = vsel %vm760, %v4432, 0
      %v4818 = vsel %vm760, %v4433, 0
      %v4821 = vsel %vm760, %v4434, 0
      %v4824 = vsel %vm760, %v4435, 0
      %v4827 = vsel %vm760, %v4436, 0
      %4829 = vmatprep.subr.mxu0 0.0
      %4830 = vmatpush1.msra.mxu0 %v4437
      %4831 = vmatprep.subr.mxu0 0.0
      %4832 = vmatpush1.msra.mxu0 %v4438
      %4833 = vmatprep.subr.mxu0 0.0
      %4834 = vmatpush1.msra.mxu0 %v4439
      %4835 = vmatprep.subr.mxu0 0.0
      %4836 = vmatpush1.msra.mxu0 %v4440
      %4837 = vmatprep.subr.mxu0 0.0
      %4838 = vmatpush1.msra.mxu0 %v4441
      %4839 = vmatprep.subr.mxu0 0.0
      %4840 = vmatpush1.msra.mxu0 %v4442
      %4841 = vmatprep.subr.mxu0 0.0
      %4842 = vmatpush1.msra.mxu0 %v4443
      %4843 = vmatprep.subr.mxu0 0.0
      %4844 = vmatpush1.msra.mxu0 %v4444
      %4845 = vmatprep.subr.mxu0 0.0
      %4846 = vmatpush1.msra.mxu0 0.0
      %4847 = vmatprep.subr.mxu0 0.0
      %4848 = vmatpush1.msra.mxu0 0.0
      %4849 = vmatprep.subr.mxu0 0.0
      %4850 = vmatpush1.msra.mxu0 0.0
      %4851 = vmatprep.subr.mxu0 0.0
      %4852 = vmatpush1.msra.mxu0 0.0
      %4853 = vmatprep.subr.mxu0 0.0
      %4854 = vmatpush1.msra.mxu0 0.0
      %4855 = vmatprep.subr.mxu0 0.0
      %4856 = vmatpush1.msra.mxu0 0.0
      %4857 = vmatprep.subr.mxu0 0.0
      %4858 = vmatpush1.msra.mxu0 0.0
      %4859 = vmatprep.subr.mxu0 0.0
      %4860 = vmatpush1.msra.mxu0 0.0
      %4861 = vmatprep.subr.mxu0 0.0
      %4862 = vmatpush1.msra.mxu0 0.0
      %4863 = vmatprep.subr.mxu0 0.0
      %4864 = vmatpush1.msra.mxu0 0.0
      %4865 = vmatprep.subr.mxu0 0.0
      %4866 = vmatpush1.msra.mxu0 0.0
      %4867 = vmatprep.subr.mxu0 0.0
      %4868 = vmatpush1.msra.mxu0 0.0
      %4869 = vmatprep.subr.mxu0 0.0
      %4870 = vmatpush1.msra.mxu0 0.0
      %4871 = vmatprep.subr.mxu0 0.0
      %4872 = vmatpush1.msra.mxu0 0.0
      %4873 = vmatprep.subr.mxu0 0.0
      %4874 = vmatpush1.msra.mxu0 0.0
      %4875 = vmatprep.subr.mxu0 0.0
      %4876 = vmatpush1.msra.mxu0 0.0
      %4877 = vmatprep.subr.mxu0 0.0
      %4878 = vmatpush1.msra.mxu0 0.0
      %4879 = vmatprep.subr.mxu0 0.0
      %4880 = vmatpush1.msra.mxu0 0.0
      %4881 = vmatprep.subr.mxu0 0.0
      %4882 = vmatpush1.msra.mxu0 0.0
      %4883 = vmatprep.subr.mxu0 0.0
      %4884 = vmatpush1.msra.mxu0 0.0
      %4885 = vmatprep.subr.mxu0 0.0
      %4886 = vmatpush1.msra.mxu0 0.0
      %4887 = vmatprep.subr.mxu0 0.0
      %4888 = vmatpush1.msra.mxu0 0.0
      %4889 = vmatprep.subr.mxu0 0.0
      %4890 = vmatpush1.msra.mxu0 0.0
      %4891 = vmatprep.subr.mxu0 0.0
      %4892 = vmatpush1.msra.mxu0 0.0
      %4893 = vmatprep.mubr.f32.mxu0 0.0
      %4894 = vmatmul.mubr.f32.gmra.mrb[0].mxu0 %v4809
      %v4895 = vpop.f32.mrb[0].mxu0
      %v4896 = vadd.f32 0.0, %v4895
      %v4897 = vpop.f32.mrb[0].mxu0
      %4898 = vmatprep.mubr.f32.mxu0 0.0
      %4899 = vmatmul.mubr.f32.gmra.mrb[0].mxu0 %v4812
      %v4900 = vpop.f32.mrb[0].mxu0
      %v4901 = vadd.f32 0.0, %v4900
      %v4902 = vpop.f32.mrb[0].mxu0
      %4903 = vmatprep.mubr.f32.mxu0 0.0
      %4904 = vmatmul.mubr.f32.gmra.mrb[0].mxu0 %v4815
      %v4905 = vpop.f32.mrb[0].mxu0
      %v4906 = vadd.f32 0.0, %v4905
      %v4907 = vpop.f32.mrb[0].mxu0
      %4908 = vmatprep.mubr.f32.mxu0 0.0
      %4909 = vmatmul.mubr.f32.gmra.mrb[0].mxu0 %v4818
      %v4910 = vpop.f32.mrb[0].mxu0
      %v4911 = vadd.f32 0.0, %v4910
      %v4912 = vpop.f32.mrb[0].mxu0
      %4913 = vmatprep.mubr.f32.mxu0 0.0
      %4914 = vmatmul.mubr.f32.gmra.mrb[0].mxu0 %v4821
      %v4915 = vpop.f32.mrb[0].mxu0
      %v4916 = vadd.f32 0.0, %v4915
      %v4917 = vpop.f32.mrb[0].mxu0
      %4918 = vmatprep.mubr.f32.mxu0 0.0
      %4919 = vmatmul.mubr.f32.gmra.mrb[0].mxu0 %v4824
      %v4920 = vpop.f32.mrb[0].mxu0
      %v4921 = vadd.f32 0.0, %v4920
      %v4922 = vpop.f32.mrb[0].mxu0
      %4923 = vmatprep.mubr.f32.mxu0 0.0
      %4924 = vmatmul.mubr.f32.gmra.mrb[0].mxu0 %v4827
      %v4925 = vpop.f32.mrb[0].mxu0
      %v4926 = vadd.f32 0.0, %v4925
      %v4927 = vpop.f32.mrb[0].mxu0
      %4928 = vdwg.mxu0
      %v4929 = vld [vmem:[%s8] sm:$0x1]
      %v4930 = vld [vmem:[%s9] sm:$0x1]
      %v4931 = vsel %vm760, %v4533, 0.0
      %4932 = vadd.xlane.f32.xlu0 %v4931
      %v4933 = vpop.xlane.xlu0 %4932
      %v4934 = vsel %vm760, %v4538, 0.0
      %4935 = vadd.xlane.f32.xlu0 %v4934
      %v4936 = vpop.xlane.xlu0 %4935
      %v4937 = vsel %vm760, %v4543, 0.0
      %4938 = vadd.xlane.f32.xlu0 %v4937
      %v4939 = vpop.xlane.xlu0 %4938
      %v4940 = vsel %vm760, %v4548, 0.0
      %4941 = vadd.xlane.f32.xlu0 %v4940
      %v4942 = vpop.xlane.xlu0 %4941
      %v4943 = vsel %vm760, %v4553, 0.0
      %4944 = vadd.xlane.f32.xlu0 %v4943
      %v4945 = vpop.xlane.xlu0 %4944
      %v4946 = vsel %vm760, %v4558, 0.0
      %4947 = vadd.xlane.f32.xlu0 %v4946
      %v4948 = vpop.xlane.xlu0 %4947
      %v4949 = vsel %vm779, %v4563, 0.0
      %4950 = vadd.xlane.f32.xlu0 %v4949
      %v4951 = vpop.xlane.xlu0 %4950
      %v4952 = vsel %vm760, %v4654, 0.0
      %4953 = vadd.xlane.f32.xlu0 %v4952
      %v4954 = vpop.xlane.xlu0 %4953
      %v4955 = vsel %vm760, %v4659, 0.0
      %4956 = vadd.xlane.f32.xlu0 %v4955
      %v4957 = vpop.xlane.xlu0 %4956
      %v4958 = vsel %vm760, %v4664, 0.0
      %4959 = vadd.xlane.f32.xlu0 %v4958
      %v4960 = vpop.xlane.xlu0 %4959
      %v4961 = vsel %vm760, %v4669, 0.0
      %4962 = vadd.xlane.f32.xlu0 %v4961
      %v4963 = vpop.xlane.xlu0 %4962
      %v4964 = vsel %vm760, %v4674, 0.0
      %4965 = vadd.xlane.f32.xlu0 %v4964
      %v4966 = vpop.xlane.xlu0 %4965
      %v4967 = vsel %vm760, %v4679, 0.0
      %4968 = vadd.xlane.f32.xlu0 %v4967
      %v4969 = vpop.xlane.xlu0 %4968
      %v4970 = vsel %vm779, %v4684, 0.0
      %4971 = vadd.xlane.f32.xlu0 %v4970
      %v4972 = vpop.xlane.xlu0 %4971
      %v4973 = vsel %vm760, %v4775, 0.0
      %4974 = vadd.xlane.f32.xlu0 %v4973
      %v4975 = vpop.xlane.xlu0 %4974
      %v4976 = vsel %vm760, %v4780, 0.0
      %4977 = vadd.xlane.f32.xlu0 %v4976
      %v4978 = vpop.xlane.xlu0 %4977
      %v4979 = vsel %vm760, %v4785, 0.0
      %4980 = vadd.xlane.f32.xlu0 %v4979
      %v4981 = vpop.xlane.xlu0 %4980
      %v4982 = vsel %vm760, %v4790, 0.0
      %4983 = vadd.xlane.f32.xlu0 %v4982
      %v4984 = vpop.xlane.xlu0 %4983
      %v4985 = vsel %vm760, %v4795, 0.0
      %4986 = vadd.xlane.f32.xlu0 %v4985
      %v4987 = vpop.xlane.xlu0 %4986
      %v4988 = vsel %vm760, %v4800, 0.0
      %4989 = vadd.xlane.f32.xlu0 %v4988
      %v4990 = vpop.xlane.xlu0 %4989
      %v4991 = vsel %vm779, %v4805, 0.0
      %4992 = vadd.xlane.f32.xlu0 %v4991
      %v4993 = vpop.xlane.xlu0 %4992
      %v4994 = vsel %vm760, %v4896, 0.0
      %4995 = vadd.xlane.f32.xlu0 %v4994
      %v4996 = vpop.xlane.xlu0 %4995
      %v4997 = vsel %vm760, %v4901, 0.0
      %4998 = vadd.xlane.f32.xlu0 %v4997
      %v4999 = vpop.xlane.xlu0 %4998
      %v5000 = vsel %vm760, %v4906, 0.0
      %5001 = vadd.xlane.f32.xlu0 %v5000
      %v5002 = vpop.xlane.xlu0 %5001
      %v5003 = vsel %vm760, %v4911, 0.0
      %5004 = vadd.xlane.f32.xlu0 %v5003
      %v5005 = vpop.xlane.xlu0 %5004
      %v5006 = vsel %vm760, %v4916, 0.0
      %5007 = vadd.xlane.f32.xlu0 %v5006
      %v5008 = vpop.xlane.xlu0 %5007
      %v5009 = vsel %vm760, %v4921, 0.0
      %5010 = vadd.xlane.f32.xlu0 %v5009
      %v5011 = vpop.xlane.xlu0 %5010
      %v5012 = vsel %vm779, %v4926, 0.0
      %5013 = vadd.xlane.f32.xlu0 %v5012
      %v5014 = vpop.xlane.xlu0 %5013
      %v5015 = vmul.f32 %v4933, %v846
      %v5016 = vmul.f32 %v4936, %v846
      %v5017 = vmul.f32 %v4939, %v846
      %v5018 = vmul.f32 %v4942, %v846
      %v5019 = vmul.f32 %v4945, %v846
      %v5020 = vmul.f32 %v4948, %v846
      %v5021 = vmul.f32 %v4951, %v846
      %v5022 = vmul.f32 %v4954, %v846
      %v5023 = vmul.f32 %v4957, %v846
      %v5024 = vmul.f32 %v4960, %v846
      %v5025 = vmul.f32 %v4963, %v846
      %v5026 = vmul.f32 %v4966, %v846
      %v5027 = vmul.f32 %v4969, %v846
      %v5028 = vmul.f32 %v4972, %v846
      %v5029 = vmul.f32 %v4975, %v846
      %v5030 = vmul.f32 %v4978, %v846
      %v5031 = vmul.f32 %v4981, %v846
      %v5032 = vmul.f32 %v4984, %v846
      %v5033 = vmul.f32 %v4987, %v846
      %v5034 = vmul.f32 %v4990, %v846
      %v5035 = vmul.f32 %v4993, %v846
      %v5036 = vmul.f32 %v4996, %v846
      %v5037 = vmul.f32 %v4999, %v846
      %v5038 = vmul.f32 %v5002, %v846
      %v5039 = vmul.f32 %v5005, %v846
      %v5040 = vmul.f32 %v5008, %v846
      %v5041 = vmul.f32 %v5011, %v846
      %v5042 = vmul.f32 %v5014, %v846
      %v5043 = vsub.f32 %v4533, %v5015
      %v5044 = vsub.f32 %v4538, %v5016
      %v5045 = vsub.f32 %v4543, %v5017
      %v5046 = vsub.f32 %v4548, %v5018
      %v5047 = vsub.f32 %v4553, %v5019
      %v5048 = vsub.f32 %v4558, %v5020
      %v5049 = vsub.f32 %v4563, %v5021
      %v5050 = vsub.f32 %v4654, %v5022
      %v5051 = vsub.f32 %v4659, %v5023
      %v5052 = vsub.f32 %v4664, %v5024
      %v5053 = vsub.f32 %v4669, %v5025
      %v5054 = vsub.f32 %v4674, %v5026
      %v5055 = vsub.f32 %v4679, %v5027
      %v5056 = vsub.f32 %v4684, %v5028
      %v5057 = vsub.f32 %v4775, %v5029
      %v5058 = vsub.f32 %v4780, %v5030
      %v5059 = vsub.f32 %v4785, %v5031
      %v5060 = vsub.f32 %v4790, %v5032
      %v5061 = vsub.f32 %v4795, %v5033
      %v5062 = vsub.f32 %v4800, %v5034
      %v5063 = vsub.f32 %v4805, %v5035
      %v5064 = vsub.f32 %v4896, %v5036
      %v5065 = vsub.f32 %v4901, %v5037
      %v5066 = vsub.f32 %v4906, %v5038
      %v5067 = vsub.f32 %v4911, %v5039
      %v5068 = vsub.f32 %v4916, %v5040
      %v5069 = vsub.f32 %v4921, %v5041
      %v5070 = vsub.f32 %v4926, %v5042
      %v5071 = vmul.f32 %v5043, %v5043
      %v5072 = vmul.f32 %v5044, %v5044
      %v5073 = vmul.f32 %v5045, %v5045
      %v5074 = vmul.f32 %v5046, %v5046
      %v5075 = vmul.f32 %v5047, %v5047
      %v5076 = vmul.f32 %v5048, %v5048
      %v5077 = vmul.f32 %v5049, %v5049
      %v5078 = vmul.f32 %v5050, %v5050
      %v5079 = vmul.f32 %v5051, %v5051
      %v5080 = vmul.f32 %v5052, %v5052
      %v5081 = vmul.f32 %v5053, %v5053
      %v5082 = vmul.f32 %v5054, %v5054
      %v5083 = vmul.f32 %v5055, %v5055
      %v5084 = vmul.f32 %v5056, %v5056
      %v5085 = vmul.f32 %v5057, %v5057
      %v5086 = vmul.f32 %v5058, %v5058
      %v5087 = vmul.f32 %v5059, %v5059
      %v5088 = vmul.f32 %v5060, %v5060
      %v5089 = vmul.f32 %v5061, %v5061
      %v5090 = vmul.f32 %v5062, %v5062
      %v5091 = vmul.f32 %v5063, %v5063
      %v5092 = vmul.f32 %v5064, %v5064
      %v5093 = vmul.f32 %v5065, %v5065
      %v5094 = vmul.f32 %v5066, %v5066
      %v5095 = vmul.f32 %v5067, %v5067
      %v5096 = vmul.f32 %v5068, %v5068
      %v5097 = vmul.f32 %v5069, %v5069
      %v5098 = vmul.f32 %v5070, %v5070
      %v5099 = vsel %vm760, %v5071, 0.0
      %5100 = vadd.xlane.f32.xlu0 %v5099
      %v5101 = vpop.xlane.xlu0 %5100
      %v5102 = vsel %vm760, %v5072, 0.0
      %5103 = vadd.xlane.f32.xlu0 %v5102
      %v5104 = vpop.xlane.xlu0 %5103
      %v5105 = vsel %vm760, %v5073, 0.0
      %5106 = vadd.xlane.f32.xlu0 %v5105
      %v5107 = vpop.xlane.xlu0 %5106
      %v5108 = vsel %vm760, %v5074, 0.0
      %5109 = vadd.xlane.f32.xlu0 %v5108
      %v5110 = vpop.xlane.xlu0 %5109
      %v5111 = vsel %vm760, %v5075, 0.0
      %5112 = vadd.xlane.f32.xlu0 %v5111
      %v5113 = vpop.xlane.xlu0 %5112
      %v5114 = vsel %vm760, %v5076, 0.0
      %5115 = vadd.xlane.f32.xlu0 %v5114
      %v5116 = vpop.xlane.xlu0 %5115
      %v5117 = vsel %vm779, %v5077, 0.0
      %5118 = vadd.xlane.f32.xlu0 %v5117
      %v5119 = vpop.xlane.xlu0 %5118
      %v5120 = vsel %vm760, %v5078, 0.0
      %5121 = vadd.xlane.f32.xlu0 %v5120
      %v5122 = vpop.xlane.xlu0 %5121
      %v5123 = vsel %vm760, %v5079, 0.0
      %5124 = vadd.xlane.f32.xlu0 %v5123
      %v5125 = vpop.xlane.xlu0 %5124
      %v5126 = vsel %vm760, %v5080, 0.0
      %5127 = vadd.xlane.f32.xlu0 %v5126
      %v5128 = vpop.xlane.xlu0 %5127
      %v5129 = vsel %vm760, %v5081, 0.0
      %5130 = vadd.xlane.f32.xlu0 %v5129
      %v5131 = vpop.xlane.xlu0 %5130
      %v5132 = vsel %vm760, %v5082, 0.0
      %5133 = vadd.xlane.f32.xlu0 %v5132
      %v5134 = vpop.xlane.xlu0 %5133
      %v5135 = vsel %vm760, %v5083, 0.0
      %5136 = vadd.xlane.f32.xlu0 %v5135
      %v5137 = vpop.xlane.xlu0 %5136
      %v5138 = vsel %vm779, %v5084, 0.0
      %5139 = vadd.xlane.f32.xlu0 %v5138
      %v5140 = vpop.xlane.xlu0 %5139
      %v5141 = vsel %vm760, %v5085, 0.0
      %5142 = vadd.xlane.f32.xlu0 %v5141
      %v5143 = vpop.xlane.xlu0 %5142
      %v5144 = vsel %vm760, %v5086, 0.0
      %5145 = vadd.xlane.f32.xlu0 %v5144
      %v5146 = vpop.xlane.xlu0 %5145
      %v5147 = vsel %vm760, %v5087, 0.0
      %5148 = vadd.xlane.f32.xlu0 %v5147
      %v5149 = vpop.xlane.xlu0 %5148
      %v5150 = vsel %vm760, %v5088, 0.0
      %5151 = vadd.xlane.f32.xlu0 %v5150
      %v5152 = vpop.xlane.xlu0 %5151
      %v5153 = vsel %vm760, %v5089, 0.0
      %5154 = vadd.xlane.f32.xlu0 %v5153
      %v5155 = vpop.xlane.xlu0 %5154
      %v5156 = vsel %vm760, %v5090, 0.0
      %5157 = vadd.xlane.f32.xlu0 %v5156
      %v5158 = vpop.xlane.xlu0 %5157
      %v5159 = vsel %vm779, %v5091, 0.0
      %5160 = vadd.xlane.f32.xlu0 %v5159
      %v5161 = vpop.xlane.xlu0 %5160
      %v5162 = vsel %vm760, %v5092, 0.0
      %5163 = vadd.xlane.f32.xlu0 %v5162
      %v5164 = vpop.xlane.xlu0 %5163
      %v5165 = vsel %vm760, %v5093, 0.0
      %5166 = vadd.xlane.f32.xlu0 %v5165
      %v5167 = vpop.xlane.xlu0 %5166
      %v5168 = vsel %vm760, %v5094, 0.0
      %5169 = vadd.xlane.f32.xlu0 %v5168
      %v5170 = vpop.xlane.xlu0 %5169
      %v5171 = vsel %vm760, %v5095, 0.0
      %5172 = vadd.xlane.f32.xlu0 %v5171
      %v5173 = vpop.xlane.xlu0 %5172
      %v5174 = vsel %vm760, %v5096, 0.0
      %5175 = vadd.xlane.f32.xlu0 %v5174
      %v5176 = vpop.xlane.xlu0 %5175
      %v5177 = vsel %vm760, %v5097, 0.0
      %5178 = vadd.xlane.f32.xlu0 %v5177
      %v5179 = vpop.xlane.xlu0 %5178
      %v5180 = vsel %vm779, %v5098, 0.0
      %5181 = vadd.xlane.f32.xlu0 %v5180
      %v5182 = vpop.xlane.xlu0 %5181
      %v5183 = vmul.f32 %v5101, %v846
      %v5184 = vmul.f32 %v5104, %v846
      %v5185 = vmul.f32 %v5107, %v846
      %v5186 = vmul.f32 %v5110, %v846
      %v5187 = vmul.f32 %v5113, %v846
      %v5188 = vmul.f32 %v5116, %v846
      %v5189 = vmul.f32 %v5119, %v846
      %v5190 = vmul.f32 %v5122, %v846
      %v5191 = vmul.f32 %v5125, %v846
      %v5192 = vmul.f32 %v5128, %v846
      %v5193 = vmul.f32 %v5131, %v846
      %v5194 = vmul.f32 %v5134, %v846
      %v5195 = vmul.f32 %v5137, %v846
      %v5196 = vmul.f32 %v5140, %v846
      %v5197 = vmul.f32 %v5143, %v846
      %v5198 = vmul.f32 %v5146, %v846
      %v5199 = vmul.f32 %v5149, %v846
      %v5200 = vmul.f32 %v5152, %v846
      %v5201 = vmul.f32 %v5155, %v846
      %v5202 = vmul.f32 %v5158, %v846
      %v5203 = vmul.f32 %v5161, %v846
      %v5204 = vmul.f32 %v5164, %v846
      %v5205 = vmul.f32 %v5167, %v846
      %v5206 = vmul.f32 %v5170, %v846
      %v5207 = vmul.f32 %v5173, %v846
      %v5208 = vmul.f32 %v5176, %v846
      %v5209 = vmul.f32 %v5179, %v846
      %v5210 = vmul.f32 %v5182, %v846
      %v5211 = vadd.f32 %v5183, 1e-06
      %v5212 = vadd.f32 %v5184, 1e-06
      %v5213 = vadd.f32 %v5185, 1e-06
      %v5214 = vadd.f32 %v5186, 1e-06
      %v5215 = vadd.f32 %v5187, 1e-06
      %v5216 = vadd.f32 %v5188, 1e-06
      %v5217 = vadd.f32 %v5189, 1e-06
      %v5218 = vadd.f32 %v5190, 1e-06
      %v5219 = vadd.f32 %v5191, 1e-06
      %v5220 = vadd.f32 %v5192, 1e-06
      %v5221 = vadd.f32 %v5193, 1e-06
      %v5222 = vadd.f32 %v5194, 1e-06
      %v5223 = vadd.f32 %v5195, 1e-06
      %v5224 = vadd.f32 %v5196, 1e-06
      %v5225 = vadd.f32 %v5197, 1e-06
      %v5226 = vadd.f32 %v5198, 1e-06
      %v5227 = vadd.f32 %v5199, 1e-06
      %v5228 = vadd.f32 %v5200, 1e-06
      %v5229 = vadd.f32 %v5201, 1e-06
      %v5230 = vadd.f32 %v5202, 1e-06
      %v5231 = vadd.f32 %v5203, 1e-06
      %v5232 = vadd.f32 %v5204, 1e-06
      %v5233 = vadd.f32 %v5205, 1e-06
      %v5234 = vadd.f32 %v5206, 1e-06
      %v5235 = vadd.f32 %v5207, 1e-06
      %v5236 = vadd.f32 %v5208, 1e-06
      %v5237 = vadd.f32 %v5209, 1e-06
      %v5238 = vadd.f32 %v5210, 1e-06
      %v5239 = vrsqrt.pop %v5211
      %v5240 = vrsqrt.pop %v5212
      %v5241 = vrsqrt.pop %v5213
      %v5242 = vrsqrt.pop %v5214
      %v5243 = vrsqrt.pop %v5215
      %v5244 = vrsqrt.pop %v5216
      %v5245 = vrsqrt.pop %v5217
      %v5246 = vrsqrt.pop %v5218
      %v5247 = vrsqrt.pop %v5219
      %v5248 = vrsqrt.pop %v5220
      %v5249 = vrsqrt.pop %v5221
      %v5250 = vrsqrt.pop %v5222
      %v5251 = vrsqrt.pop %v5223
      %v5252 = vrsqrt.pop %v5224
      %v5253 = vrsqrt.pop %v5225
      %v5254 = vrsqrt.pop %v5226
      %v5255 = vrsqrt.pop %v5227
      %v5256 = vrsqrt.pop %v5228
      %v5257 = vrsqrt.pop %v5229
      %v5258 = vrsqrt.pop %v5230
      %v5259 = vrsqrt.pop %v5231
      %v5260 = vrsqrt.pop %v5232
      %v5261 = vrsqrt.pop %v5233
      %v5262 = vrsqrt.pop %v5234
      %v5263 = vrsqrt.pop %v5235
      %v5264 = vrsqrt.pop %v5236
      %v5265 = vrsqrt.pop %v5237
      %v5266 = vrsqrt.pop %v5238
      %v5267 = vmul.f32 %v5043, %v5239
      %v5268 = vmul.f32 %v5044, %v5240
      %v5269 = vmul.f32 %v5045, %v5241
      %v5270 = vmul.f32 %v5046, %v5242
      %v5271 = vmul.f32 %v5047, %v5243
      %v5272 = vmul.f32 %v5048, %v5244
      %v5273 = vmul.f32 %v5049, %v5245
      %v5274 = vmul.f32 %v5050, %v5246
      %v5275 = vmul.f32 %v5051, %v5247
      %v5276 = vmul.f32 %v5052, %v5248
      %v5277 = vmul.f32 %v5053, %v5249
      %v5278 = vmul.f32 %v5054, %v5250
      %v5279 = vmul.f32 %v5055, %v5251
      %v5280 = vmul.f32 %v5056, %v5252
      %v5281 = vmul.f32 %v5057, %v5253
      %v5282 = vmul.f32 %v5058, %v5254
      %v5283 = vmul.f32 %v5059, %v5255
      %v5284 = vmul.f32 %v5060, %v5256
      %v5285 = vmul.f32 %v5061, %v5257
      %v5286 = vmul.f32 %v5062, %v5258
      %v5287 = vmul.f32 %v5063, %v5259
      %v5288 = vmul.f32 %v5064, %v5260
      %v5289 = vmul.f32 %v5065, %v5261
      %v5290 = vmul.f32 %v5066, %v5262
      %v5291 = vmul.f32 %v5067, %v5263
      %v5292 = vmul.f32 %v5068, %v5264
      %v5293 = vmul.f32 %v5069, %v5265
      %v5294 = vmul.f32 %v5070, %v5266
      %v5296 = vlaneseq
      %v5297 = vshrl.u32 %v5296, 7
      %v5298 = vsub.s32 0, %v5297
      %v5299 = vrot.slane %v4929, %v5298
      %v5301 = vmul.f32 %v5267, %v5299
      %v5302 = vmul.f32 %v5268, %v5299
      %v5303 = vmul.f32 %v5269, %v5299
      %v5304 = vmul.f32 %v5270, %v5299
      %v5305 = vmul.f32 %v5271, %v5299
      %v5306 = vmul.f32 %v5272, %v5299
      %v5307 = vmul.f32 %v5273, %v5299
      %v5308 = vmul.f32 %v5274, %v5299
      %v5309 = vmul.f32 %v5275, %v5299
      %v5310 = vmul.f32 %v5276, %v5299
      %v5311 = vmul.f32 %v5277, %v5299
      %v5312 = vmul.f32 %v5278, %v5299
      %v5313 = vmul.f32 %v5279, %v5299
      %v5314 = vmul.f32 %v5280, %v5299
      %v5315 = vmul.f32 %v5281, %v5299
      %v5316 = vmul.f32 %v5282, %v5299
      %v5317 = vmul.f32 %v5283, %v5299
      %v5318 = vmul.f32 %v5284, %v5299
      %v5319 = vmul.f32 %v5285, %v5299
      %v5320 = vmul.f32 %v5286, %v5299
      %v5321 = vmul.f32 %v5287, %v5299
      %v5322 = vmul.f32 %v5288, %v5299
      %v5323 = vmul.f32 %v5289, %v5299
      %v5324 = vmul.f32 %v5290, %v5299
      %v5325 = vmul.f32 %v5291, %v5299
      %v5326 = vmul.f32 %v5292, %v5299
      %v5327 = vmul.f32 %v5293, %v5299
      %v5328 = vmul.f32 %v5294, %v5299
      %v5330 = vlaneseq
      %v5331 = vshrl.u32 %v5330, 7
      %v5332 = vsub.s32 0, %v5331
      %v5333 = vrot.slane %v4930, %v5332
      %v5335 = vadd.f32 %v5301, %v5333
      %v5336 = vadd.f32 %v5302, %v5333
      %v5337 = vadd.f32 %v5303, %v5333
      %v5338 = vadd.f32 %v5304, %v5333
      %v5339 = vadd.f32 %v5305, %v5333
      %v5340 = vadd.f32 %v5306, %v5333
      %v5341 = vadd.f32 %v5307, %v5333
      %v5342 = vadd.f32 %v5308, %v5333
      %v5343 = vadd.f32 %v5309, %v5333
      %v5344 = vadd.f32 %v5310, %v5333
      %v5345 = vadd.f32 %v5311, %v5333
      %v5346 = vadd.f32 %v5312, %v5333
      %v5347 = vadd.f32 %v5313, %v5333
      %v5348 = vadd.f32 %v5314, %v5333
      %v5349 = vadd.f32 %v5315, %v5333
      %v5350 = vadd.f32 %v5316, %v5333
      %v5351 = vadd.f32 %v5317, %v5333
      %v5352 = vadd.f32 %v5318, %v5333
      %v5353 = vadd.f32 %v5319, %v5333
      %v5354 = vadd.f32 %v5320, %v5333
      %v5355 = vadd.f32 %v5321, %v5333
      %v5356 = vadd.f32 %v5322, %v5333
      %v5357 = vadd.f32 %v5323, %v5333
      %v5358 = vadd.f32 %v5324, %v5333
      %v5359 = vadd.f32 %v5325, %v5333
      %v5360 = vadd.f32 %v5326, %v5333
      %v5361 = vadd.f32 %v5327, %v5333
      %v5362 = vadd.f32 %v5328, %v5333
      %5391 = vrot.lane.b32.xlu0 %v5335, 64
      %v5392 = vpop.permute.xlu0 %5391
      %5393 = vrot.lane.b32.xlu0 %v5336, 64
      %v5394 = vpop.permute.xlu0 %5393
      %5395 = vrot.lane.b32.xlu0 %v5337, 64
      %v5396 = vpop.permute.xlu0 %5395
      %5397 = vrot.lane.b32.xlu0 %v5338, 64
      %v5398 = vpop.permute.xlu0 %5397
      %5399 = vrot.lane.b32.xlu0 %v5339, 64
      %v5400 = vpop.permute.xlu0 %5399
      %5401 = vrot.lane.b32.xlu0 %v5340, 64
      %v5402 = vpop.permute.xlu0 %5401
      %5403 = vrot.lane.b32.xlu0 %v5341, 64
      %v5404 = vpop.permute.xlu0 %5403
      %5405 = vrot.lane.b32.xlu0 %v5342, 64
      %v5406 = vpop.permute.xlu0 %5405
      %5407 = vrot.lane.b32.xlu0 %v5343, 64
      %v5408 = vpop.permute.xlu0 %5407
      %5409 = vrot.lane.b32.xlu0 %v5344, 64
      %v5410 = vpop.permute.xlu0 %5409
      %5411 = vrot.lane.b32.xlu0 %v5345, 64
      %v5412 = vpop.permute.xlu0 %5411
      %5413 = vrot.lane.b32.xlu0 %v5346, 64
      %v5414 = vpop.permute.xlu0 %5413
      %5415 = vrot.lane.b32.xlu0 %v5347, 64
      %v5416 = vpop.permute.xlu0 %5415
      %5417 = vrot.lane.b32.xlu0 %v5348, 64
      %v5418 = vpop.permute.xlu0 %5417
      %5419 = vrot.lane.b32.xlu0 %v5349, 64
      %v5420 = vpop.permute.xlu0 %5419
      %5421 = vrot.lane.b32.xlu0 %v5350, 64
      %v5422 = vpop.permute.xlu0 %5421
      %5423 = vrot.lane.b32.xlu0 %v5351, 64
      %v5424 = vpop.permute.xlu0 %5423
      %5425 = vrot.lane.b32.xlu0 %v5352, 64
      %v5426 = vpop.permute.xlu0 %5425
      %5427 = vrot.lane.b32.xlu0 %v5353, 64
      %v5428 = vpop.permute.xlu0 %5427
      %5429 = vrot.lane.b32.xlu0 %v5354, 64
      %v5430 = vpop.permute.xlu0 %5429
      %5431 = vrot.lane.b32.xlu0 %v5355, 64
      %v5432 = vpop.permute.xlu0 %5431
      %5433 = vrot.lane.b32.xlu0 %v5356, 64
      %v5434 = vpop.permute.xlu0 %5433
      %5435 = vrot.lane.b32.xlu0 %v5357, 64
      %v5436 = vpop.permute.xlu0 %5435
      %5437 = vrot.lane.b32.xlu0 %v5358, 64
      %v5438 = vpop.permute.xlu0 %5437
      %5439 = vrot.lane.b32.xlu0 %v5359, 64
      %v5440 = vpop.permute.xlu0 %5439
      %5441 = vrot.lane.b32.xlu0 %v5360, 64
      %v5442 = vpop.permute.xlu0 %5441
      %5443 = vrot.lane.b32.xlu0 %v5361, 64
      %v5444 = vpop.permute.xlu0 %5443
      %5445 = vrot.lane.b32.xlu0 %v5362, 64
      %v5446 = vpop.permute.xlu0 %5445
      %v5475 = vsel %vm760, %v5335, %v5392
      %v5476 = vsel %vm760, %v5336, %v5394
      %v5477 = vsel %vm760, %v5337, %v5396
      %v5478 = vsel %vm760, %v5338, %v5398
      %v5479 = vsel %vm760, %v5339, %v5400
      %v5480 = vsel %vm760, %v5340, %v5402
      %v5481 = vsel %vm760, %v5341, %v5404
      %v5482 = vsel %vm760, %v5342, %v5406
      %v5483 = vsel %vm760, %v5343, %v5408
      %v5484 = vsel %vm760, %v5344, %v5410
      %v5485 = vsel %vm760, %v5345, %v5412
      %v5486 = vsel %vm760, %v5346, %v5414
      %v5487 = vsel %vm760, %v5347, %v5416
      %v5488 = vsel %vm760, %v5348, %v5418
      %v5489 = vsel %vm760, %v5349, %v5420
      %v5490 = vsel %vm760, %v5350, %v5422
      %v5491 = vsel %vm760, %v5351, %v5424
      %v5492 = vsel %vm760, %v5352, %v5426
      %v5493 = vsel %vm760, %v5353, %v5428
      %v5494 = vsel %vm760, %v5354, %v5430
      %v5495 = vsel %vm760, %v5355, %v5432
      %v5496 = vsel %vm760, %v5356, %v5434
      %v5497 = vsel %vm760, %v5357, %v5436
      %v5498 = vsel %vm760, %v5358, %v5438
      %v5499 = vsel %vm760, %v5359, %v5440
      %v5500 = vsel %vm760, %v5360, %v5442
      %v5501 = vsel %vm760, %v5361, %v5444
      %v5502 = vsel %vm760, %v5362, %v5446
      %v5503 = vadd.f32 %v5475, %v368
      %v5504 = vadd.f32 %v5475, %v369
      %v5505 = vadd.f32 %v5476, %v370
      %v5506 = vadd.f32 %v5476, %v371
      %v5507 = vadd.f32 %v5477, %v372
      %v5508 = vadd.f32 %v5477, %v373
      %v5509 = vadd.f32 %v5478, %v374
      %v5510 = vadd.f32 %v5478, %v375
      %v5511 = vadd.f32 %v5479, %v376
      %v5512 = vadd.f32 %v5479, %v377
      %v5513 = vadd.f32 %v5480, %v378
      %v5514 = vadd.f32 %v5480, %v379
      %v5515 = vadd.f32 %v5481, %v380
      %v5516 = vadd.f32 %v5481, %v381
      %v5517 = vadd.f32 %v5482, %v382
      %v5518 = vadd.f32 %v5482, %v383
      %v5519 = vadd.f32 %v5483, %v384
      %v5520 = vadd.f32 %v5483, %v385
      %v5521 = vadd.f32 %v5484, %v386
      %v5522 = vadd.f32 %v5484, %v387
      %v5523 = vadd.f32 %v5485, %v388
      %v5524 = vadd.f32 %v5485, %v389
      %v5525 = vadd.f32 %v5486, %v390
      %v5526 = vadd.f32 %v5486, %v391
      %v5527 = vadd.f32 %v5487, %v392
      %v5528 = vadd.f32 %v5487, %v393
      %v5529 = vadd.f32 %v5488, %v394
      %v5530 = vadd.f32 %v5488, %v395
      %v5531 = vadd.f32 %v5489, %v396
      %v5532 = vadd.f32 %v5489, %v397
      %v5533 = vadd.f32 %v5490, %v398
      %v5534 = vadd.f32 %v5490, %v399
      %v5535 = vadd.f32 %v5491, %v400
      %v5536 = vadd.f32 %v5491, %v401
      %v5537 = vadd.f32 %v5492, %v402
      %v5538 = vadd.f32 %v5492, %v403
      %v5539 = vadd.f32 %v5493, %v404
      %v5540 = vadd.f32 %v5493, %v405
      %v5541 = vadd.f32 %v5494, %v406
      %v5542 = vadd.f32 %v5494, %v407
      %v5543 = vadd.f32 %v5495, %v408
      %v5544 = vadd.f32 %v5495, %v409
      %v5545 = vadd.f32 %v5496, %v410
      %v5546 = vadd.f32 %v5496, %v411
      %v5547 = vadd.f32 %v5497, %v412
      %v5548 = vadd.f32 %v5497, %v413
      %v5549 = vadd.f32 %v5498, %v414
      %v5550 = vadd.f32 %v5498, %v415
      %v5551 = vadd.f32 %v5499, %v416
      %v5552 = vadd.f32 %v5499, %v417
      %v5553 = vadd.f32 %v5500, %v418
      %v5554 = vadd.f32 %v5500, %v419
      %v5555 = vadd.f32 %v5501, %v420
      %v5556 = vadd.f32 %v5501, %v421
      %v5557 = vadd.f32 %v5502, %v422
      %v5558 = vadd.f32 %v5502, %v423
      %v5559 = vxor.u32 %v5503, 2147483648
      %v5560 = vxor.u32 %v5504, 2147483648
      %v5561 = vxor.u32 %v5505, 2147483648
      %v5562 = vxor.u32 %v5506, 2147483648
      %v5563 = vxor.u32 %v5507, 2147483648
      %v5564 = vxor.u32 %v5508, 2147483648
      %v5565 = vxor.u32 %v5509, 2147483648
      %v5566 = vxor.u32 %v5510, 2147483648
      %v5567 = vxor.u32 %v5511, 2147483648
      %v5568 = vxor.u32 %v5512, 2147483648
      %v5569 = vxor.u32 %v5513, 2147483648
      %v5570 = vxor.u32 %v5514, 2147483648
      %v5571 = vxor.u32 %v5515, 2147483648
      %v5572 = vxor.u32 %v5516, 2147483648
      %v5573 = vxor.u32 %v5517, 2147483648
      %v5574 = vxor.u32 %v5518, 2147483648
      %v5575 = vxor.u32 %v5519, 2147483648
      %v5576 = vxor.u32 %v5520, 2147483648
      %v5577 = vxor.u32 %v5521, 2147483648
      %v5578 = vxor.u32 %v5522, 2147483648
      %v5579 = vxor.u32 %v5523, 2147483648
      %v5580 = vxor.u32 %v5524, 2147483648
      %v5581 = vxor.u32 %v5525, 2147483648
      %v5582 = vxor.u32 %v5526, 2147483648
      %v5583 = vxor.u32 %v5527, 2147483648
      %v5584 = vxor.u32 %v5528, 2147483648
      %v5585 = vxor.u32 %v5529, 2147483648
      %v5586 = vxor.u32 %v5530, 2147483648
      %v5587 = vxor.u32 %v5531, 2147483648
      %v5588 = vxor.u32 %v5532, 2147483648
      %v5589 = vxor.u32 %v5533, 2147483648
      %v5590 = vxor.u32 %v5534, 2147483648
      %v5591 = vxor.u32 %v5535, 2147483648
      %v5592 = vxor.u32 %v5536, 2147483648
      %v5593 = vxor.u32 %v5537, 2147483648
      %v5594 = vxor.u32 %v5538, 2147483648
      %v5595 = vxor.u32 %v5539, 2147483648
      %v5596 = vxor.u32 %v5540, 2147483648
      %v5597 = vxor.u32 %v5541, 2147483648
      %v5598 = vxor.u32 %v5542, 2147483648
      %v5599 = vxor.u32 %v5543, 2147483648
      %v5600 = vxor.u32 %v5544, 2147483648
      %v5601 = vxor.u32 %v5545, 2147483648
      %v5602 = vxor.u32 %v5546, 2147483648
      %v5603 = vxor.u32 %v5547, 2147483648
      %v5604 = vxor.u32 %v5548, 2147483648
      %v5605 = vxor.u32 %v5549, 2147483648
      %v5606 = vxor.u32 %v5550, 2147483648
      %v5607 = vxor.u32 %v5551, 2147483648
      %v5608 = vxor.u32 %v5552, 2147483648
      %v5609 = vxor.u32 %v5553, 2147483648
      %v5610 = vxor.u32 %v5554, 2147483648
      %v5611 = vxor.u32 %v5555, 2147483648
      %v5612 = vxor.u32 %v5556, 2147483648
      %v5613 = vxor.u32 %v5557, 2147483648
      %v5614 = vxor.u32 %v5558, 2147483648
      %v5615 = vmul.f32 %v5559, 1.442695
      %v5616 = vpow.pop %v5615
      %v5617 = vmul.f32 %v5560, 1.442695
      %v5618 = vpow.pop %v5617
      %v5619 = vmul.f32 %v5561, 1.442695
      %v5620 = vpow.pop %v5619
      %v5621 = vmul.f32 %v5562, 1.442695
      %v5622 = vpow.pop %v5621
      %v5623 = vmul.f32 %v5563, 1.442695
      %v5624 = vpow.pop %v5623
      %v5625 = vmul.f32 %v5564, 1.442695
      %v5626 = vpow.pop %v5625
      %v5627 = vmul.f32 %v5565, 1.442695
      %v5628 = vpow.pop %v5627
      %v5629 = vmul.f32 %v5566, 1.442695
      %v5630 = vpow.pop %v5629
      %v5631 = vmul.f32 %v5567, 1.442695
      %v5632 = vpow.pop %v5631
      %v5633 = vmul.f32 %v5568, 1.442695
      %v5634 = vpow.pop %v5633
      %v5635 = vmul.f32 %v5569, 1.442695
      %v5636 = vpow.pop %v5635
      %v5637 = vmul.f32 %v5570, 1.442695
      %v5638 = vpow.pop %v5637
      %v5639 = vmul.f32 %v5571, 1.442695
      %v5640 = vpow.pop %v5639
      %v5641 = vmul.f32 %v5572, 1.442695
      %v5642 = vpow.pop %v5641
      %v5643 = vmul.f32 %v5573, 1.442695
      %v5644 = vpow.pop %v5643
      %v5645 = vmul.f32 %v5574, 1.442695
      %v5646 = vpow.pop %v5645
      %v5647 = vmul.f32 %v5575, 1.442695
      %v5648 = vpow.pop %v5647
      %v5649 = vmul.f32 %v5576, 1.442695
      %v5650 = vpow.pop %v5649
      %v5651 = vmul.f32 %v5577, 1.442695
      %v5652 = vpow.pop %v5651
      %v5653 = vmul.f32 %v5578, 1.442695
      %v5654 = vpow.pop %v5653
      %v5655 = vmul.f32 %v5579, 1.442695
      %v5656 = vpow.pop %v5655
      %v5657 = vmul.f32 %v5580, 1.442695
      %v5658 = vpow.pop %v5657
      %v5659 = vmul.f32 %v5581, 1.442695
      %v5660 = vpow.pop %v5659
      %v5661 = vmul.f32 %v5582, 1.442695
      %v5662 = vpow.pop %v5661
      %v5663 = vmul.f32 %v5583, 1.442695
      %v5664 = vpow.pop %v5663
      %v5665 = vmul.f32 %v5584, 1.442695
      %v5666 = vpow.pop %v5665
      %v5667 = vmul.f32 %v5585, 1.442695
      %v5668 = vpow.pop %v5667
      %v5669 = vmul.f32 %v5586, 1.442695
      %v5670 = vpow.pop %v5669
      %v5671 = vmul.f32 %v5587, 1.442695
      %v5672 = vpow.pop %v5671
      %v5673 = vmul.f32 %v5588, 1.442695
      %v5674 = vpow.pop %v5673
      %v5675 = vmul.f32 %v5589, 1.442695
      %v5676 = vpow.pop %v5675
      %v5677 = vmul.f32 %v5590, 1.442695
      %v5678 = vpow.pop %v5677
      %v5679 = vmul.f32 %v5591, 1.442695
      %v5680 = vpow.pop %v5679
      %v5681 = vmul.f32 %v5592, 1.442695
      %v5682 = vpow.pop %v5681
      %v5683 = vmul.f32 %v5593, 1.442695
      %v5684 = vpow.pop %v5683
      %v5685 = vmul.f32 %v5594, 1.442695
      %v5686 = vpow.pop %v5685
      %v5687 = vmul.f32 %v5595, 1.442695
      %v5688 = vpow.pop %v5687
      %v5689 = vmul.f32 %v5596, 1.442695
      %v5690 = vpow.pop %v5689
      %v5691 = vmul.f32 %v5597, 1.442695
      %v5692 = vpow.pop %v5691
      %v5693 = vmul.f32 %v5598, 1.442695
      %v5694 = vpow.pop %v5693
      %v5695 = vmul.f32 %v5599, 1.442695
      %v5696 = vpow.pop %v5695
      %v5697 = vmul.f32 %v5600, 1.442695
      %v5698 = vpow.pop %v5697
      %v5699 = vmul.f32 %v5601, 1.442695
      %v5700 = vpow.pop %v5699
      %v5701 = vmul.f32 %v5602, 1.442695
      %v5702 = vpow.pop %v5701
      %v5703 = vmul.f32 %v5603, 1.442695
      %v5704 = vpow.pop %v5703
      %v5705 = vmul.f32 %v5604, 1.442695
      %v5706 = vpow.pop %v5705
      %v5707 = vmul.f32 %v5605, 1.442695
      %v5708 = vpow.pop %v5707
      %v5709 = vmul.f32 %v5606, 1.442695
      %v5710 = vpow.pop %v5709
      %v5711 = vmul.f32 %v5607, 1.442695
      %v5712 = vpow.pop %v5711
      %v5713 = vmul.f32 %v5608, 1.442695
      %v5714 = vpow.pop %v5713
      %v5715 = vmul.f32 %v5609, 1.442695
      %v5716 = vpow.pop %v5715
      %v5717 = vmul.f32 %v5610, 1.442695
      %v5718 = vpow.pop %v5717
      %v5719 = vmul.f32 %v5611, 1.442695
      %v5720 = vpow.pop %v5719
      %v5721 = vmul.f32 %v5612, 1.442695
      %v5722 = vpow.pop %v5721
      %v5723 = vmul.f32 %v5613, 1.442695
      %v5724 = vpow.pop %v5723
      %v5725 = vmul.f32 %v5614, 1.442695
      %v5726 = vpow.pop %v5725
      %v5727 = vadd.f32 %v5616, 1.0
      %v5728 = vadd.f32 %v5618, 1.0
      %v5729 = vadd.f32 %v5620, 1.0
      %v5730 = vadd.f32 %v5622, 1.0
      %v5731 = vadd.f32 %v5624, 1.0
      %v5732 = vadd.f32 %v5626, 1.0
      %v5733 = vadd.f32 %v5628, 1.0
      %v5734 = vadd.f32 %v5630, 1.0
      %v5735 = vadd.f32 %v5632, 1.0
      %v5736 = vadd.f32 %v5634, 1.0
      %v5737 = vadd.f32 %v5636, 1.0
      %v5738 = vadd.f32 %v5638, 1.0
      %v5739 = vadd.f32 %v5640, 1.0
      %v5740 = vadd.f32 %v5642, 1.0
      %v5741 = vadd.f32 %v5644, 1.0
      %v5742 = vadd.f32 %v5646, 1.0
      %v5743 = vadd.f32 %v5648, 1.0
      %v5744 = vadd.f32 %v5650, 1.0
      %v5745 = vadd.f32 %v5652, 1.0
      %v5746 = vadd.f32 %v5654, 1.0
      %v5747 = vadd.f32 %v5656, 1.0
      %v5748 = vadd.f32 %v5658, 1.0
      %v5749 = vadd.f32 %v5660, 1.0
      %v5750 = vadd.f32 %v5662, 1.0
      %v5751 = vadd.f32 %v5664, 1.0
      %v5752 = vadd.f32 %v5666, 1.0
      %v5753 = vadd.f32 %v5668, 1.0
      %v5754 = vadd.f32 %v5670, 1.0
      %v5755 = vadd.f32 %v5672, 1.0
      %v5756 = vadd.f32 %v5674, 1.0
      %v5757 = vadd.f32 %v5676, 1.0
      %v5758 = vadd.f32 %v5678, 1.0
      %v5759 = vadd.f32 %v5680, 1.0
      %v5760 = vadd.f32 %v5682, 1.0
      %v5761 = vadd.f32 %v5684, 1.0
      %v5762 = vadd.f32 %v5686, 1.0
      %v5763 = vadd.f32 %v5688, 1.0
      %v5764 = vadd.f32 %v5690, 1.0
      %v5765 = vadd.f32 %v5692, 1.0
      %v5766 = vadd.f32 %v5694, 1.0
      %v5767 = vadd.f32 %v5696, 1.0
      %v5768 = vadd.f32 %v5698, 1.0
      %v5769 = vadd.f32 %v5700, 1.0
      %v5770 = vadd.f32 %v5702, 1.0
      %v5771 = vadd.f32 %v5704, 1.0
      %v5772 = vadd.f32 %v5706, 1.0
      %v5773 = vadd.f32 %v5708, 1.0
      %v5774 = vadd.f32 %v5710, 1.0
      %v5775 = vadd.f32 %v5712, 1.0
      %v5776 = vadd.f32 %v5714, 1.0
      %v5777 = vadd.f32 %v5716, 1.0
      %v5778 = vadd.f32 %v5718, 1.0
      %v5779 = vadd.f32 %v5720, 1.0
      %v5780 = vadd.f32 %v5722, 1.0
      %v5781 = vadd.f32 %v5724, 1.0
      %v5782 = vadd.f32 %v5726, 1.0
      %v5783 = vrcp.pop %v5727
      %v5784 = vmul.f32 1.0, %v5783
      %v5785 = vrcp.pop %v5728
      %v5786 = vmul.f32 1.0, %v5785
      %v5787 = vrcp.pop %v5729
      %v5788 = vmul.f32 1.0, %v5787
      %v5789 = vrcp.pop %v5730
      %v5790 = vmul.f32 1.0, %v5789
      %v5791 = vrcp.pop %v5731
      %v5792 = vmul.f32 1.0, %v5791
      %v5793 = vrcp.pop %v5732
      %v5794 = vmul.f32 1.0, %v5793
      %v5795 = vrcp.pop %v5733
      %v5796 = vmul.f32 1.0, %v5795
      %v5797 = vrcp.pop %v5734
      %v5798 = vmul.f32 1.0, %v5797
      %v5799 = vrcp.pop %v5735
      %v5800 = vmul.f32 1.0, %v5799
      %v5801 = vrcp.pop %v5736
      %v5802 = vmul.f32 1.0, %v5801
      %v5803 = vrcp.pop %v5737
      %v5804 = vmul.f32 1.0, %v5803
      %v5805 = vrcp.pop %v5738
      %v5806 = vmul.f32 1.0, %v5805
      %v5807 = vrcp.pop %v5739
      %v5808 = vmul.f32 1.0, %v5807
      %v5809 = vrcp.pop %v5740
      %v5810 = vmul.f32 1.0, %v5809
      %v5811 = vrcp.pop %v5741
      %v5812 = vmul.f32 1.0, %v5811
      %v5813 = vrcp.pop %v5742
      %v5814 = vmul.f32 1.0, %v5813
      %v5815 = vrcp.pop %v5743
      %v5816 = vmul.f32 1.0, %v5815
      %v5817 = vrcp.pop %v5744
      %v5818 = vmul.f32 1.0, %v5817
      %v5819 = vrcp.pop %v5745
      %v5820 = vmul.f32 1.0, %v5819
      %v5821 = vrcp.pop %v5746
      %v5822 = vmul.f32 1.0, %v5821
      %v5823 = vrcp.pop %v5747
      %v5824 = vmul.f32 1.0, %v5823
      %v5825 = vrcp.pop %v5748
      %v5826 = vmul.f32 1.0, %v5825
      %v5827 = vrcp.pop %v5749
      %v5828 = vmul.f32 1.0, %v5827
      %v5829 = vrcp.pop %v5750
      %v5830 = vmul.f32 1.0, %v5829
      %v5831 = vrcp.pop %v5751
      %v5832 = vmul.f32 1.0, %v5831
      %v5833 = vrcp.pop %v5752
      %v5834 = vmul.f32 1.0, %v5833
      %v5835 = vrcp.pop %v5753
      %v5836 = vmul.f32 1.0, %v5835
      %v5837 = vrcp.pop %v5754
      %v5838 = vmul.f32 1.0, %v5837
      %v5839 = vrcp.pop %v5755
      %v5840 = vmul.f32 1.0, %v5839
      %v5841 = vrcp.pop %v5756
      %v5842 = vmul.f32 1.0, %v5841
      %v5843 = vrcp.pop %v5757
      %v5844 = vmul.f32 1.0, %v5843
      %v5845 = vrcp.pop %v5758
      %v5846 = vmul.f32 1.0, %v5845
      %v5847 = vrcp.pop %v5759
      %v5848 = vmul.f32 1.0, %v5847
      %v5849 = vrcp.pop %v5760
      %v5850 = vmul.f32 1.0, %v5849
      %v5851 = vrcp.pop %v5761
      %v5852 = vmul.f32 1.0, %v5851
      %v5853 = vrcp.pop %v5762
      %v5854 = vmul.f32 1.0, %v5853
      %v5855 = vrcp.pop %v5763
      %v5856 = vmul.f32 1.0, %v5855
      %v5857 = vrcp.pop %v5764
      %v5858 = vmul.f32 1.0, %v5857
      %v5859 = vrcp.pop %v5765
      %v5860 = vmul.f32 1.0, %v5859
      %v5861 = vrcp.pop %v5766
      %v5862 = vmul.f32 1.0, %v5861
      %v5863 = vrcp.pop %v5767
      %v5864 = vmul.f32 1.0, %v5863
      %v5865 = vrcp.pop %v5768
      %v5866 = vmul.f32 1.0, %v5865
      %v5867 = vrcp.pop %v5769
      %v5868 = vmul.f32 1.0, %v5867
      %v5869 = vrcp.pop %v5770
      %v5870 = vmul.f32 1.0, %v5869
      %v5871 = vrcp.pop %v5771
      %v5872 = vmul.f32 1.0, %v5871
      %v5873 = vrcp.pop %v5772
      %v5874 = vmul.f32 1.0, %v5873
      %v5875 = vrcp.pop %v5773
      %v5876 = vmul.f32 1.0, %v5875
      %v5877 = vrcp.pop %v5774
      %v5878 = vmul.f32 1.0, %v5877
      %v5879 = vrcp.pop %v5775
      %v5880 = vmul.f32 1.0, %v5879
      %v5881 = vrcp.pop %v5776
      %v5882 = vmul.f32 1.0, %v5881
      %v5883 = vrcp.pop %v5777
      %v5884 = vmul.f32 1.0, %v5883
      %v5885 = vrcp.pop %v5778
      %v5886 = vmul.f32 1.0, %v5885
      %v5887 = vrcp.pop %v5779
      %v5888 = vmul.f32 1.0, %v5887
      %v5889 = vrcp.pop %v5780
      %v5890 = vmul.f32 1.0, %v5889
      %v5891 = vrcp.pop %v5781
      %v5892 = vmul.f32 1.0, %v5891
      %v5893 = vrcp.pop %v5782
      %v5894 = vmul.f32 1.0, %v5893
      %v5895 = vmul.f32 %v368, %v5784
      %v5896 = vmul.f32 %v369, %v5786
      %v5897 = vmul.f32 %v370, %v5788
      %v5898 = vmul.f32 %v371, %v5790
      %v5899 = vmul.f32 %v372, %v5792
      %v5900 = vmul.f32 %v373, %v5794
      %v5901 = vmul.f32 %v374, %v5796
      %v5902 = vmul.f32 %v375, %v5798
      %v5903 = vmul.f32 %v376, %v5800
      %v5904 = vmul.f32 %v377, %v5802
      %v5905 = vmul.f32 %v378, %v5804
      %v5906 = vmul.f32 %v379, %v5806
      %v5907 = vmul.f32 %v380, %v5808
      %v5908 = vmul.f32 %v381, %v5810
      %v5909 = vmul.f32 %v382, %v5812
      %v5910 = vmul.f32 %v383, %v5814
      %v5911 = vmul.f32 %v384, %v5816
      %v5912 = vmul.f32 %v385, %v5818
      %v5913 = vmul.f32 %v386, %v5820
      %v5914 = vmul.f32 %v387, %v5822
      %v5915 = vmul.f32 %v388, %v5824
      %v5916 = vmul.f32 %v389, %v5826
      %v5917 = vmul.f32 %v390, %v5828
      %v5918 = vmul.f32 %v391, %v5830
      %v5919 = vmul.f32 %v392, %v5832
      %v5920 = vmul.f32 %v393, %v5834
      %v5921 = vmul.f32 %v394, %v5836
      %v5922 = vmul.f32 %v395, %v5838
      %v5923 = vmul.f32 %v396, %v5840
      %v5924 = vmul.f32 %v397, %v5842
      %v5925 = vmul.f32 %v398, %v5844
      %v5926 = vmul.f32 %v399, %v5846
      %v5927 = vmul.f32 %v400, %v5848
      %v5928 = vmul.f32 %v401, %v5850
      %v5929 = vmul.f32 %v402, %v5852
      %v5930 = vmul.f32 %v403, %v5854
      %v5931 = vmul.f32 %v404, %v5856
      %v5932 = vmul.f32 %v405, %v5858
      %v5933 = vmul.f32 %v406, %v5860
      %v5934 = vmul.f32 %v407, %v5862
      %v5935 = vmul.f32 %v408, %v5864
      %v5936 = vmul.f32 %v409, %v5866
      %v5937 = vmul.f32 %v410, %v5868
      %v5938 = vmul.f32 %v411, %v5870
      %v5939 = vmul.f32 %v412, %v5872
      %v5940 = vmul.f32 %v413, %v5874
      %v5941 = vmul.f32 %v414, %v5876
      %v5942 = vmul.f32 %v415, %v5878
      %v5943 = vmul.f32 %v416, %v5880
      %v5944 = vmul.f32 %v417, %v5882
      %v5945 = vmul.f32 %v418, %v5884
      %v5946 = vmul.f32 %v419, %v5886
      %v5947 = vmul.f32 %v420, %v5888
      %v5948 = vmul.f32 %v421, %v5890
      %v5949 = vmul.f32 %v422, %v5892
      %v5950 = vmul.f32 %v423, %v5894
      %5951 = vst [vmem:[%s366] sm:$0xff] %v5895
      %5952 = vst [vmem:[%s366 + $0x8] sm:$0xff] %v5896
      %5953 = vst [vmem:[%s366 + $0x10] sm:$0xff] %v5897
      %5954 = vst [vmem:[%s366 + $0x18] sm:$0xff] %v5898
      %5955 = vst [vmem:[%s366 + $0x20] sm:$0xff] %v5899
      %5956 = vst [vmem:[%s366 + $0x28] sm:$0xff] %v5900
      %5957 = vst [vmem:[%s366 + $0x30] sm:$0xff] %v5901
      %5958 = vst [vmem:[%s366 + $0x38] sm:$0xff] %v5902
      %5959 = vst [vmem:[%s366 + $0x40] sm:$0xff] %v5903
      %5960 = vst [vmem:[%s366 + $0x48] sm:$0xff] %v5904
      %5961 = vst [vmem:[%s366 + $0x50] sm:$0xff] %v5905
      %5962 = vst [vmem:[%s366 + $0x58] sm:$0xff] %v5906
      %5963 = vst [vmem:[%s366 + $0x60] sm:$0x1] %v5907
      %5964 = vst [vmem:[%s366 + $0x68] sm:$0x1] %v5908
      %5965 = vst [vmem:[%s366 + $0x70] sm:$0xff] %v5909
      %5966 = vst [vmem:[%s366 + $0x78] sm:$0xff] %v5910
      %5967 = vst [vmem:[%s366 + $0x80] sm:$0xff] %v5911
      %5968 = vst [vmem:[%s366 + $0x88] sm:$0xff] %v5912
      %5969 = vst [vmem:[%s366 + $0x90] sm:$0xff] %v5913
      %5970 = vst [vmem:[%s366 + $0x98] sm:$0xff] %v5914
      %5971 = vst [vmem:[%s366 + $0xa0] sm:$0xff] %v5915
      %5972 = vst [vmem:[%s366 + $0xa8] sm:$0xff] %v5916
      %5973 = vst [vmem:[%s366 + $0xb0] sm:$0xff] %v5917
      %5974 = vst [vmem:[%s366 + $0xb8] sm:$0xff] %v5918
      %5975 = vst [vmem:[%s366 + $0xc0] sm:$0xff] %v5919
      %5976 = vst [vmem:[%s366 + $0xc8] sm:$0xff] %v5920
      %5977 = vst [vmem:[%s366 + $0xd0] sm:$0x1] %v5921
      %5978 = vst [vmem:[%s366 + $0xd8] sm:$0x1] %v5922
      %5979 = vst [vmem:[%s366 + $0xe0] sm:$0xff] %v5923
      %5980 = vst [vmem:[%s366 + $0xe8] sm:$0xff] %v5924
      %5981 = vst [vmem:[%s366 + $0xf0] sm:$0xff] %v5925
      %5982 = vst [vmem:[%s366 + $0xf8] sm:$0xff] %v5926
      %5983 = vst [vmem:[%s366 + $0x100] sm:$0xff] %v5927
      %5984 = vst [vmem:[%s366 + $0x108] sm:$0xff] %v5928
      %5985 = vst [vmem:[%s366 + $0x110] sm:$0xff] %v5929
      %5986 = vst [vmem:[%s366 + $0x118] sm:$0xff] %v5930
      %5987 = vst [vmem:[%s366 + $0x120] sm:$0xff] %v5931
      %5988 = vst [vmem:[%s366 + $0x128] sm:$0xff] %v5932
      %5989 = vst [vmem:[%s366 + $0x130] sm:$0xff] %v5933
      %5990 = vst [vmem:[%s366 + $0x138] sm:$0xff] %v5934
      %5991 = vst [vmem:[%s366 + $0x140] sm:$0x1] %v5935
      %5992 = vst [vmem:[%s366 + $0x148] sm:$0x1] %v5936
      %5993 = vst [vmem:[%s366 + $0x150] sm:$0xff] %v5937
      %5994 = vst [vmem:[%s366 + $0x158] sm:$0xff] %v5938
      %5995 = vst [vmem:[%s366 + $0x160] sm:$0xff] %v5939
      %5996 = vst [vmem:[%s366 + $0x168] sm:$0xff] %v5940
      %5997 = vst [vmem:[%s366 + $0x170] sm:$0xff] %v5941
      %5998 = vst [vmem:[%s366 + $0x178] sm:$0xff] %v5942
      %5999 = vst [vmem:[%s366 + $0x180] sm:$0xff] %v5943
      %6000 = vst [vmem:[%s366 + $0x188] sm:$0xff] %v5944
      %6001 = vst [vmem:[%s366 + $0x190] sm:$0xff] %v5945
      %6002 = vst [vmem:[%s366 + $0x198] sm:$0xff] %v5946
      %6003 = vst [vmem:[%s366 + $0x1a0] sm:$0xff] %v5947
      %6004 = vst [vmem:[%s366 + $0x1a8] sm:$0xff] %v5948
      %6005 = vst [vmem:[%s366 + $0x1b0] sm:$0x1] %v5949
      %6006 = vst [vmem:[%s366 + $0x1b8] sm:$0x1] %v5950
      %s6007 = smul.u32 4, %s21
      %p6008 = scmp.lt.s32.totalorder %s6007, 7
      %s6009 = scalar_select %p6008, %s6007, 7
      %s6010 = smul.addr %s6009, 14
      %s6011 = smul.addr %s6010, 8
      %s6012 = scalar_lea.vmem %s10, %s6011
      // Predicated region
      $region61: #{tpu_custom_call.1} parent=59 // pred_check
        %p6013 = pneg %p254
      $region62: #{tpu_custom_call.1} parent=59 // pred_check_branch
        %6015 = sbr.rel (%p6013) target = $region64
      $region63: #{tpu_custom_call.1} parent=59 // pred_region
        %s6016 = smul.u32 4, %s21
      $region64: #{tpu_custom_call.1} parent=59 // pred_fallthru
        _
    $region60: #{tpu_custom_call.1} parent=5 // pred_fallthru
      _
    %p6017 = scmp.le.s32.totalorder 2, %s16
    // Predicated region
    $region65: #{tpu_custom_call.1} parent=5 // pred_check
      %p6018 = pneg %p6017
    $region66: #{tpu_custom_call.1} parent=5 // pred_check_branch
      %6020 = sbr.rel (%p6018) target = $region68
    $region67: #{tpu_custom_call.1} parent=5 // pred_region
      %s6021 = ssub.s32 %s16, 2
      // Predicated region
      $region69: #{tpu_custom_call.1} parent=67 // pred_check
        %p6022 = pneg %p260
      $region70: #{tpu_custom_call.1} parent=67 // pred_check_branch
        %6024 = sbr.rel (%p6022) target = $region72
      $region71: #{tpu_custom_call.1} parent=67 // pred_region
        %s6025 = smul.u32 4, %s22
        %p6026 = scmp.lt.s32.totalorder %s6025, 7
        %s6027 = scalar_select %p6026, %s6025, 7
        %s6028 = smul.addr %s6027, 14
        %s6029 = smul.addr %s6028, 8
        %s6030 = scalar_lea.vmem %s10, %s6029
      $region72: #{tpu_custom_call.1} parent=67 // pred_fallthru
        _
    $region68: #{tpu_custom_call.1} parent=5 // pred_fallthru
      _
  $region6: #{tpu_custom_call.1} parent=0 // loop_footer
    %s20 = sadd.s32 1, %s16
  $region7: #{tpu_custom_call.1} parent=0 // loop_footer_branch
    %15 = sbr.rel target = $region3
  $region8: #{tpu_custom_call.1} parent=0 // loop_exit
    _

</llo_original>
